<compile_context>
chip_gen: v6e
topology: v6e:2x2x1
jax: 0.10.0
libtpu: 0.0.40
codegen_flags: <defaults>
</compile_context>

<pallas_src>
import numpy as np
import jax
import jax.numpy as jnp
from jax.experimental import pallas as pl
from jax.experimental.pallas import tpu as pltpu

POS_DIM = 24                    # SpatialEncoding out_dim
FEAT_DIM = 256                  # feature channels (module hard-codes in_dim = 4*(256+26))
ENC_DIM = POS_DIM + 2           # 26 : [rel_coord(2), sin(12), cos(12)]
ENC_PAD = 32                    # per-level enc block padded to 32 cols
ENC_BLOCK = 4 * ENC_PAD         # 128 : one clean K tile for the fused enc matmul
CAT_DIM = FEAT_DIM + ENC_DIM    # 282
IN_DIM = 4 * CAT_DIM            # 1128
FEAT_CAT = 4 * FEAT_DIM         # 1024 : channel-stacked q_feat for the fused path
HID1, HID2, HID3 = 512, 256, 256
OUT_PAD = 128                   # lane-dense final layer (3 real cols/rows + zeros)
BN_EPS = 1e-5


# ---------------------------------------------------------------------------
# Generation-aware budgets & tile selection.
# ---------------------------------------------------------------------------
def _hw_config():
    """Returns (vmem_limit_bytes, max_n_tile) chosen per TPU generation."""
    vmem_phys = 64 * 1024 * 1024
    try:
        info = pltpu.get_tpu_info()
        vmem_phys = int(getattr(info, "vmem_capacity_bytes", vmem_phys))
    except Exception:
        pass
    if vmem_phys >= 96 * 1024 * 1024:          # v5e / v6e: 128 MiB physical VMEM
        return 64 * 1024 * 1024, 2048
    return 40 * 1024 * 1024, 1024              # v7x: 64 MiB physical VMEM per core


def _choose_tile(n, batch=1, cap=1024, mult=16, lane_major=False):
    """Largest N-tile <= cap dividing n; keeps >= 2 grid points when possible.

    mult=16 for bf16-blocked tiles (sublane packing), 8 for f32-only kernels.
    lane_major=True when tn is the *lane* (last) block dim (must be a 128-multiple).
    """
    if lane_major:
        cands = [t for t in (2048, 1024, 512, 256, 128) if t <= cap and n % t == 0]
        if not cands:
            return n                   # full extent: always a legal last block dim
    else:
        cands = [t for t in (2048, 1024, 512, 256, 128, 64, 32, 16, 8)
                 if t <= cap and n % t == 0 and t % mult == 0]
        if not cands:
            raise ValueError(f"N={n} must be a multiple of {mult}")
    for t in cands:
        if batch * (n // t) >= 2:      # keep v7x's 2nd TensorCore busy
            return t
    return cands[-1]


_SINGLE_BUFFER_WEIGHTS = [True]        # flipped off if pipeline_mode=Buffered(1) rejected


def _call_with_weight_buffering(call):
    """call(single_buffer: bool) -> result; falls back if Buffered(1) is unsupported."""
    if _SINGLE_BUFFER_WEIGHTS[0]:
        try:
            return call(True)
        except Exception:
            _SINGLE_BUFFER_WEIGHTS[0] = False
    return call(False)


# ---------------------------------------------------------------------------
# Deterministic parameter construction (mirrors the torch module __init__).
# ---------------------------------------------------------------------------
def make_spatial_encoding_emb(in_dim=2, out_dim=POS_DIM, sigma=6):
    """SpatialEncoding's `emb` matrix (deterministic construction), shape (12, 2)."""
    n = out_dim // 2 // in_dim                               # 6
    m = 2.0 ** np.linspace(0, sigma, n)                      # (6,)
    m = np.stack([m] + [np.zeros_like(m)] * (in_dim - 1), axis=-1)       # (6, 2)
    m = np.concatenate([np.roll(m, i, axis=-1) for i in range(in_dim)], axis=0)
    return jnp.asarray(m, dtype=jnp.float32)                 # (12, 2)


def conv1d_params(key, cin, cout):
    """nn.Conv1d(cin, cout, 1) default (kaiming-uniform-like) init, deterministic."""
    kw, kb = jax.random.split(key)
    bound = 1.0 / np.sqrt(cin)
    w = jax.random.uniform(kw, (cout, cin), jnp.float32, -bound, bound)
    b = jax.random.uniform(kb, (cout,), jnp.float32, -bound, bound)
    return w, b


def fold_bn(w, b, gamma, beta, mean, var, eps=BN_EPS):
    """Fold eval-mode BatchNorm1d into the preceding 1x1 conv."""
    scale = gamma / jnp.sqrt(var + eps)
    return w * scale[:, None], b * scale + (beta - mean * scale)


# ---------------------------------------------------------------------------
# gen_feat glue: nearest grid_sample with static indices (pure re-indexing, XLA).
# ---------------------------------------------------------------------------
def make_coord(shape):
    seqs = []
    for n in shape:
        r = 1.0 / n
        seqs.append(-1.0 + r + 2.0 * r * jnp.arange(n, dtype=jnp.float32))
    return jnp.stack(jnp.meshgrid(*seqs, indexing="ij"), axis=-1)        # (*shape, 2)


def gen_feat(x, size, stride=1):
    """IFA gen_feat, non-local path (vx=vy=0).

    Returns rel_coord [N, 2] (batch-invariant) and q_feat [B, N, C].
    """
    B, C, hh, ww = x.shape
    h, w = size
    coords = make_coord((h, w)).reshape(-1, 2)                # (N, 2): [:,0]=y, [:,1]=x
    coords_ = jnp.clip(coords, -1.0 + 1e-6, 1.0 - 1e-6)

    # grid_sample(mode='nearest', align_corners=False) index computation (static).
    iy = jnp.round(((coords_[:, 0] + 1.0) * hh - 1.0) / 2.0).astype(jnp.int32)
    ix = jnp.round(((coords_[:, 1] + 1.0) * ww - 1.0) / 2.0).astype(jnp.int32)
    iy = jnp.clip(iy, 0, hh - 1)
    ix = jnp.clip(ix, 0, ww - 1)
    flat = iy * ww + ix                                       # (N,)

    x_flat = x.reshape(B, C, hh * ww)
    q_feat = jnp.take(x_flat, flat, axis=2).transpose(0, 2, 1)           # (B, N, C)

    feat_coord = make_coord((hh, ww)).reshape(hh * ww, 2)     # (hh*ww, 2)
    q_coord = feat_coord[flat]                                # (N, 2)
    rel_coord = (coords - q_coord) * jnp.array([hh, ww], dtype=jnp.float32)
    return rel_coord.astype(jnp.float32), q_feat.astype(jnp.float32)


# ---------------------------------------------------------------------------
# Kernel 1 (module branch 1): SpatialEncoding only (batch-invariant, 26 cols).
# q_feat is NOT passed through the kernel anymore; the concat happens in XLA.
# ---------------------------------------------------------------------------
def _pos_enc_kernel(rc_ref, embT_ref, out_ref):
    rc = rc_ref[...]                                  # (tn, 2)
    embT = embT_ref[...]                              # (2, 12)
    y = rc[:, 0:1] * embT[0:1, :] + rc[:, 1:2] * embT[1:2, :]            # (tn, 12)
    out_ref[...] = jnp.concatenate([rc, jnp.sin(y), jnp.cos(y)], axis=-1)


def pos_encode(rel_coord, embT, *, cap, vmem_limit):
    N = rel_coord.shape[0]
    tn = _choose_tile(N, batch=1, cap=cap, mult=8)
    ce = pl.CostEstimate(flops=6 * N * (POS_DIM // 2),
                         transcendentals=2 * N * (POS_DIM // 2),
                         bytes_accessed=N * 2 * 4 + N * ENC_DIM * 4)
    return pl.pallas_call(
        _pos_enc_kernel,
        out_shape=jax.ShapeDtypeStruct((N, ENC_DIM), jnp.float32),
        grid_spec=pltpu.PrefetchScalarGridSpec(
            num_scalar_prefetch=0,
            grid=(N // tn,),
            in_specs=[
                pl.BlockSpec((tn, 2), lambda i: (i, 0)),
                pl.BlockSpec((2, POS_DIM // 2), lambda i: (0, 0)),
            ],
            out_specs=pl.BlockSpec((tn, ENC_DIM), lambda i: (i, 0)),
        ),
        compiler_params=pltpu.CompilerParams(
            dimension_semantics=("parallel",), vmem_limit_bytes=vmem_limit),
        cost_estimate=ce,
    )(rel_coord, embT)


# ---------------------------------------------------------------------------
# Kernel 2 (fused path, one-shot): batch-invariant layer-1 encoding term.
# enc_term = [enc_0|enc_1|enc_2|enc_3] (tn,128) @ w1e_flat (128,512) + b1   (f32)
# ---------------------------------------------------------------------------
def _enc_term_kernel(rc_ref, emb_ref, w1e_ref, b1_ref, out_ref):
    tn = rc_ref.shape[1]
    pad = jnp.zeros((tn, ENC_PAD - ENC_DIM), jnp.float32)
    blocks = []
    for l in range(4):                                 # unrolled over levels
        rc = rc_ref[l]                                 # (tn, 2)
        emb = emb_ref[l]                               # (2, 12)
        y = rc[:, 0:1] * emb[0:1, :] + rc[:, 1:2] * emb[1:2, :]
        blocks.append(jnp.concatenate([rc, jnp.sin(y), jnp.cos(y), pad], axis=-1))
    enc = jnp.concatenate(blocks, axis=-1)             # (tn, 128)
    # f32 matmul: one-shot, batch-invariant, keeps the enc contribution exact.
    out_ref[...] = (jnp.dot(enc, w1e_ref[...], preferred_element_type=jnp.float32)
                    + b1_ref[...])


def enc_term(rc_stack, embT_stack, w1e_flat, b1, *, cap, vmem_limit):
    N = rc_stack.shape[1]
    tn = _choose_tile(N, batch=1, cap=cap, mult=8)
    ce = pl.CostEstimate(
        flops=2 * N * ENC_BLOCK * HID1,
        transcendentals=2 * N * 4 * (POS_DIM // 2),
        bytes_accessed=4 * N * 2 * 4 + N * HID1 * 4 + int(w1e_flat.size) * 4)
    return pl.pallas_call(
        _enc_term_kernel,
        out_shape=jax.ShapeDtypeStruct((N, HID1), jnp.float32),
        grid_spec=pltpu.PrefetchScalarGridSpec(
            num_scalar_prefetch=0,
            grid=(N // tn,),
            in_specs=[
                pl.BlockSpec((4, tn, 2), lambda i: (0, i, 0)),
                pl.BlockSpec((4, 2, POS_DIM // 2), lambda i: (0, 0, 0)),
                pl.BlockSpec((ENC_BLOCK, HID1), lambda i: (0, 0)),
                pl.BlockSpec((1, HID1), lambda i: (0, 0)),
            ],
            out_specs=pl.BlockSpec((tn, HID1), lambda i: (i, 0)),
        ),
        compiler_params=pltpu.CompilerParams(
            dimension_semantics=("parallel",), vmem_limit_bytes=vmem_limit),
        cost_estimate=ce,
    )(rc_stack, embT_stack, w1e_flat, b1)


# ---------------------------------------------------------------------------
# Kernel 3 (fused production path): layer-1 feat matmul (K=1024) + layers 2-4.
# bf16 x bf16 -> f32 accumulation; bf16 lane-dense (128-wide) writeback.
# ---------------------------------------------------------------------------
def _fused_mlp_kernel(enc_ref, q_ref, w1f, w2, b2, w3, b3, w4, b4, out_ref):
    # Layer 1: batch-invariant enc term (already includes b1) + one K=1024 matmul.
    h = enc_ref[...] + jnp.dot(q_ref[0], w1f[...], preferred_element_type=jnp.float32)
    h = jnp.maximum(h, 0.0)
    h = jnp.maximum(jnp.dot(h.astype(jnp.bfloat16), w2[...],
                            preferred_element_type=jnp.float32) + b2[...], 0.0)
    h = jnp.maximum(jnp.dot(h.astype(jnp.bfloat16), w3[...],
                            preferred_element_type=jnp.float32) + b3[...], 0.0)
    out_ref[0] = (jnp.dot(h.astype(jnp.bfloat16), w4[...],
                          preferred_element_type=jnp.float32)
                  + b4[...]).astype(out_ref.dtype)       # (tn, 128), cols 3: are zero


def fused_mlp(enc, qcat, params, *, cap, vmem_limit):
    B, N, _ = qcat.shape
    tn = _choose_tile(N, batch=B, cap=cap, mult=16)
    grid = (N // tn, B)                  # i outer: enc tile is re-used across batch
    w1f, w2, b2, w3, b3, w4, b4 = params
    flops = 2 * B * N * (FEAT_CAT * HID1 + HID1 * HID2 + HID2 * HID3 + HID3 * OUT_PAD)
    bytes_acc = (B * N * FEAT_CAT * 2 + N * HID1 * 4 + B * N * OUT_PAD * 2
                 + 2 * int(w1f.size + w2.size + w3.size + w4.size)
                 + 4 * int(b2.size + b3.size + b4.size))
    ce = pl.CostEstimate(flops=flops, transcendentals=0, bytes_accessed=bytes_acc)

    def call(single_buffer):
        def cs(a):
            zeros = (0,) * a.ndim
            if single_buffer:
                return pl.BlockSpec(a.shape, lambda i, b: zeros,
                                    pipeline_mode=pl.Buffered(1))
            return pl.BlockSpec(a.shape, lambda i, b: zeros)
        return pl.pallas_call(
            _fused_mlp_kernel,
            out_shape=jax.ShapeDtypeStruct((B, N, OUT_PAD), jnp.bfloat16),
            grid_spec=pltpu.PrefetchScalarGridSpec(
                num_scalar_prefetch=0,
                grid=grid,
                in_specs=[
                    pl.BlockSpec((tn, HID1), lambda i, b: (i, 0)),         # enc term
                    pl.BlockSpec((1, tn, FEAT_CAT), lambda i, b: (b, i, 0)),
                    cs(w1f), cs(w2), cs(b2), cs(w3), cs(b3), cs(w4), cs(b4),
                ],
                out_specs=pl.BlockSpec((1, tn, OUT_PAD), lambda i, b: (b, i, 0)),
            ),
            compiler_params=pltpu.CompilerParams(
                dimension_semantics=("parallel", "parallel"),
                vmem_limit_bytes=vmem_limit),
            cost_estimate=ce,
        )(enc, qcat, w1f, w2, b2, w3, b3, w4, b4)

    return _call_with_weight_buffering(call)


# ---------------------------------------------------------------------------
# Kernel 4 (module-parity after_cat): consume the NCL (B, 1128, N) tensor directly.
# Channel-major matmuls (W @ x), tn is the lane dim -> output tile already NCL.
# No HBM transpose, no 1128->1152 pad materialization.
# ---------------------------------------------------------------------------
def _inr_mlp_ncl_kernel(x_ref, w1, b1, w2, b2, w3, b3, w4, b4, out_ref):
    x = x_ref[0].astype(jnp.bfloat16)                          # (1128, tn)
    h = jnp.dot(w1[...], x, preferred_element_type=jnp.float32) + b1[...]   # (512, tn)
    h = jnp.maximum(h, 0.0)
    h = jnp.maximum(jnp.dot(w2[...], h.astype(jnp.bfloat16),
                            preferred_element_type=jnp.float32) + b2[...], 0.0)
    h = jnp.maximum(jnp.dot(w3[...], h.astype(jnp.bfloat16),
                            preferred_element_type=jnp.float32) + b3[...], 0.0)
    out_ref[0] = (jnp.dot(w4[...], h.astype(jnp.bfloat16),
                          preferred_element_type=jnp.float32)
                  + b4[...]).astype(out_ref.dtype)             # (128, tn), rows 3: zero


def inr_mlp_ncl(x, params, *, cap, vmem_limit):
    """x: (B, 1128, N) f32 (module NCL layout) -> (B, 128, N) bf16 (rows 3: zero)."""
    B, cin, N = x.shape
    assert cin == IN_DIM
    tn = _choose_tile(N, batch=B, cap=cap, lane_major=True)
    grid = (B, N // tn)
    w1, b1, w2, b2, w3, b3, w4, b4 = params
    flops = 2 * B * N * (IN_DIM * HID1 + HID1 * HID2 + HID2 * HID3 + HID3 * OUT_PAD)
    bytes_acc = (B * N * IN_DIM * 4 + B * N * OUT_PAD * 2
                 + 2 * int(w1.size + w2.size + w3.size + w4.size)
                 + 4 * int(b1.size + b2.size + b3.size + b4.size))
    ce = pl.CostEstimate(flops=flops, transcendentals=0, bytes_accessed=bytes_acc)

    def call(single_buffer):
        def cs(a):
            zeros = (0,) * a.ndim
            if single_buffer:
                return pl.BlockSpec(a.shape, lambda b, i: zeros,
                                    pipeline_mode=pl.Buffered(1))
            return pl.BlockSpec(a.shape, lambda b, i: zeros)
        return pl.pallas_call(
            _inr_mlp_ncl_kernel,
            out_shape=jax.ShapeDtypeStruct((B, OUT_PAD, N), jnp.bfloat16),
            grid_spec=pltpu.PrefetchScalarGridSpec(
                num_scalar_prefetch=0,
                grid=grid,
                in_specs=[
                    pl.BlockSpec((1, IN_DIM, tn), lambda b, i: (b, 0, i)),
                    cs(w1), cs(b1), cs(w2), cs(b2), cs(w3), cs(b3), cs(w4), cs(b4),
                ],
                out_specs=pl.BlockSpec((1, OUT_PAD, tn), lambda b, i: (b, 0, i)),
            ),
            compiler_params=pltpu.CompilerParams(
                dimension_semantics=("parallel", "parallel"),
                vmem_limit_bytes=vmem_limit),
            cost_estimate=ce,
        )(x, w1, b1, w2, b2, w3, b3, w4, b4)

    return _call_with_weight_buffering(call)


# ---------------------------------------------------------------------------
# Module wrapper mirroring INR_align.forward (plus a fused end-to-end path).
# ---------------------------------------------------------------------------
class INRAlignPallas:
    def __init__(self, key, pos_dim=POS_DIM, stride=1):
        self.stride = stride
        self.vmem_limit, self.tile_cap = _hw_config()

        # pos1..pos4 (deterministic SpatialEncoding construction)
        self.embs = [make_spatial_encoding_emb(2, pos_dim) for _ in range(4)]   # (12, 2)
        self.embT_stack = jnp.stack([e.T for e in self.embs], axis=0)           # (4, 2, 12)

        # inr = Conv1d(1128,512,1)+BN+ReLU, Conv1d(512,256,1)+BN+ReLU,
        #       Conv1d(256,256,1)+BN+ReLU, Conv1d(256,3,1)
        dims = [(IN_DIM, HID1), (HID1, HID2), (HID2, HID3), (HID3, 3)]
        keys = jax.random.split(key, 4)
        ws, bs = [], []
        for idx, (k, (ci, co)) in enumerate(zip(keys, dims)):
            w, b = conv1d_params(k, ci, co)               # (co, ci), (co,)
            if idx < 3:
                # TODO(synk): eval-mode BN folded with init running stats (mean=0,
                # var=1, gamma=1, beta=0); fold the real running stats for a ckpt.
                ones = jnp.ones((co,), jnp.float32)
                zeros = jnp.zeros((co,), jnp.float32)
                w, b = fold_bn(w, b, ones, zeros, zeros, ones)
            ws.append(w)
            bs.append(b)
        self.mlp_params_f32 = [(w.T, b.reshape(1, -1)) for w, b in zip(ws, bs)]

        bf = jnp.bfloat16
        w1T = ws[0].T                                     # (1128, 512)

        # ---- fused path (channels-last) weights -------------------------------
        w1e_blocks, w1f_blocks = [], []
        for l in range(4):
            base = l * CAT_DIM
            enc_blk = jnp.pad(w1T[base:base + ENC_DIM],
                              ((0, ENC_PAD - ENC_DIM), (0, 0)))          # (32, 512)
            w1e_blocks.append(enc_blk)
            w1f_blocks.append(w1T[base + ENC_DIM:base + CAT_DIM])        # (256, 512)
        self.w1e_flat = jnp.concatenate(w1e_blocks, axis=0)              # (128, 512) f32
        self.w1f_flat = jnp.concatenate(w1f_blocks, axis=0).astype(bf)   # (1024, 512)
        self.b1_row = bs[0].reshape(1, -1)                               # (1, 512)
        self.w2_cl = ws[1].T.astype(bf)                                  # (512, 256)
        self.b2_row = bs[1].reshape(1, -1)
        self.w3_cl = ws[2].T.astype(bf)                                  # (256, 256)
        self.b3_row = bs[2].reshape(1, -1)
        self.w4_cl = jnp.pad(ws[3].T, ((0, 0), (0, OUT_PAD - 3))).astype(bf)  # (256, 128)
        self.b4_row = jnp.pad(bs[3], (0, OUT_PAD - 3)).reshape(1, -1)          # (1, 128)

        # ---- module-parity after_cat (NCL, channel-major) weights -------------
        self.w1_ncl = ws[0].astype(bf)                                   # (512, 1128)
        self.b1_col = bs[0].reshape(-1, 1)                               # (512, 1)
        self.w2_ncl = ws[1].astype(bf)                                   # (256, 512)
        self.b2_col = bs[1].reshape(-1, 1)
        self.w3_ncl = ws[2].astype(bf)                                   # (256, 256)
        self.b3_col = bs[2].reshape(-1, 1)
        self.w4_ncl = jnp.pad(ws[3], ((0, OUT_PAD - 3), (0, 0))).astype(bf)   # (128, 256)
        self.b4_col = jnp.pad(bs[3], (0, OUT_PAD - 3)).reshape(-1, 1)          # (128, 1)

    def __call__(self, x, size, level=0, after_cat=False):
        h, w = size
        if not after_cat:
            assert 1 <= level <= 4, "level selects self.pos{1..4}"
            rel_coord, q_feat = gen_feat(x, (h, w), stride=self.stride)
            enc = pos_encode(rel_coord, self.embT_stack[level - 1],
                             cap=self.tile_cap, vmem_limit=self.vmem_limit)   # (N, 26)
            B = q_feat.shape[0]
            enc_b = jnp.broadcast_to(enc[None], (B,) + enc.shape)
            return jnp.concatenate([enc_b, q_feat], axis=-1)                  # (B, N, 282)
        else:
            B = x.shape[0]
            out = inr_mlp_ncl(
                x, (self.w1_ncl, self.b1_col, self.w2_ncl, self.b2_col,
                    self.w3_ncl, self.b3_col, self.w4_ncl, self.b4_col),
                cap=self.tile_cap, vmem_limit=self.vmem_limit)   # (B, 128, N) bf16
            out = out[:, :3, :].astype(jnp.float32)              # lane-dense -> 3 rows
            return out.reshape(B, -1, h, w)

    def forward_fused(self, feats, size):
        """End-to-end forward: gather + encode + 4-layer MLP without the 1128-wide
        HBM intermediate and NCL round-trip (same math as the two-branch path)."""
        h, w = size
        B = feats[0].shape[0]
        rcs, qfs = [], []
        for l in range(4):
            rc, qf = gen_feat(feats[l], (h, w), stride=self.stride)
            rcs.append(rc)                                  # (N, 2)
            qfs.append(qf.astype(jnp.bfloat16))             # (B, N, 256) bf16
        rc_stack = jnp.stack(rcs, axis=0)                   # (4, N, 2) f32
        qcat = jnp.concatenate(qfs, axis=-1)                # (B, N, 1024) bf16
        enc = enc_term(rc_stack, self.embT_stack, self.w1e_flat, self.b1_row,
                       cap=self.tile_cap, vmem_limit=self.vmem_limit)   # (N, 512) f32
        out = fused_mlp(enc, qcat,
                        (self.w1f_flat, self.w2_cl, self.b2_row, self.w3_cl,
                         self.b3_row, self.w4_cl, self.b4_row),
                        cap=self.tile_cap, vmem_limit=self.vmem_limit)  # (B,N,128) bf16
        out = out[..., :3].astype(jnp.float32)
        return jnp.transpose(out, (0, 2, 1)).reshape(B, -1, h, w)


# ---------------------------------------------------------------------------
# Pure-JAX f32 reference of the full pipeline (for correctness checks only).
# ---------------------------------------------------------------------------
def forward_reference(model, feats, size):
    h, w = size
    B = feats[0].shape[0]
    cats = []
    for l in range(4):
        rc, qf = gen_feat(feats[l], (h, w))
        y = rc @ model.embs[l].T                                         # (N, 12)
        enc = jnp.concatenate([rc, jnp.sin(y), jnp.cos(y)], axis=-1)     # (N, 26)
        enc = jnp.broadcast_to(enc[None], (B,) + enc.shape)
        cats.append(jnp.concatenate([enc, qf], axis=-1))
    x = jnp.concatenate(cats, axis=-1)                                   # (B, N, 1128)
    for idx, (wT, b) in enumerate(model.mlp_params_f32):
        x = x @ wT + b
        if idx < 3:
            x = jnp.maximum(x, 0.0)
    return jnp.transpose(x, (0, 2, 1)).reshape(B, 3, h, w)


if __name__ == "__main__":
    key = jax.random.PRNGKey(0)
    pkey, k1, k2, k3, k4 = jax.random.split(key, 5)
    model = INRAlignPallas(pkey)

    B, hh, ww = 2, 8, 8
    H, W = 16, 16
    feats = [jax.random.normal(k, (B, FEAT_DIM, hh, ww), jnp.float32)
             for k in (k1, k2, k3, k4)]

    # --- module-parity path (the two branches, as the torch module is called) ---
    outs = [model(feats[l - 1], (H, W), level=l, after_cat=False) for l in (1, 2, 3, 4)]
    for o in outs:
        assert o.shape == (B, H * W, CAT_DIM)
    x_cat = jnp.concatenate(outs, axis=-1)                  # (B, H*W, 1128)
    x_cat = jnp.transpose(x_cat, (0, 2, 1))                 # (B, 1128, H*W)  (NCL)
    out_branch = model(x_cat, (H, W), after_cat=True)       # (B, 3, H, W)

    # --- fused production path (no 1128-wide HBM intermediate, no transposes) ---
    out_fused = model.forward_fused(feats, (H, W))          # (B, 3, H, W)

    ref = forward_reference(model, feats, (H, W))

    out_branch, out_fused, ref = jax.block_until_ready((out_branch, out_fused, ref))
    assert out_branch.shape == (B, 3, H, W) and out_fused.shape == (B, 3, H, W)
    assert bool(jnp.all(jnp.isfinite(out_branch)))
    assert bool(jnp.all(jnp.isfinite(out_fused)))
    # bf16 matmuls (f32 accumulation) + bf16 writeback vs f32 reference: loose tol.
    assert float(jnp.max(jnp.abs(out_branch - ref))) < 5e-2
    assert float(jnp.max(jnp.abs(out_fused - ref))) < 5e-2
    print("KERNEL_OK")
</pallas_src>

<mosaic_0001>
module attributes {stable_mosaic.version = 11 : i64} {
  func.func @_pos_enc_kernel(%arg0: i32, %arg1: memref<128x2xf32, #tpu.memory_space<vmem>>, %arg2: memref<2x12xf32, #tpu.memory_space<vmem>>, %arg3: memref<128x26xf32, #tpu.memory_space<vmem>>) attributes {dimension_semantics = [#tpu.dimension_semantics<parallel>], iteration_bounds = array<i64: 2>, scalar_prefetch = 0 : i64, scratch_operands = 0 : i64, tpu.core_type = #tpu.core_type<tc>, window_params = [{transform_indices = @transform_0, window_bounds = array<i64: 128, 2>}, {pipeline_mode = #tpu.pipeline_mode<synchronous>, transform_indices = @transform_1, window_bounds = array<i64: 2, 12>}, {transform_indices = @transform_2, window_bounds = array<i64: 128, 26>}]} {
    %c0 = arith.constant 0 : index
    %c0_0 = arith.constant 0 : index
    %0 = vector.load %arg1[%c0, %c0_0] : memref<128x2xf32, #tpu.memory_space<vmem>>, vector<128x2xf32>
    %c0_1 = arith.constant 0 : index
    %c0_2 = arith.constant 0 : index
    %1 = vector.load %arg2[%c0_1, %c0_2] : memref<2x12xf32, #tpu.memory_space<vmem>>, vector<2x12xf32>
    %2 = vector.extract_strided_slice %0 {offsets = [0, 0], sizes = [128, 1], strides = [1, 1]} : vector<128x2xf32> to vector<128x1xf32>
    %3 = vector.extract_strided_slice %1 {offsets = [0, 0], sizes = [1, 12], strides = [1, 1]} : vector<2x12xf32> to vector<1x12xf32>
    %4 = vector.broadcast %2 : vector<128x1xf32> to vector<128x12xf32>
    %5 = vector.broadcast %3 : vector<1x12xf32> to vector<128x12xf32>
    %6 = arith.mulf %4, %5 : vector<128x12xf32>
    %7 = vector.extract_strided_slice %0 {offsets = [0, 1], sizes = [128, 1], strides = [1, 1]} : vector<128x2xf32> to vector<128x1xf32>
    %8 = vector.extract_strided_slice %1 {offsets = [1, 0], sizes = [1, 12], strides = [1, 1]} : vector<2x12xf32> to vector<1x12xf32>
    %9 = vector.broadcast %7 : vector<128x1xf32> to vector<128x12xf32>
    %10 = vector.broadcast %8 : vector<1x12xf32> to vector<128x12xf32>
    %11 = arith.mulf %9, %10 : vector<128x12xf32>
    %12 = arith.addf %6, %11 : vector<128x12xf32>
    %13 = math.sin %12 : vector<128x12xf32>
    %14 = math.cos %12 : vector<128x12xf32>
    %15 = tpu.concatenate %0, %13, %14 in 1 : vector<128x2xf32>, vector<128x12xf32>, vector<128x12xf32> -> vector<128x26xf32>
    %c0_3 = arith.constant 0 : index
    %c0_4 = arith.constant 0 : index
    %16 = vector.load %arg3[%c0_3, %c0_4] : memref<128x26xf32, #tpu.memory_space<vmem>>, vector<128x26xf32>
    tpu.vector_store %arg3[%c0_3, %c0_4], %15 {strides = array<i32>} : memref<128x26xf32, #tpu.memory_space<vmem>>, vector<128x26xf32>,
    return
  }
  func.func @transform_0(%arg0: i32) -> (i32, i32) {
    %c0_i32 = arith.constant 0 : i32
    %c0_i32_0 = arith.constant 0 : i32
    return %arg0, %c0_i32 : i32, i32
  }
  func.func @transform_1(%arg0: i32) -> (i32, i32) {
    %c0_i32 = arith.constant 0 : i32
    %c0_i32_0 = arith.constant 0 : i32
    %c0_i32_1 = arith.constant 0 : i32
    return %c0_i32, %c0_i32_0 : i32, i32
  }
  func.func @transform_2(%arg0: i32) -> (i32, i32) {
    %c0_i32 = arith.constant 0 : i32
    %c0_i32_0 = arith.constant 0 : i32
    return %arg0, %c0_i32 : i32, i32
  }
}

</mosaic_0001>

<llo_original>
// kernel: tpu_custom_call.1
$region0: #{tpu_custom_call.1}
  #allocation0 [shape = 'u32[]', space=smem, size = 0x4, offset = 0x4, fixed_abs, tag = 'smem constant byte address 0x4 - core index']
  #allocation1 [shape = 'u32[144,128]{1,0:T(1,128)}', space=vmem, size = 0x12000, scoped, tag = 'internal scratch']
  %s0 = inlined_call_operand.vmem [shape: f32[256,2], index: 0, kind: input, shape index: {}]
  %s1 = inlined_call_operand.vmem [shape: f32[2,12], index: 1, kind: input, shape index: {}]
  %s2 = inlined_call_operand.vmem [shape: f32[256,26], index: 2, kind: output, shape index: {}]
  %s3 = sld [smem:[#allocation0]]
  $region41: #{tpu_custom_call.1} parent=0
    _
  %s5 = ssub.s32 1, %s3
  %s6 = scalar_select 0, %s5, %s3
  loop: start=0, step=1, limit=4
  $region2: #{tpu_custom_call.1} parent=0 // loop_pre_header
    _
  $region3: #{tpu_custom_call.1} parent=0 // loop_header
    %s8 = sphi 0, %s12
    %p9 = scmp.ge.s32.totalorder %s8, 4
    %s18 = sphi 0, %s20
    %s21 = sphi 0, %s18
    %s22 = sphi 0, %s21
    %s38 = sphi 0, %s22
    %s42 = sphi 0, %s42
    %s44 = sphi 0, %s42
    %s45 = sphi 0, %s44
    %s59 = sphi 0, %s45
    %s65 = sphi 0, %s67
    %s68 = sphi 0, %s65
    %s69 = sphi 0, %s68
    %s85 = sphi 0, %s69
  $region4: #{tpu_custom_call.1} parent=0 // loop_header_branch
    %11 = sbr.rel (%p9) target = $region8
  $region5: #{tpu_custom_call.1} parent=0 // loop_body
    %s13 = ssub.s32 %s8, 1
    %s14 = ssub.s32 %s8, 2
    %s15 = sadd.s32 %s8, 1
    %s16 = ssub.s32 %s8, %s15
    %p17 = scmp.eq.s32.totalorder %s16, 0
    %s19 = sadd.s32 %s18, 1
    %s20 = scalar_select %p17, %s18, %s19
    %p23 = pneg %p17
    %p24 = scmp.eq.s32.totalorder %s8, 1
    %p25 = por %p23, %p24
    %p26 = scmp.ne.s32.totalorder %s18, %s21
    %p27 = scmp.eq.s32.totalorder %s8, 0
    %p28 = por %p26, %p27
    %p29 = scmp.ne.s32.totalorder %s18, %s21
    %p30 = scmp.eq.s32.totalorder %s13, 1
    %p31 = por %p29, %p30
    %p32 = scmp.ne.s32.totalorder %s21, %s22
    %p33 = scmp.eq.s32.totalorder %s13, 0
    %p34 = por %p32, %p33
    %p35 = scmp.ne.s32.totalorder %s21, %s22
    %p36 = scmp.eq.s32.totalorder %s14, 1
    %p37 = por %p35, %p36
    %p39 = scmp.ne.s32.totalorder %s22, %s38
    %p40 = scmp.eq.s32.totalorder %s14, 0
    %p41 = por %p39, %p40
    %s43 = sadd.s32 %s42, 1
    %p46 = scmp.eq.s32.totalorder %s8, 1
    %p47 = scmp.ne.s32.totalorder %s42, %s44
    %p48 = scmp.eq.s32.totalorder %s8, 0
    %p49 = por %p47, %p48
    %p50 = scmp.ne.s32.totalorder %s42, %s44
    %p51 = scmp.eq.s32.totalorder %s13, 1
    %p52 = por %p50, %p51
    %p53 = scmp.ne.s32.totalorder %s44, %s45
    %p54 = scmp.eq.s32.totalorder %s13, 0
    %p55 = por %p53, %p54
    %p56 = scmp.ne.s32.totalorder %s44, %s45
    %p57 = scmp.eq.s32.totalorder %s14, 1
    %p58 = por %p56, %p57
    %p60 = scmp.ne.s32.totalorder %s45, %s59
    %p61 = scmp.eq.s32.totalorder %s14, 0
    %p62 = por %p60, %p61
    %s63 = ssub.s32 %s8, %s15
    %p64 = scmp.eq.s32.totalorder %s63, 0
    %s66 = sadd.s32 %s65, 1
    %s67 = scalar_select %p64, %s65, %s66
    %p70 = pneg %p64
    %p71 = scmp.eq.s32.totalorder %s8, 1
    %p72 = por %p70, %p71
    %p73 = scmp.ne.s32.totalorder %s65, %s68
    %p74 = scmp.eq.s32.totalorder %s8, 0
    %p75 = por %p73, %p74
    %p76 = scmp.ne.s32.totalorder %s65, %s68
    %p77 = scmp.eq.s32.totalorder %s13, 1
    %p78 = por %p76, %p77
    %p79 = scmp.ne.s32.totalorder %s68, %s69
    %p80 = scmp.eq.s32.totalorder %s13, 0
    %p81 = por %p79, %p80
    %p82 = scmp.ne.s32.totalorder %s68, %s69
    %p83 = scmp.eq.s32.totalorder %s14, 1
    %p84 = por %p82, %p83
    %p86 = scmp.ne.s32.totalorder %s69, %s85
    %p87 = scmp.eq.s32.totalorder %s14, 0
    %p88 = por %p86, %p87
    %p89 = scmp.le.s32.totalorder 1, %s8
    %p90 = scmp.lt.s32.totalorder %s8, 3
    %p91 = pnand %p89, %p90
    %p92 = pneg %p91
    // Predicated region
    $region9: #{tpu_custom_call.1} parent=5 // pred_check
      _
    $region10: #{tpu_custom_call.1} parent=5 // pred_check_branch
      %94 = sbr.rel (%p91) target = $region12
    $region11: #{tpu_custom_call.1} parent=5 // pred_region
      %s95 = ssub.s32 %s8, 1
      // Predicated region
      $region13: #{tpu_custom_call.1} parent=11 // pred_check
        %p96 = pneg %p55
      $region14: #{tpu_custom_call.1} parent=11 // pred_check_branch
        %98 = sbr.rel (%p96) target = $region16
      $region15: #{tpu_custom_call.1} parent=11 // pred_region
        _
      $region16: #{tpu_custom_call.1} parent=11 // pred_fallthru
        _
    $region12: #{tpu_custom_call.1} parent=5 // pred_fallthru
      _
    %p99 = scmp.lt.s32.totalorder %s8, 2
    // Predicated region
    $region17: #{tpu_custom_call.1} parent=5 // pred_check
      %p100 = pneg %p99
    $region18: #{tpu_custom_call.1} parent=5 // pred_check_branch
      %102 = sbr.rel (%p100) target = $region20
    $region19: #{tpu_custom_call.1} parent=5 // pred_region
      // Predicated region
      $region21: #{tpu_custom_call.1} parent=19 // pred_check
        %p103 = pneg %p28
      $region22: #{tpu_custom_call.1} parent=19 // pred_check_branch
        %105 = sbr.rel (%p103) target = $region24
      $region23: #{tpu_custom_call.1} parent=19 // pred_region
        %s106 = smul.u32 16, %s8
        %p107 = scmp.lt.s32.totalorder %s106, 31
        %s108 = scalar_select %p107, %s106, 31
        %s109 = smul.addr %s108, 8
        %s110 = scalar_lea.vmem %s0, %s109
        %s111 = smul.u32 16, %s8
      $region24: #{tpu_custom_call.1} parent=19 // pred_fallthru
        _
    $region20: #{tpu_custom_call.1} parent=5 // pred_fallthru
      _
    %p112 = scmp.le.s32.totalorder 1, %s8
    %p113 = scmp.lt.s32.totalorder %s8, 3
    %p114 = pnand %p112, %p113
    %p115 = pneg %p114
    // Predicated region
    $region25: #{tpu_custom_call.1} parent=5 // pred_check
      _
    $region26: #{tpu_custom_call.1} parent=5 // pred_check_branch
      %117 = sbr.rel (%p114) target = $region28
    $region27: #{tpu_custom_call.1} parent=5 // pred_region
      %s118 = ssub.s32 %s8, 1
      %s119 = smul.u32 16, %s13
      %p120 = scmp.lt.s32.totalorder %s119, 31
      %s121 = scalar_select %p120, %s119, 31
      %s122 = smul.addr %s121, 8
      %s123 = scalar_lea.vmem %s0, %s122
      %p124 = pneg %p34
      %p125 = pneg %p31
      %p126 = pneg %p55
      %p127 = pneg %p52
      %p128 = pneg %p81
      %p129 = pneg %p78
      %s130 = smul.u32 16, %s13
      %p131 = scmp.lt.s32.totalorder %s130, 31
      %s132 = scalar_select %p131, %s130, 31
      %s133 = smul.addr %s132, 8
      %s134 = scalar_lea.vmem %s2, %s133
      %s135 = smul.u32 16, %s13
      %p136 = scmp.lt.s32.totalorder %s135, 31
      %s137 = scalar_select %p136, %s135, 31
      %s138 = smul.addr %s137, 8
      %s139 = scalar_lea.vmem %s0, %s138
      %s140 = smul.u32 16, %s13
      %s141 = smul.u32 16, %s13
      %p142 = scmp.lt.s32.totalorder %s141, 31
      %s143 = scalar_select %p142, %s141, 31
      %s144 = smul.addr %s143, 8
      %s145 = scalar_lea.vmem %s2, %s144
      %s146 = smul.u32 16, %s13
      %v147 = vld [vmem:[%s139] sm:$0xff]
      %v148 = vld [vmem:[%s139 + $0x8] sm:$0xff]
      %v149 = vld [vmem:[%s139 + $0x10] sm:$0xff]
      %v150 = vld [vmem:[%s139 + $0x18] sm:$0xff]
      %v151 = vld [vmem:[%s139 + $0x20] sm:$0xff]
      %v152 = vld [vmem:[%s139 + $0x28] sm:$0xff]
      %v153 = vld [vmem:[%s139 + $0x30] sm:$0xff]
      %v154 = vld [vmem:[%s139 + $0x38] sm:$0xff]
      %v155 = vld [vmem:[%s139 + $0x40] sm:$0xff]
      %v156 = vld [vmem:[%s139 + $0x48] sm:$0xff]
      %v157 = vld [vmem:[%s139 + $0x50] sm:$0xff]
      %v158 = vld [vmem:[%s139 + $0x58] sm:$0xff]
      %v159 = vld [vmem:[%s139 + $0x60] sm:$0xff]
      %v160 = vld [vmem:[%s139 + $0x68] sm:$0xff]
      %v161 = vld [vmem:[%s139 + $0x70] sm:$0xff]
      %v162 = vld [vmem:[%s139 + $0x78] sm:$0xff]
      %v163 = vld [vmem:[%s1] sm:$0x3]
      %165 = vset.pattern.permute.xlu0 0
      %166 = vperm.xlu0 %165, %v147
      %v167 = vpop.permute.xlu0 %166
      %170 = vset.pattern.permute.xlu0 0
      %171 = vperm.xlu0 %170, %v148
      %v172 = vpop.permute.xlu0 %171
      %175 = vset.pattern.permute.xlu0 0
      %176 = vperm.xlu0 %175, %v149
      %v177 = vpop.permute.xlu0 %176
      %180 = vset.pattern.permute.xlu0 0
      %181 = vperm.xlu0 %180, %v150
      %v182 = vpop.permute.xlu0 %181
      %185 = vset.pattern.permute.xlu0 0
      %186 = vperm.xlu0 %185, %v151
      %v187 = vpop.permute.xlu0 %186
      %190 = vset.pattern.permute.xlu0 0
      %191 = vperm.xlu0 %190, %v152
      %v192 = vpop.permute.xlu0 %191
      %195 = vset.pattern.permute.xlu0 0
      %196 = vperm.xlu0 %195, %v153
      %v197 = vpop.permute.xlu0 %196
      %200 = vset.pattern.permute.xlu0 0
      %201 = vperm.xlu0 %200, %v154
      %v202 = vpop.permute.xlu0 %201
      %205 = vset.pattern.permute.xlu0 0
      %206 = vperm.xlu0 %205, %v155
      %v207 = vpop.permute.xlu0 %206
      %210 = vset.pattern.permute.xlu0 0
      %211 = vperm.xlu0 %210, %v156
      %v212 = vpop.permute.xlu0 %211
      %215 = vset.pattern.permute.xlu0 0
      %216 = vperm.xlu0 %215, %v157
      %v217 = vpop.permute.xlu0 %216
      %220 = vset.pattern.permute.xlu0 0
      %221 = vperm.xlu0 %220, %v158
      %v222 = vpop.permute.xlu0 %221
      %225 = vset.pattern.permute.xlu0 0
      %226 = vperm.xlu0 %225, %v159
      %v227 = vpop.permute.xlu0 %226
      %230 = vset.pattern.permute.xlu0 0
      %231 = vperm.xlu0 %230, %v160
      %v232 = vpop.permute.xlu0 %231
      %235 = vset.pattern.permute.xlu0 0
      %236 = vperm.xlu0 %235, %v161
      %v237 = vpop.permute.xlu0 %236
      %240 = vset.pattern.permute.xlu0 0
      %241 = vperm.xlu0 %240, %v162
      %v242 = vpop.permute.xlu0 %241
      %v244 = vlaneseq
      %v245 = vshrl.u32 %v244, 7
      %v246 = vsub.s32 0, %v245
      %v247 = vrot.slane %v163, %v246
      %v248 = vmul.f32 %v167, %v247
      %v249 = vmul.f32 %v172, %v247
      %v250 = vmul.f32 %v177, %v247
      %v251 = vmul.f32 %v182, %v247
      %v252 = vmul.f32 %v187, %v247
      %v253 = vmul.f32 %v192, %v247
      %v254 = vmul.f32 %v197, %v247
      %v255 = vmul.f32 %v202, %v247
      %v256 = vmul.f32 %v207, %v247
      %v257 = vmul.f32 %v212, %v247
      %v258 = vmul.f32 %v217, %v247
      %v259 = vmul.f32 %v222, %v247
      %v260 = vmul.f32 %v227, %v247
      %v261 = vmul.f32 %v232, %v247
      %v262 = vmul.f32 %v237, %v247
      %v263 = vmul.f32 %v242, %v247
      %264 = vset.pattern.permute.xlu0 1
      %265 = vperm.xlu0 %264, %v147
      %v266 = vpop.permute.xlu0 %265
      %268 = vset.pattern.permute.xlu0 1
      %269 = vperm.xlu0 %268, %v148
      %v270 = vpop.permute.xlu0 %269
      %272 = vset.pattern.permute.xlu0 1
      %273 = vperm.xlu0 %272, %v149
      %v274 = vpop.permute.xlu0 %273
      %276 = vset.pattern.permute.xlu0 1
      %277 = vperm.xlu0 %276, %v150
      %v278 = vpop.permute.xlu0 %277
      %280 = vset.pattern.permute.xlu0 1
      %281 = vperm.xlu0 %280, %v151
      %v282 = vpop.permute.xlu0 %281
      %284 = vset.pattern.permute.xlu0 1
      %285 = vperm.xlu0 %284, %v152
      %v286 = vpop.permute.xlu0 %285
      %288 = vset.pattern.permute.xlu0 1
      %289 = vperm.xlu0 %288, %v153
      %v290 = vpop.permute.xlu0 %289
      %292 = vset.pattern.permute.xlu0 1
      %293 = vperm.xlu0 %292, %v154
      %v294 = vpop.permute.xlu0 %293
      %296 = vset.pattern.permute.xlu0 1
      %297 = vperm.xlu0 %296, %v155
      %v298 = vpop.permute.xlu0 %297
      %300 = vset.pattern.permute.xlu0 1
      %301 = vperm.xlu0 %300, %v156
      %v302 = vpop.permute.xlu0 %301
      %304 = vset.pattern.permute.xlu0 1
      %305 = vperm.xlu0 %304, %v157
      %v306 = vpop.permute.xlu0 %305
      %308 = vset.pattern.permute.xlu0 1
      %309 = vperm.xlu0 %308, %v158
      %v310 = vpop.permute.xlu0 %309
      %312 = vset.pattern.permute.xlu0 1
      %313 = vperm.xlu0 %312, %v159
      %v314 = vpop.permute.xlu0 %313
      %316 = vset.pattern.permute.xlu0 1
      %317 = vperm.xlu0 %316, %v160
      %v318 = vpop.permute.xlu0 %317
      %320 = vset.pattern.permute.xlu0 1
      %321 = vperm.xlu0 %320, %v161
      %v322 = vpop.permute.xlu0 %321
      %324 = vset.pattern.permute.xlu0 1
      %325 = vperm.xlu0 %324, %v162
      %v326 = vpop.permute.xlu0 %325
      %v328 = vlaneseq
      %v329 = vshrl.u32 %v328, 7
      %v330 = vsub.s32 1, %v329
      %v331 = vrot.slane %v163, %v330
      %v332 = vmul.f32 %v266, %v331
      %v333 = vmul.f32 %v270, %v331
      %v334 = vmul.f32 %v274, %v331
      %v335 = vmul.f32 %v278, %v331
      %v336 = vmul.f32 %v282, %v331
      %v337 = vmul.f32 %v286, %v331
      %v338 = vmul.f32 %v290, %v331
      %v339 = vmul.f32 %v294, %v331
      %v340 = vmul.f32 %v298, %v331
      %v341 = vmul.f32 %v302, %v331
      %v342 = vmul.f32 %v306, %v331
      %v343 = vmul.f32 %v310, %v331
      %v344 = vmul.f32 %v314, %v331
      %v345 = vmul.f32 %v318, %v331
      %v346 = vmul.f32 %v322, %v331
      %v347 = vmul.f32 %v326, %v331
      %v348 = vadd.f32 %v248, %v332
      %v349 = vadd.f32 %v249, %v333
      %v350 = vadd.f32 %v250, %v334
      %v351 = vadd.f32 %v251, %v335
      %v352 = vadd.f32 %v252, %v336
      %v353 = vadd.f32 %v253, %v337
      %v354 = vadd.f32 %v254, %v338
      %v355 = vadd.f32 %v255, %v339
      %v356 = vadd.f32 %v256, %v340
      %v357 = vadd.f32 %v257, %v341
      %v358 = vadd.f32 %v258, %v342
      %v359 = vadd.f32 %v259, %v343
      %v360 = vadd.f32 %v260, %v344
      %v361 = vadd.f32 %v261, %v345
      %v362 = vadd.f32 %v262, %v346
      %v363 = vadd.f32 %v263, %v347
      %v364 = vand.u32 2147483647, %v348
      %vm365 = vcmp.le.f32.partialorder %v364, 0.7853982
      %vm366 = vcmp.lt.s32.totalorder %v348, 0
      %v367 = vand.u32 %v348, 2139095040
      %v368 = vshrl.u32 %v367, 23
      %v369 = vsub.s32 %v368, 127
      %v370 = vand.u32 2147483647, %v348
      %v371 = vand.u32 %v370, 8388607
      %v372 = vor.u32 %v371, 8388608
      %v373 = vsub.s32 0, %v372
      %v374 = vadd.s32 %v369, 1
      %vm375 = vcmp.gt.s32.totalorder %v374, 0
      %v376 = vsel %vm375, %v374, 0
      %v377 = vshrl.u32 %v376, 5
      %v378 = vand.u32 %v376, 31
      %v379 = vsub.s32 32, %v378
      %v380 = vshrl.u32 683565275, %v379
      %v381 = vshll.u32 683565275, %v378
      %v382 = vshrl.u32 2475754826, %v379
      %v383 = vor.u32 %v381, %v382
      %v384 = vshll.u32 2475754826, %v378
      %v385 = vshrl.u32 2131351028, %v379
      %v386 = vor.u32 %v384, %v385
      %v387 = vshll.u32 2131351028, %v378
      %v388 = vshrl.u32 2102212464, %v379
      %v389 = vor.u32 %v387, %v388
      %v390 = vshll.u32 2102212464, %v378
      %v391 = vshrl.u32 920167782, %v379
      %v392 = vor.u32 %v390, %v391
      %v393 = vshll.u32 920167782, %v378
      %v394 = vshrl.u32 1326507024, %v379
      %v395 = vor.u32 %v393, %v394
      %vm396 = vcmp.lt.s32.totalorder %v377, 1
      %vm397 = vcmp.lt.s32.totalorder %v377, 2
      %vm398 = vcmp.lt.s32.totalorder %v377, 3
      %vm399 = vcmp.lt.s32.totalorder %v377, 4
      %v400 = vsel %vm396, %v380, %v383
      %v401 = vsel %vm399, %v389, 2102212464
      %v402 = vsel %vm398, %v386, %v401
      %v403 = vsel %vm397, %v400, %v402
      %v404 = vsel %vm396, %v383, %v386
      %v405 = vsel %vm399, %v392, 920167782
      %v406 = vsel %vm398, %v389, %v405
      %v407 = vsel %vm397, %v404, %v406
      %v408 = vsel %vm396, %v386, %v389
      %v409 = vsel %vm399, %v395, 1326507024
      %v410 = vsel %vm398, %v392, %v409
      %v411 = vsel %vm397, %v408, %v410
      %v412 = vshll.u32 %v372, 8
      %v413 = vmul.u32.u64.compose %v412, %v411
      %v414 = vextract.low.u32 %v413
      %v415 = vextract.high.u32 %v413
      %v416 = vmul.u32.u64.compose %v412, %v407
      %v417 = vextract.low.u32 %v416
      %v418 = vextract.high.u32 %v416
      %v419 = vmul.u32 %v412, %v403
      %v420 = vadd.s32 %v415, %v417
      %vm421 = vc.u32 %v415, %v417
      %v422 = vadd.s32 %v418, 1
      %v423 = vsel %vm421, %v422, %v418
      %v424 = vadd.s32 %v419, %v423
      %v425 = vadd.s32 %v424, 536870912
      %v426 = vshrl.u32 %v425, 30
      %v427 = vshll.u32 %v426, 30
      %v428 = vsub.s32 %v424, %v427
      %vm429 = vcmp.lt.s32.totalorder %v428, 0
      %v430 = vsub.s32 0, %v428
      %v431 = vsel %vm429, %v430, %v428
      %v432 = vclz %v431
      %v433 = vsub.s32 %v432, 2
      %vm434 = vcmp.gt.s32.totalorder 0, %v433
      %v435 = vsel %vm434, 0, %v433
      %v436 = vsub.s32 32, %v435
      %v437 = vshll.u32 %v428, %v435
      %v438 = vshrl.u32 %v420, %v436
      %v439 = vor.u32 %v437, %v438
      %v440 = vsub.s32 4294967266, %v435
      %v441 = vadd.s32 %v440, 127
      %v442 = vshll.u32 %v441, 23
      %v443 = vor.u32 4788187, %v442
      %v444 = vand.u32 2147483647, %v443
      %v446 = vcvt.s32.f32 %v439
      %v447 = vmul.f32 %v446, %v444
      %v448 = vxor.u32 %v447, 2147483648
      %v449 = vsel %vm366, %v448, %v447
      %v450 = vsub.s32 4, %v426
      %v451 = vsel %vm366, %v450, %v426
      %v452 = vsel %vm365, %v348, %v449
      %v453 = vsel %vm365, 0, %v451
      %v454 = vcosq.f32.pop %v452
      %v455 = vsinq.f32.pop %v452
      %vm456 = vweird.f32 %v348
      %v457 = vadd.s32 %v453, 3
      %v458 = vand.u32 %v457, 3
      %vm459 = vcmp.lt.s32.totalorder %v458, 2
      %vm460 = vcmp.eq.s32.totalorder %v458, 0
      %v461 = vxor.u32 %v455, 2147483648
      %v462 = vsel %vm460, %v454, %v461
      %vm463 = vcmp.eq.s32.totalorder %v458, 2
      %v464 = vxor.u32 %v454, 2147483648
      %v465 = vsel %vm463, %v464, %v455
      %v466 = vsel %vm459, %v462, %v465
      %v467 = vsel %vm456, nan, %v466
      %v468 = vand.u32 2147483647, %v349
      %vm469 = vcmp.le.f32.partialorder %v468, 0.7853982
      %vm470 = vcmp.lt.s32.totalorder %v349, 0
      %v471 = vand.u32 %v349, 2139095040
      %v472 = vshrl.u32 %v471, 23
      %v473 = vsub.s32 %v472, 127
      %v474 = vand.u32 2147483647, %v349
      %v475 = vand.u32 %v474, 8388607
      %v476 = vor.u32 %v475, 8388608
      %v477 = vsub.s32 0, %v476
      %v478 = vadd.s32 %v473, 1
      %vm479 = vcmp.gt.s32.totalorder %v478, 0
      %v480 = vsel %vm479, %v478, 0
      %v481 = vshrl.u32 %v480, 5
      %v482 = vand.u32 %v480, 31
      %v483 = vsub.s32 32, %v482
      %v484 = vshrl.u32 683565275, %v483
      %v485 = vshll.u32 683565275, %v482
      %v486 = vshrl.u32 2475754826, %v483
      %v487 = vor.u32 %v485, %v486
      %v488 = vshll.u32 2475754826, %v482
      %v489 = vshrl.u32 2131351028, %v483
      %v490 = vor.u32 %v488, %v489
      %v491 = vshll.u32 2131351028, %v482
      %v492 = vshrl.u32 2102212464, %v483
      %v493 = vor.u32 %v491, %v492
      %v494 = vshll.u32 2102212464, %v482
      %v495 = vshrl.u32 920167782, %v483
      %v496 = vor.u32 %v494, %v495
      %v497 = vshll.u32 920167782, %v482
      %v498 = vshrl.u32 1326507024, %v483
      %v499 = vor.u32 %v497, %v498
      %vm500 = vcmp.lt.s32.totalorder %v481, 1
      %vm501 = vcmp.lt.s32.totalorder %v481, 2
      %vm502 = vcmp.lt.s32.totalorder %v481, 3
      %vm503 = vcmp.lt.s32.totalorder %v481, 4
      %v504 = vsel %vm500, %v484, %v487
      %v505 = vsel %vm503, %v493, 2102212464
      %v506 = vsel %vm502, %v490, %v505
      %v507 = vsel %vm501, %v504, %v506
      %v508 = vsel %vm500, %v487, %v490
      %v509 = vsel %vm503, %v496, 920167782
      %v510 = vsel %vm502, %v493, %v509
      %v511 = vsel %vm501, %v508, %v510
      %v512 = vsel %vm500, %v490, %v493
      %v513 = vsel %vm503, %v499, 1326507024
      %v514 = vsel %vm502, %v496, %v513
      %v515 = vsel %vm501, %v512, %v514
      %v516 = vshll.u32 %v476, 8
      %v517 = vmul.u32.u64.compose %v516, %v515
      %v518 = vextract.low.u32 %v517
      %v519 = vextract.high.u32 %v517
      %v520 = vmul.u32.u64.compose %v516, %v511
      %v521 = vextract.low.u32 %v520
      %v522 = vextract.high.u32 %v520
      %v523 = vmul.u32 %v516, %v507
      %v524 = vadd.s32 %v519, %v521
      %vm525 = vc.u32 %v519, %v521
      %v526 = vadd.s32 %v522, 1
      %v527 = vsel %vm525, %v526, %v522
      %v528 = vadd.s32 %v523, %v527
      %v529 = vadd.s32 %v528, 536870912
      %v530 = vshrl.u32 %v529, 30
      %v531 = vshll.u32 %v530, 30
      %v532 = vsub.s32 %v528, %v531
      %vm533 = vcmp.lt.s32.totalorder %v532, 0
      %v534 = vsub.s32 0, %v532
      %v535 = vsel %vm533, %v534, %v532
      %v536 = vclz %v535
      %v537 = vsub.s32 %v536, 2
      %vm538 = vcmp.gt.s32.totalorder 0, %v537
      %v539 = vsel %vm538, 0, %v537
      %v540 = vsub.s32 32, %v539
      %v541 = vshll.u32 %v532, %v539
      %v542 = vshrl.u32 %v524, %v540
      %v543 = vor.u32 %v541, %v542
      %v544 = vsub.s32 4294967266, %v539
      %v545 = vadd.s32 %v544, 127
      %v546 = vshll.u32 %v545, 23
      %v547 = vor.u32 4788187, %v546
      %v548 = vand.u32 2147483647, %v547
      %v550 = vcvt.s32.f32 %v543
      %v551 = vmul.f32 %v550, %v548
      %v552 = vxor.u32 %v551, 2147483648
      %v553 = vsel %vm470, %v552, %v551
      %v554 = vsub.s32 4, %v530
      %v555 = vsel %vm470, %v554, %v530
      %v556 = vsel %vm469, %v349, %v553
      %v557 = vsel %vm469, 0, %v555
      %v558 = vcosq.f32.pop %v556
      %v559 = vsinq.f32.pop %v556
      %vm560 = vweird.f32 %v349
      %v561 = vadd.s32 %v557, 3
      %v562 = vand.u32 %v561, 3
      %vm563 = vcmp.lt.s32.totalorder %v562, 2
      %vm564 = vcmp.eq.s32.totalorder %v562, 0
      %v565 = vxor.u32 %v559, 2147483648
      %v566 = vsel %vm564, %v558, %v565
      %vm567 = vcmp.eq.s32.totalorder %v562, 2
      %v568 = vxor.u32 %v558, 2147483648
      %v569 = vsel %vm567, %v568, %v559
      %v570 = vsel %vm563, %v566, %v569
      %v571 = vsel %vm560, nan, %v570
      %v572 = vand.u32 2147483647, %v350
      %vm573 = vcmp.le.f32.partialorder %v572, 0.7853982
      %vm574 = vcmp.lt.s32.totalorder %v350, 0
      %v575 = vand.u32 %v350, 2139095040
      %v576 = vshrl.u32 %v575, 23
      %v577 = vsub.s32 %v576, 127
      %v578 = vand.u32 2147483647, %v350
      %v579 = vand.u32 %v578, 8388607
      %v580 = vor.u32 %v579, 8388608
      %v581 = vsub.s32 0, %v580
      %v582 = vadd.s32 %v577, 1
      %vm583 = vcmp.gt.s32.totalorder %v582, 0
      %v584 = vsel %vm583, %v582, 0
      %v585 = vshrl.u32 %v584, 5
      %v586 = vand.u32 %v584, 31
      %v587 = vsub.s32 32, %v586
      %v588 = vshrl.u32 683565275, %v587
      %v589 = vshll.u32 683565275, %v586
      %v590 = vshrl.u32 2475754826, %v587
      %v591 = vor.u32 %v589, %v590
      %v592 = vshll.u32 2475754826, %v586
      %v593 = vshrl.u32 2131351028, %v587
      %v594 = vor.u32 %v592, %v593
      %v595 = vshll.u32 2131351028, %v586
      %v596 = vshrl.u32 2102212464, %v587
      %v597 = vor.u32 %v595, %v596
      %v598 = vshll.u32 2102212464, %v586
      %v599 = vshrl.u32 920167782, %v587
      %v600 = vor.u32 %v598, %v599
      %v601 = vshll.u32 920167782, %v586
      %v602 = vshrl.u32 1326507024, %v587
      %v603 = vor.u32 %v601, %v602
      %vm604 = vcmp.lt.s32.totalorder %v585, 1
      %vm605 = vcmp.lt.s32.totalorder %v585, 2
      %vm606 = vcmp.lt.s32.totalorder %v585, 3
      %vm607 = vcmp.lt.s32.totalorder %v585, 4
      %v608 = vsel %vm604, %v588, %v591
      %v609 = vsel %vm607, %v597, 2102212464
      %v610 = vsel %vm606, %v594, %v609
      %v611 = vsel %vm605, %v608, %v610
      %v612 = vsel %vm604, %v591, %v594
      %v613 = vsel %vm607, %v600, 920167782
      %v614 = vsel %vm606, %v597, %v613
      %v615 = vsel %vm605, %v612, %v614
      %v616 = vsel %vm604, %v594, %v597
      %v617 = vsel %vm607, %v603, 1326507024
      %v618 = vsel %vm606, %v600, %v617
      %v619 = vsel %vm605, %v616, %v618
      %v620 = vshll.u32 %v580, 8
      %v621 = vmul.u32.u64.compose %v620, %v619
      %v622 = vextract.low.u32 %v621
      %v623 = vextract.high.u32 %v621
      %v624 = vmul.u32.u64.compose %v620, %v615
      %v625 = vextract.low.u32 %v624
      %v626 = vextract.high.u32 %v624
      %v627 = vmul.u32 %v620, %v611
      %v628 = vadd.s32 %v623, %v625
      %vm629 = vc.u32 %v623, %v625
      %v630 = vadd.s32 %v626, 1
      %v631 = vsel %vm629, %v630, %v626
      %v632 = vadd.s32 %v627, %v631
      %v633 = vadd.s32 %v632, 536870912
      %v634 = vshrl.u32 %v633, 30
      %v635 = vshll.u32 %v634, 30
      %v636 = vsub.s32 %v632, %v635
      %vm637 = vcmp.lt.s32.totalorder %v636, 0
      %v638 = vsub.s32 0, %v636
      %v639 = vsel %vm637, %v638, %v636
      %v640 = vclz %v639
      %v641 = vsub.s32 %v640, 2
      %vm642 = vcmp.gt.s32.totalorder 0, %v641
      %v643 = vsel %vm642, 0, %v641
      %v644 = vsub.s32 32, %v643
      %v645 = vshll.u32 %v636, %v643
      %v646 = vshrl.u32 %v628, %v644
      %v647 = vor.u32 %v645, %v646
      %v648 = vsub.s32 4294967266, %v643
      %v649 = vadd.s32 %v648, 127
      %v650 = vshll.u32 %v649, 23
      %v651 = vor.u32 4788187, %v650
      %v652 = vand.u32 2147483647, %v651
      %v654 = vcvt.s32.f32 %v647
      %v655 = vmul.f32 %v654, %v652
      %v656 = vxor.u32 %v655, 2147483648
      %v657 = vsel %vm574, %v656, %v655
      %v658 = vsub.s32 4, %v634
      %v659 = vsel %vm574, %v658, %v634
      %v660 = vsel %vm573, %v350, %v657
      %v661 = vsel %vm573, 0, %v659
      %v662 = vcosq.f32.pop %v660
      %v663 = vsinq.f32.pop %v660
      %vm664 = vweird.f32 %v350
      %v665 = vadd.s32 %v661, 3
      %v666 = vand.u32 %v665, 3
      %vm667 = vcmp.lt.s32.totalorder %v666, 2
      %vm668 = vcmp.eq.s32.totalorder %v666, 0
      %v669 = vxor.u32 %v663, 2147483648
      %v670 = vsel %vm668, %v662, %v669
      %vm671 = vcmp.eq.s32.totalorder %v666, 2
      %v672 = vxor.u32 %v662, 2147483648
      %v673 = vsel %vm671, %v672, %v663
      %v674 = vsel %vm667, %v670, %v673
      %v675 = vsel %vm664, nan, %v674
      %v676 = vand.u32 2147483647, %v351
      %vm677 = vcmp.le.f32.partialorder %v676, 0.7853982
      %vm678 = vcmp.lt.s32.totalorder %v351, 0
      %v679 = vand.u32 %v351, 2139095040
      %v680 = vshrl.u32 %v679, 23
      %v681 = vsub.s32 %v680, 127
      %v682 = vand.u32 2147483647, %v351
      %v683 = vand.u32 %v682, 8388607
      %v684 = vor.u32 %v683, 8388608
      %v685 = vsub.s32 0, %v684
      %v686 = vadd.s32 %v681, 1
      %vm687 = vcmp.gt.s32.totalorder %v686, 0
      %v688 = vsel %vm687, %v686, 0
      %v689 = vshrl.u32 %v688, 5
      %v690 = vand.u32 %v688, 31
      %v691 = vsub.s32 32, %v690
      %v692 = vshrl.u32 683565275, %v691
      %v693 = vshll.u32 683565275, %v690
      %v694 = vshrl.u32 2475754826, %v691
      %v695 = vor.u32 %v693, %v694
      %v696 = vshll.u32 2475754826, %v690
      %v697 = vshrl.u32 2131351028, %v691
      %v698 = vor.u32 %v696, %v697
      %v699 = vshll.u32 2131351028, %v690
      %v700 = vshrl.u32 2102212464, %v691
      %v701 = vor.u32 %v699, %v700
      %v702 = vshll.u32 2102212464, %v690
      %v703 = vshrl.u32 920167782, %v691
      %v704 = vor.u32 %v702, %v703
      %v705 = vshll.u32 920167782, %v690
      %v706 = vshrl.u32 1326507024, %v691
      %v707 = vor.u32 %v705, %v706
      %vm708 = vcmp.lt.s32.totalorder %v689, 1
      %vm709 = vcmp.lt.s32.totalorder %v689, 2
      %vm710 = vcmp.lt.s32.totalorder %v689, 3
      %vm711 = vcmp.lt.s32.totalorder %v689, 4
      %v712 = vsel %vm708, %v692, %v695
      %v713 = vsel %vm711, %v701, 2102212464
      %v714 = vsel %vm710, %v698, %v713
      %v715 = vsel %vm709, %v712, %v714
      %v716 = vsel %vm708, %v695, %v698
      %v717 = vsel %vm711, %v704, 920167782
      %v718 = vsel %vm710, %v701, %v717
      %v719 = vsel %vm709, %v716, %v718
      %v720 = vsel %vm708, %v698, %v701
      %v721 = vsel %vm711, %v707, 1326507024
      %v722 = vsel %vm710, %v704, %v721
      %v723 = vsel %vm709, %v720, %v722
      %v724 = vshll.u32 %v684, 8
      %v725 = vmul.u32.u64.compose %v724, %v723
      %v726 = vextract.low.u32 %v725
      %v727 = vextract.high.u32 %v725
      %v728 = vmul.u32.u64.compose %v724, %v719
      %v729 = vextract.low.u32 %v728
      %v730 = vextract.high.u32 %v728
      %v731 = vmul.u32 %v724, %v715
      %v732 = vadd.s32 %v727, %v729
      %vm733 = vc.u32 %v727, %v729
      %v734 = vadd.s32 %v730, 1
      %v735 = vsel %vm733, %v734, %v730
      %v736 = vadd.s32 %v731, %v735
      %v737 = vadd.s32 %v736, 536870912
      %v738 = vshrl.u32 %v737, 30
      %v739 = vshll.u32 %v738, 30
      %v740 = vsub.s32 %v736, %v739
      %vm741 = vcmp.lt.s32.totalorder %v740, 0
      %v742 = vsub.s32 0, %v740
      %v743 = vsel %vm741, %v742, %v740
      %v744 = vclz %v743
      %v745 = vsub.s32 %v744, 2
      %vm746 = vcmp.gt.s32.totalorder 0, %v745
      %v747 = vsel %vm746, 0, %v745
      %v748 = vsub.s32 32, %v747
      %v749 = vshll.u32 %v740, %v747
      %v750 = vshrl.u32 %v732, %v748
      %v751 = vor.u32 %v749, %v750
      %v752 = vsub.s32 4294967266, %v747
      %v753 = vadd.s32 %v752, 127
      %v754 = vshll.u32 %v753, 23
      %v755 = vor.u32 4788187, %v754
      %v756 = vand.u32 2147483647, %v755
      %v758 = vcvt.s32.f32 %v751
      %v759 = vmul.f32 %v758, %v756
      %v760 = vxor.u32 %v759, 2147483648
      %v761 = vsel %vm678, %v760, %v759
      %v762 = vsub.s32 4, %v738
      %v763 = vsel %vm678, %v762, %v738
      %v764 = vsel %vm677, %v351, %v761
      %v765 = vsel %vm677, 0, %v763
      %v766 = vcosq.f32.pop %v764
      %v767 = vsinq.f32.pop %v764
      %vm768 = vweird.f32 %v351
      %v769 = vadd.s32 %v765, 3
      %v770 = vand.u32 %v769, 3
      %vm771 = vcmp.lt.s32.totalorder %v770, 2
      %vm772 = vcmp.eq.s32.totalorder %v770, 0
      %v773 = vxor.u32 %v767, 2147483648
      %v774 = vsel %vm772, %v766, %v773
      %vm775 = vcmp.eq.s32.totalorder %v770, 2
      %v776 = vxor.u32 %v766, 2147483648
      %v777 = vsel %vm775, %v776, %v767
      %v778 = vsel %vm771, %v774, %v777
      %v779 = vsel %vm768, nan, %v778
      %v780 = vand.u32 2147483647, %v352
      %vm781 = vcmp.le.f32.partialorder %v780, 0.7853982
      %vm782 = vcmp.lt.s32.totalorder %v352, 0
      %v783 = vand.u32 %v352, 2139095040
      %v784 = vshrl.u32 %v783, 23
      %v785 = vsub.s32 %v784, 127
      %v786 = vand.u32 2147483647, %v352
      %v787 = vand.u32 %v786, 8388607
      %v788 = vor.u32 %v787, 8388608
      %v789 = vsub.s32 0, %v788
      %v790 = vadd.s32 %v785, 1
      %vm791 = vcmp.gt.s32.totalorder %v790, 0
      %v792 = vsel %vm791, %v790, 0
      %v793 = vshrl.u32 %v792, 5
      %v794 = vand.u32 %v792, 31
      %v795 = vsub.s32 32, %v794
      %v796 = vshrl.u32 683565275, %v795
      %v797 = vshll.u32 683565275, %v794
      %v798 = vshrl.u32 2475754826, %v795
      %v799 = vor.u32 %v797, %v798
      %v800 = vshll.u32 2475754826, %v794
      %v801 = vshrl.u32 2131351028, %v795
      %v802 = vor.u32 %v800, %v801
      %v803 = vshll.u32 2131351028, %v794
      %v804 = vshrl.u32 2102212464, %v795
      %v805 = vor.u32 %v803, %v804
      %v806 = vshll.u32 2102212464, %v794
      %v807 = vshrl.u32 920167782, %v795
      %v808 = vor.u32 %v806, %v807
      %v809 = vshll.u32 920167782, %v794
      %v810 = vshrl.u32 1326507024, %v795
      %v811 = vor.u32 %v809, %v810
      %vm812 = vcmp.lt.s32.totalorder %v793, 1
      %vm813 = vcmp.lt.s32.totalorder %v793, 2
      %vm814 = vcmp.lt.s32.totalorder %v793, 3
      %vm815 = vcmp.lt.s32.totalorder %v793, 4
      %v816 = vsel %vm812, %v796, %v799
      %v817 = vsel %vm815, %v805, 2102212464
      %v818 = vsel %vm814, %v802, %v817
      %v819 = vsel %vm813, %v816, %v818
      %v820 = vsel %vm812, %v799, %v802
      %v821 = vsel %vm815, %v808, 920167782
      %v822 = vsel %vm814, %v805, %v821
      %v823 = vsel %vm813, %v820, %v822
      %v824 = vsel %vm812, %v802, %v805
      %v825 = vsel %vm815, %v811, 1326507024
      %v826 = vsel %vm814, %v808, %v825
      %v827 = vsel %vm813, %v824, %v826
      %v828 = vshll.u32 %v788, 8
      %v829 = vmul.u32.u64.compose %v828, %v827
      %v830 = vextract.low.u32 %v829
      %v831 = vextract.high.u32 %v829
      %v832 = vmul.u32.u64.compose %v828, %v823
      %v833 = vextract.low.u32 %v832
      %v834 = vextract.high.u32 %v832
      %v835 = vmul.u32 %v828, %v819
      %v836 = vadd.s32 %v831, %v833
      %vm837 = vc.u32 %v831, %v833
      %v838 = vadd.s32 %v834, 1
      %v839 = vsel %vm837, %v838, %v834
      %v840 = vadd.s32 %v835, %v839
      %v841 = vadd.s32 %v840, 536870912
      %v842 = vshrl.u32 %v841, 30
      %v843 = vshll.u32 %v842, 30
      %v844 = vsub.s32 %v840, %v843
      %vm845 = vcmp.lt.s32.totalorder %v844, 0
      %v846 = vsub.s32 0, %v844
      %v847 = vsel %vm845, %v846, %v844
      %v848 = vclz %v847
      %v849 = vsub.s32 %v848, 2
      %vm850 = vcmp.gt.s32.totalorder 0, %v849
      %v851 = vsel %vm850, 0, %v849
      %v852 = vsub.s32 32, %v851
      %v853 = vshll.u32 %v844, %v851
      %v854 = vshrl.u32 %v836, %v852
      %v855 = vor.u32 %v853, %v854
      %v856 = vsub.s32 4294967266, %v851
      %v857 = vadd.s32 %v856, 127
      %v858 = vshll.u32 %v857, 23
      %v859 = vor.u32 4788187, %v858
      %v860 = vand.u32 2147483647, %v859
      %v862 = vcvt.s32.f32 %v855
      %v863 = vmul.f32 %v862, %v860
      %v864 = vxor.u32 %v863, 2147483648
      %v865 = vsel %vm782, %v864, %v863
      %v866 = vsub.s32 4, %v842
      %v867 = vsel %vm782, %v866, %v842
      %v868 = vsel %vm781, %v352, %v865
      %v869 = vsel %vm781, 0, %v867
      %v870 = vcosq.f32.pop %v868
      %v871 = vsinq.f32.pop %v868
      %vm872 = vweird.f32 %v352
      %v873 = vadd.s32 %v869, 3
      %v874 = vand.u32 %v873, 3
      %vm875 = vcmp.lt.s32.totalorder %v874, 2
      %vm876 = vcmp.eq.s32.totalorder %v874, 0
      %v877 = vxor.u32 %v871, 2147483648
      %v878 = vsel %vm876, %v870, %v877
      %vm879 = vcmp.eq.s32.totalorder %v874, 2
      %v880 = vxor.u32 %v870, 2147483648
      %v881 = vsel %vm879, %v880, %v871
      %v882 = vsel %vm875, %v878, %v881
      %v883 = vsel %vm872, nan, %v882
      %v884 = vand.u32 2147483647, %v353
      %vm885 = vcmp.le.f32.partialorder %v884, 0.7853982
      %vm886 = vcmp.lt.s32.totalorder %v353, 0
      %v887 = vand.u32 %v353, 2139095040
      %v888 = vshrl.u32 %v887, 23
      %v889 = vsub.s32 %v888, 127
      %v890 = vand.u32 2147483647, %v353
      %v891 = vand.u32 %v890, 8388607
      %v892 = vor.u32 %v891, 8388608
      %v893 = vsub.s32 0, %v892
      %v894 = vadd.s32 %v889, 1
      %vm895 = vcmp.gt.s32.totalorder %v894, 0
      %v896 = vsel %vm895, %v894, 0
      %v897 = vshrl.u32 %v896, 5
      %v898 = vand.u32 %v896, 31
      %v899 = vsub.s32 32, %v898
      %v900 = vshrl.u32 683565275, %v899
      %v901 = vshll.u32 683565275, %v898
      %v902 = vshrl.u32 2475754826, %v899
      %v903 = vor.u32 %v901, %v902
      %v904 = vshll.u32 2475754826, %v898
      %v905 = vshrl.u32 2131351028, %v899
      %v906 = vor.u32 %v904, %v905
      %v907 = vshll.u32 2131351028, %v898
      %v908 = vshrl.u32 2102212464, %v899
      %v909 = vor.u32 %v907, %v908
      %v910 = vshll.u32 2102212464, %v898
      %v911 = vshrl.u32 920167782, %v899
      %v912 = vor.u32 %v910, %v911
      %v913 = vshll.u32 920167782, %v898
      %v914 = vshrl.u32 1326507024, %v899
      %v915 = vor.u32 %v913, %v914
      %vm916 = vcmp.lt.s32.totalorder %v897, 1
      %vm917 = vcmp.lt.s32.totalorder %v897, 2
      %vm918 = vcmp.lt.s32.totalorder %v897, 3
      %vm919 = vcmp.lt.s32.totalorder %v897, 4
      %v920 = vsel %vm916, %v900, %v903
      %v921 = vsel %vm919, %v909, 2102212464
      %v922 = vsel %vm918, %v906, %v921
      %v923 = vsel %vm917, %v920, %v922
      %v924 = vsel %vm916, %v903, %v906
      %v925 = vsel %vm919, %v912, 920167782
      %v926 = vsel %vm918, %v909, %v925
      %v927 = vsel %vm917, %v924, %v926
      %v928 = vsel %vm916, %v906, %v909
      %v929 = vsel %vm919, %v915, 1326507024
      %v930 = vsel %vm918, %v912, %v929
      %v931 = vsel %vm917, %v928, %v930
      %v932 = vshll.u32 %v892, 8
      %v933 = vmul.u32.u64.compose %v932, %v931
      %v934 = vextract.low.u32 %v933
      %v935 = vextract.high.u32 %v933
      %v936 = vmul.u32.u64.compose %v932, %v927
      %v937 = vextract.low.u32 %v936
      %v938 = vextract.high.u32 %v936
      %v939 = vmul.u32 %v932, %v923
      %v940 = vadd.s32 %v935, %v937
      %vm941 = vc.u32 %v935, %v937
      %v942 = vadd.s32 %v938, 1
      %v943 = vsel %vm941, %v942, %v938
      %v944 = vadd.s32 %v939, %v943
      %v945 = vadd.s32 %v944, 536870912
      %v946 = vshrl.u32 %v945, 30
      %v947 = vshll.u32 %v946, 30
      %v948 = vsub.s32 %v944, %v947
      %vm949 = vcmp.lt.s32.totalorder %v948, 0
      %v950 = vsub.s32 0, %v948
      %v951 = vsel %vm949, %v950, %v948
      %v952 = vclz %v951
      %v953 = vsub.s32 %v952, 2
      %vm954 = vcmp.gt.s32.totalorder 0, %v953
      %v955 = vsel %vm954, 0, %v953
      %v956 = vsub.s32 32, %v955
      %v957 = vshll.u32 %v948, %v955
      %v958 = vshrl.u32 %v940, %v956
      %v959 = vor.u32 %v957, %v958
      %v960 = vsub.s32 4294967266, %v955
      %v961 = vadd.s32 %v960, 127
      %v962 = vshll.u32 %v961, 23
      %v963 = vor.u32 4788187, %v962
      %v964 = vand.u32 2147483647, %v963
      %v966 = vcvt.s32.f32 %v959
      %v967 = vmul.f32 %v966, %v964
      %v968 = vxor.u32 %v967, 2147483648
      %v969 = vsel %vm886, %v968, %v967
      %v970 = vsub.s32 4, %v946
      %v971 = vsel %vm886, %v970, %v946
      %v972 = vsel %vm885, %v353, %v969
      %v973 = vsel %vm885, 0, %v971
      %v974 = vcosq.f32.pop %v972
      %v975 = vsinq.f32.pop %v972
      %vm976 = vweird.f32 %v353
      %v977 = vadd.s32 %v973, 3
      %v978 = vand.u32 %v977, 3
      %vm979 = vcmp.lt.s32.totalorder %v978, 2
      %vm980 = vcmp.eq.s32.totalorder %v978, 0
      %v981 = vxor.u32 %v975, 2147483648
      %v982 = vsel %vm980, %v974, %v981
      %vm983 = vcmp.eq.s32.totalorder %v978, 2
      %v984 = vxor.u32 %v974, 2147483648
      %v985 = vsel %vm983, %v984, %v975
      %v986 = vsel %vm979, %v982, %v985
      %v987 = vsel %vm976, nan, %v986
      %v988 = vand.u32 2147483647, %v354
      %vm989 = vcmp.le.f32.partialorder %v988, 0.7853982
      %vm990 = vcmp.lt.s32.totalorder %v354, 0
      %v991 = vand.u32 %v354, 2139095040
      %v992 = vshrl.u32 %v991, 23
      %v993 = vsub.s32 %v992, 127
      %v994 = vand.u32 2147483647, %v354
      %v995 = vand.u32 %v994, 8388607
      %v996 = vor.u32 %v995, 8388608
      %v997 = vsub.s32 0, %v996
      %v998 = vadd.s32 %v993, 1
      %vm999 = vcmp.gt.s32.totalorder %v998, 0
      %v1000 = vsel %vm999, %v998, 0
      %v1001 = vshrl.u32 %v1000, 5
      %v1002 = vand.u32 %v1000, 31
      %v1003 = vsub.s32 32, %v1002
      %v1004 = vshrl.u32 683565275, %v1003
      %v1005 = vshll.u32 683565275, %v1002
      %v1006 = vshrl.u32 2475754826, %v1003
      %v1007 = vor.u32 %v1005, %v1006
      %v1008 = vshll.u32 2475754826, %v1002
      %v1009 = vshrl.u32 2131351028, %v1003
      %v1010 = vor.u32 %v1008, %v1009
      %v1011 = vshll.u32 2131351028, %v1002
      %v1012 = vshrl.u32 2102212464, %v1003
      %v1013 = vor.u32 %v1011, %v1012
      %v1014 = vshll.u32 2102212464, %v1002
      %v1015 = vshrl.u32 920167782, %v1003
      %v1016 = vor.u32 %v1014, %v1015
      %v1017 = vshll.u32 920167782, %v1002
      %v1018 = vshrl.u32 1326507024, %v1003
      %v1019 = vor.u32 %v1017, %v1018
      %vm1020 = vcmp.lt.s32.totalorder %v1001, 1
      %vm1021 = vcmp.lt.s32.totalorder %v1001, 2
      %vm1022 = vcmp.lt.s32.totalorder %v1001, 3
      %vm1023 = vcmp.lt.s32.totalorder %v1001, 4
      %v1024 = vsel %vm1020, %v1004, %v1007
      %v1025 = vsel %vm1023, %v1013, 2102212464
      %v1026 = vsel %vm1022, %v1010, %v1025
      %v1027 = vsel %vm1021, %v1024, %v1026
      %v1028 = vsel %vm1020, %v1007, %v1010
      %v1029 = vsel %vm1023, %v1016, 920167782
      %v1030 = vsel %vm1022, %v1013, %v1029
      %v1031 = vsel %vm1021, %v1028, %v1030
      %v1032 = vsel %vm1020, %v1010, %v1013
      %v1033 = vsel %vm1023, %v1019, 1326507024
      %v1034 = vsel %vm1022, %v1016, %v1033
      %v1035 = vsel %vm1021, %v1032, %v1034
      %v1036 = vshll.u32 %v996, 8
      %v1037 = vmul.u32.u64.compose %v1036, %v1035
      %v1038 = vextract.low.u32 %v1037
      %v1039 = vextract.high.u32 %v1037
      %v1040 = vmul.u32.u64.compose %v1036, %v1031
      %v1041 = vextract.low.u32 %v1040
      %v1042 = vextract.high.u32 %v1040
      %v1043 = vmul.u32 %v1036, %v1027
      %v1044 = vadd.s32 %v1039, %v1041
      %vm1045 = vc.u32 %v1039, %v1041
      %v1046 = vadd.s32 %v1042, 1
      %v1047 = vsel %vm1045, %v1046, %v1042
      %v1048 = vadd.s32 %v1043, %v1047
      %v1049 = vadd.s32 %v1048, 536870912
      %v1050 = vshrl.u32 %v1049, 30
      %v1051 = vshll.u32 %v1050, 30
      %v1052 = vsub.s32 %v1048, %v1051
      %vm1053 = vcmp.lt.s32.totalorder %v1052, 0
      %v1054 = vsub.s32 0, %v1052
      %v1055 = vsel %vm1053, %v1054, %v1052
      %v1056 = vclz %v1055
      %v1057 = vsub.s32 %v1056, 2
      %vm1058 = vcmp.gt.s32.totalorder 0, %v1057
      %v1059 = vsel %vm1058, 0, %v1057
      %v1060 = vsub.s32 32, %v1059
      %v1061 = vshll.u32 %v1052, %v1059
      %v1062 = vshrl.u32 %v1044, %v1060
      %v1063 = vor.u32 %v1061, %v1062
      %v1064 = vsub.s32 4294967266, %v1059
      %v1065 = vadd.s32 %v1064, 127
      %v1066 = vshll.u32 %v1065, 23
      %v1067 = vor.u32 4788187, %v1066
      %v1068 = vand.u32 2147483647, %v1067
      %v1070 = vcvt.s32.f32 %v1063
      %v1071 = vmul.f32 %v1070, %v1068
      %v1072 = vxor.u32 %v1071, 2147483648
      %v1073 = vsel %vm990, %v1072, %v1071
      %v1074 = vsub.s32 4, %v1050
      %v1075 = vsel %vm990, %v1074, %v1050
      %v1076 = vsel %vm989, %v354, %v1073
      %v1077 = vsel %vm989, 0, %v1075
      %v1078 = vcosq.f32.pop %v1076
      %v1079 = vsinq.f32.pop %v1076
      %vm1080 = vweird.f32 %v354
      %v1081 = vadd.s32 %v1077, 3
      %v1082 = vand.u32 %v1081, 3
      %vm1083 = vcmp.lt.s32.totalorder %v1082, 2
      %vm1084 = vcmp.eq.s32.totalorder %v1082, 0
      %v1085 = vxor.u32 %v1079, 2147483648
      %v1086 = vsel %vm1084, %v1078, %v1085
      %vm1087 = vcmp.eq.s32.totalorder %v1082, 2
      %v1088 = vxor.u32 %v1078, 2147483648
      %v1089 = vsel %vm1087, %v1088, %v1079
      %v1090 = vsel %vm1083, %v1086, %v1089
      %v1091 = vsel %vm1080, nan, %v1090
      %v1092 = vand.u32 2147483647, %v355
      %vm1093 = vcmp.le.f32.partialorder %v1092, 0.7853982
      %vm1094 = vcmp.lt.s32.totalorder %v355, 0
      %v1095 = vand.u32 %v355, 2139095040
      %v1096 = vshrl.u32 %v1095, 23
      %v1097 = vsub.s32 %v1096, 127
      %v1098 = vand.u32 2147483647, %v355
      %v1099 = vand.u32 %v1098, 8388607
      %v1100 = vor.u32 %v1099, 8388608
      %v1101 = vsub.s32 0, %v1100
      %v1102 = vadd.s32 %v1097, 1
      %vm1103 = vcmp.gt.s32.totalorder %v1102, 0
      %v1104 = vsel %vm1103, %v1102, 0
      %v1105 = vshrl.u32 %v1104, 5
      %v1106 = vand.u32 %v1104, 31
      %v1107 = vsub.s32 32, %v1106
      %v1108 = vshrl.u32 683565275, %v1107
      %v1109 = vshll.u32 683565275, %v1106
      %v1110 = vshrl.u32 2475754826, %v1107
      %v1111 = vor.u32 %v1109, %v1110
      %v1112 = vshll.u32 2475754826, %v1106
      %v1113 = vshrl.u32 2131351028, %v1107
      %v1114 = vor.u32 %v1112, %v1113
      %v1115 = vshll.u32 2131351028, %v1106
      %v1116 = vshrl.u32 2102212464, %v1107
      %v1117 = vor.u32 %v1115, %v1116
      %v1118 = vshll.u32 2102212464, %v1106
      %v1119 = vshrl.u32 920167782, %v1107
      %v1120 = vor.u32 %v1118, %v1119
      %v1121 = vshll.u32 920167782, %v1106
      %v1122 = vshrl.u32 1326507024, %v1107
      %v1123 = vor.u32 %v1121, %v1122
      %vm1124 = vcmp.lt.s32.totalorder %v1105, 1
      %vm1125 = vcmp.lt.s32.totalorder %v1105, 2
      %vm1126 = vcmp.lt.s32.totalorder %v1105, 3
      %vm1127 = vcmp.lt.s32.totalorder %v1105, 4
      %v1128 = vsel %vm1124, %v1108, %v1111
      %v1129 = vsel %vm1127, %v1117, 2102212464
      %v1130 = vsel %vm1126, %v1114, %v1129
      %v1131 = vsel %vm1125, %v1128, %v1130
      %v1132 = vsel %vm1124, %v1111, %v1114
      %v1133 = vsel %vm1127, %v1120, 920167782
      %v1134 = vsel %vm1126, %v1117, %v1133
      %v1135 = vsel %vm1125, %v1132, %v1134
      %v1136 = vsel %vm1124, %v1114, %v1117
      %v1137 = vsel %vm1127, %v1123, 1326507024
      %v1138 = vsel %vm1126, %v1120, %v1137
      %v1139 = vsel %vm1125, %v1136, %v1138
      %v1140 = vshll.u32 %v1100, 8
      %v1141 = vmul.u32.u64.compose %v1140, %v1139
      %v1142 = vextract.low.u32 %v1141
      %v1143 = vextract.high.u32 %v1141
      %v1144 = vmul.u32.u64.compose %v1140, %v1135
      %v1145 = vextract.low.u32 %v1144
      %v1146 = vextract.high.u32 %v1144
      %v1147 = vmul.u32 %v1140, %v1131
      %v1148 = vadd.s32 %v1143, %v1145
      %vm1149 = vc.u32 %v1143, %v1145
      %v1150 = vadd.s32 %v1146, 1
      %v1151 = vsel %vm1149, %v1150, %v1146
      %v1152 = vadd.s32 %v1147, %v1151
      %v1153 = vadd.s32 %v1152, 536870912
      %v1154 = vshrl.u32 %v1153, 30
      %v1155 = vshll.u32 %v1154, 30
      %v1156 = vsub.s32 %v1152, %v1155
      %vm1157 = vcmp.lt.s32.totalorder %v1156, 0
      %v1158 = vsub.s32 0, %v1156
      %v1159 = vsel %vm1157, %v1158, %v1156
      %v1160 = vclz %v1159
      %v1161 = vsub.s32 %v1160, 2
      %vm1162 = vcmp.gt.s32.totalorder 0, %v1161
      %v1163 = vsel %vm1162, 0, %v1161
      %v1164 = vsub.s32 32, %v1163
      %v1165 = vshll.u32 %v1156, %v1163
      %v1166 = vshrl.u32 %v1148, %v1164
      %v1167 = vor.u32 %v1165, %v1166
      %v1168 = vsub.s32 4294967266, %v1163
      %v1169 = vadd.s32 %v1168, 127
      %v1170 = vshll.u32 %v1169, 23
      %v1171 = vor.u32 4788187, %v1170
      %v1172 = vand.u32 2147483647, %v1171
      %v1174 = vcvt.s32.f32 %v1167
      %v1175 = vmul.f32 %v1174, %v1172
      %v1176 = vxor.u32 %v1175, 2147483648
      %v1177 = vsel %vm1094, %v1176, %v1175
      %v1178 = vsub.s32 4, %v1154
      %v1179 = vsel %vm1094, %v1178, %v1154
      %v1180 = vsel %vm1093, %v355, %v1177
      %v1181 = vsel %vm1093, 0, %v1179
      %v1182 = vcosq.f32.pop %v1180
      %v1183 = vsinq.f32.pop %v1180
      %vm1184 = vweird.f32 %v355
      %v1185 = vadd.s32 %v1181, 3
      %v1186 = vand.u32 %v1185, 3
      %vm1187 = vcmp.lt.s32.totalorder %v1186, 2
      %vm1188 = vcmp.eq.s32.totalorder %v1186, 0
      %v1189 = vxor.u32 %v1183, 2147483648
      %v1190 = vsel %vm1188, %v1182, %v1189
      %vm1191 = vcmp.eq.s32.totalorder %v1186, 2
      %v1192 = vxor.u32 %v1182, 2147483648
      %v1193 = vsel %vm1191, %v1192, %v1183
      %v1194 = vsel %vm1187, %v1190, %v1193
      %v1195 = vsel %vm1184, nan, %v1194
      %v1196 = vand.u32 2147483647, %v356
      %vm1197 = vcmp.le.f32.partialorder %v1196, 0.7853982
      %vm1198 = vcmp.lt.s32.totalorder %v356, 0
      %v1199 = vand.u32 %v356, 2139095040
      %v1200 = vshrl.u32 %v1199, 23
      %v1201 = vsub.s32 %v1200, 127
      %v1202 = vand.u32 2147483647, %v356
      %v1203 = vand.u32 %v1202, 8388607
      %v1204 = vor.u32 %v1203, 8388608
      %v1205 = vsub.s32 0, %v1204
      %v1206 = vadd.s32 %v1201, 1
      %vm1207 = vcmp.gt.s32.totalorder %v1206, 0
      %v1208 = vsel %vm1207, %v1206, 0
      %v1209 = vshrl.u32 %v1208, 5
      %v1210 = vand.u32 %v1208, 31
      %v1211 = vsub.s32 32, %v1210
      %v1212 = vshrl.u32 683565275, %v1211
      %v1213 = vshll.u32 683565275, %v1210
      %v1214 = vshrl.u32 2475754826, %v1211
      %v1215 = vor.u32 %v1213, %v1214
      %v1216 = vshll.u32 2475754826, %v1210
      %v1217 = vshrl.u32 2131351028, %v1211
      %v1218 = vor.u32 %v1216, %v1217
      %v1219 = vshll.u32 2131351028, %v1210
      %v1220 = vshrl.u32 2102212464, %v1211
      %v1221 = vor.u32 %v1219, %v1220
      %v1222 = vshll.u32 2102212464, %v1210
      %v1223 = vshrl.u32 920167782, %v1211
      %v1224 = vor.u32 %v1222, %v1223
      %v1225 = vshll.u32 920167782, %v1210
      %v1226 = vshrl.u32 1326507024, %v1211
      %v1227 = vor.u32 %v1225, %v1226
      %vm1228 = vcmp.lt.s32.totalorder %v1209, 1
      %vm1229 = vcmp.lt.s32.totalorder %v1209, 2
      %vm1230 = vcmp.lt.s32.totalorder %v1209, 3
      %vm1231 = vcmp.lt.s32.totalorder %v1209, 4
      %v1232 = vsel %vm1228, %v1212, %v1215
      %v1233 = vsel %vm1231, %v1221, 2102212464
      %v1234 = vsel %vm1230, %v1218, %v1233
      %v1235 = vsel %vm1229, %v1232, %v1234
      %v1236 = vsel %vm1228, %v1215, %v1218
      %v1237 = vsel %vm1231, %v1224, 920167782
      %v1238 = vsel %vm1230, %v1221, %v1237
      %v1239 = vsel %vm1229, %v1236, %v1238
      %v1240 = vsel %vm1228, %v1218, %v1221
      %v1241 = vsel %vm1231, %v1227, 1326507024
      %v1242 = vsel %vm1230, %v1224, %v1241
      %v1243 = vsel %vm1229, %v1240, %v1242
      %v1244 = vshll.u32 %v1204, 8
      %v1245 = vmul.u32.u64.compose %v1244, %v1243
      %v1246 = vextract.low.u32 %v1245
      %v1247 = vextract.high.u32 %v1245
      %v1248 = vmul.u32.u64.compose %v1244, %v1239
      %v1249 = vextract.low.u32 %v1248
      %v1250 = vextract.high.u32 %v1248
      %v1251 = vmul.u32 %v1244, %v1235
      %v1252 = vadd.s32 %v1247, %v1249
      %vm1253 = vc.u32 %v1247, %v1249
      %v1254 = vadd.s32 %v1250, 1
      %v1255 = vsel %vm1253, %v1254, %v1250
      %v1256 = vadd.s32 %v1251, %v1255
      %v1257 = vadd.s32 %v1256, 536870912
      %v1258 = vshrl.u32 %v1257, 30
      %v1259 = vshll.u32 %v1258, 30
      %v1260 = vsub.s32 %v1256, %v1259
      %vm1261 = vcmp.lt.s32.totalorder %v1260, 0
      %v1262 = vsub.s32 0, %v1260
      %v1263 = vsel %vm1261, %v1262, %v1260
      %v1264 = vclz %v1263
      %v1265 = vsub.s32 %v1264, 2
      %vm1266 = vcmp.gt.s32.totalorder 0, %v1265
      %v1267 = vsel %vm1266, 0, %v1265
      %v1268 = vsub.s32 32, %v1267
      %v1269 = vshll.u32 %v1260, %v1267
      %v1270 = vshrl.u32 %v1252, %v1268
      %v1271 = vor.u32 %v1269, %v1270
      %v1272 = vsub.s32 4294967266, %v1267
      %v1273 = vadd.s32 %v1272, 127
      %v1274 = vshll.u32 %v1273, 23
      %v1275 = vor.u32 4788187, %v1274
      %v1276 = vand.u32 2147483647, %v1275
      %v1278 = vcvt.s32.f32 %v1271
      %v1279 = vmul.f32 %v1278, %v1276
      %v1280 = vxor.u32 %v1279, 2147483648
      %v1281 = vsel %vm1198, %v1280, %v1279
      %v1282 = vsub.s32 4, %v1258
      %v1283 = vsel %vm1198, %v1282, %v1258
      %v1284 = vsel %vm1197, %v356, %v1281
      %v1285 = vsel %vm1197, 0, %v1283
      %v1286 = vcosq.f32.pop %v1284
      %v1287 = vsinq.f32.pop %v1284
      %vm1288 = vweird.f32 %v356
      %v1289 = vadd.s32 %v1285, 3
      %v1290 = vand.u32 %v1289, 3
      %vm1291 = vcmp.lt.s32.totalorder %v1290, 2
      %vm1292 = vcmp.eq.s32.totalorder %v1290, 0
      %v1293 = vxor.u32 %v1287, 2147483648
      %v1294 = vsel %vm1292, %v1286, %v1293
      %vm1295 = vcmp.eq.s32.totalorder %v1290, 2
      %v1296 = vxor.u32 %v1286, 2147483648
      %v1297 = vsel %vm1295, %v1296, %v1287
      %v1298 = vsel %vm1291, %v1294, %v1297
      %v1299 = vsel %vm1288, nan, %v1298
      %v1300 = vand.u32 2147483647, %v357
      %vm1301 = vcmp.le.f32.partialorder %v1300, 0.7853982
      %vm1302 = vcmp.lt.s32.totalorder %v357, 0
      %v1303 = vand.u32 %v357, 2139095040
      %v1304 = vshrl.u32 %v1303, 23
      %v1305 = vsub.s32 %v1304, 127
      %v1306 = vand.u32 2147483647, %v357
      %v1307 = vand.u32 %v1306, 8388607
      %v1308 = vor.u32 %v1307, 8388608
      %v1309 = vsub.s32 0, %v1308
      %v1310 = vadd.s32 %v1305, 1
      %vm1311 = vcmp.gt.s32.totalorder %v1310, 0
      %v1312 = vsel %vm1311, %v1310, 0
      %v1313 = vshrl.u32 %v1312, 5
      %v1314 = vand.u32 %v1312, 31
      %v1315 = vsub.s32 32, %v1314
      %v1316 = vshrl.u32 683565275, %v1315
      %v1317 = vshll.u32 683565275, %v1314
      %v1318 = vshrl.u32 2475754826, %v1315
      %v1319 = vor.u32 %v1317, %v1318
      %v1320 = vshll.u32 2475754826, %v1314
      %v1321 = vshrl.u32 2131351028, %v1315
      %v1322 = vor.u32 %v1320, %v1321
      %v1323 = vshll.u32 2131351028, %v1314
      %v1324 = vshrl.u32 2102212464, %v1315
      %v1325 = vor.u32 %v1323, %v1324
      %v1326 = vshll.u32 2102212464, %v1314
      %v1327 = vshrl.u32 920167782, %v1315
      %v1328 = vor.u32 %v1326, %v1327
      %v1329 = vshll.u32 920167782, %v1314
      %v1330 = vshrl.u32 1326507024, %v1315
      %v1331 = vor.u32 %v1329, %v1330
      %vm1332 = vcmp.lt.s32.totalorder %v1313, 1
      %vm1333 = vcmp.lt.s32.totalorder %v1313, 2
      %vm1334 = vcmp.lt.s32.totalorder %v1313, 3
      %vm1335 = vcmp.lt.s32.totalorder %v1313, 4
      %v1336 = vsel %vm1332, %v1316, %v1319
      %v1337 = vsel %vm1335, %v1325, 2102212464
      %v1338 = vsel %vm1334, %v1322, %v1337
      %v1339 = vsel %vm1333, %v1336, %v1338
      %v1340 = vsel %vm1332, %v1319, %v1322
      %v1341 = vsel %vm1335, %v1328, 920167782
      %v1342 = vsel %vm1334, %v1325, %v1341
      %v1343 = vsel %vm1333, %v1340, %v1342
      %v1344 = vsel %vm1332, %v1322, %v1325
      %v1345 = vsel %vm1335, %v1331, 1326507024
      %v1346 = vsel %vm1334, %v1328, %v1345
      %v1347 = vsel %vm1333, %v1344, %v1346
      %v1348 = vshll.u32 %v1308, 8
      %v1349 = vmul.u32.u64.compose %v1348, %v1347
      %v1350 = vextract.low.u32 %v1349
      %v1351 = vextract.high.u32 %v1349
      %v1352 = vmul.u32.u64.compose %v1348, %v1343
      %v1353 = vextract.low.u32 %v1352
      %v1354 = vextract.high.u32 %v1352
      %v1355 = vmul.u32 %v1348, %v1339
      %v1356 = vadd.s32 %v1351, %v1353
      %vm1357 = vc.u32 %v1351, %v1353
      %v1358 = vadd.s32 %v1354, 1
      %v1359 = vsel %vm1357, %v1358, %v1354
      %v1360 = vadd.s32 %v1355, %v1359
      %v1361 = vadd.s32 %v1360, 536870912
      %v1362 = vshrl.u32 %v1361, 30
      %v1363 = vshll.u32 %v1362, 30
      %v1364 = vsub.s32 %v1360, %v1363
      %vm1365 = vcmp.lt.s32.totalorder %v1364, 0
      %v1366 = vsub.s32 0, %v1364
      %v1367 = vsel %vm1365, %v1366, %v1364
      %v1368 = vclz %v1367
      %v1369 = vsub.s32 %v1368, 2
      %vm1370 = vcmp.gt.s32.totalorder 0, %v1369
      %v1371 = vsel %vm1370, 0, %v1369
      %v1372 = vsub.s32 32, %v1371
      %v1373 = vshll.u32 %v1364, %v1371
      %v1374 = vshrl.u32 %v1356, %v1372
      %v1375 = vor.u32 %v1373, %v1374
      %v1376 = vsub.s32 4294967266, %v1371
      %v1377 = vadd.s32 %v1376, 127
      %v1378 = vshll.u32 %v1377, 23
      %v1379 = vor.u32 4788187, %v1378
      %v1380 = vand.u32 2147483647, %v1379
      %v1382 = vcvt.s32.f32 %v1375
      %v1383 = vmul.f32 %v1382, %v1380
      %v1384 = vxor.u32 %v1383, 2147483648
      %v1385 = vsel %vm1302, %v1384, %v1383
      %v1386 = vsub.s32 4, %v1362
      %v1387 = vsel %vm1302, %v1386, %v1362
      %v1388 = vsel %vm1301, %v357, %v1385
      %v1389 = vsel %vm1301, 0, %v1387
      %v1390 = vcosq.f32.pop %v1388
      %v1391 = vsinq.f32.pop %v1388
      %vm1392 = vweird.f32 %v357
      %v1393 = vadd.s32 %v1389, 3
      %v1394 = vand.u32 %v1393, 3
      %vm1395 = vcmp.lt.s32.totalorder %v1394, 2
      %vm1396 = vcmp.eq.s32.totalorder %v1394, 0
      %v1397 = vxor.u32 %v1391, 2147483648
      %v1398 = vsel %vm1396, %v1390, %v1397
      %vm1399 = vcmp.eq.s32.totalorder %v1394, 2
      %v1400 = vxor.u32 %v1390, 2147483648
      %v1401 = vsel %vm1399, %v1400, %v1391
      %v1402 = vsel %vm1395, %v1398, %v1401
      %v1403 = vsel %vm1392, nan, %v1402
      %v1404 = vand.u32 2147483647, %v358
      %vm1405 = vcmp.le.f32.partialorder %v1404, 0.7853982
      %vm1406 = vcmp.lt.s32.totalorder %v358, 0
      %v1407 = vand.u32 %v358, 2139095040
      %v1408 = vshrl.u32 %v1407, 23
      %v1409 = vsub.s32 %v1408, 127
      %v1410 = vand.u32 2147483647, %v358
      %v1411 = vand.u32 %v1410, 8388607
      %v1412 = vor.u32 %v1411, 8388608
      %v1413 = vsub.s32 0, %v1412
      %v1414 = vadd.s32 %v1409, 1
      %vm1415 = vcmp.gt.s32.totalorder %v1414, 0
      %v1416 = vsel %vm1415, %v1414, 0
      %v1417 = vshrl.u32 %v1416, 5
      %v1418 = vand.u32 %v1416, 31
      %v1419 = vsub.s32 32, %v1418
      %v1420 = vshrl.u32 683565275, %v1419
      %v1421 = vshll.u32 683565275, %v1418
      %v1422 = vshrl.u32 2475754826, %v1419
      %v1423 = vor.u32 %v1421, %v1422
      %v1424 = vshll.u32 2475754826, %v1418
      %v1425 = vshrl.u32 2131351028, %v1419
      %v1426 = vor.u32 %v1424, %v1425
      %v1427 = vshll.u32 2131351028, %v1418
      %v1428 = vshrl.u32 2102212464, %v1419
      %v1429 = vor.u32 %v1427, %v1428
      %v1430 = vshll.u32 2102212464, %v1418
      %v1431 = vshrl.u32 920167782, %v1419
      %v1432 = vor.u32 %v1430, %v1431
      %v1433 = vshll.u32 920167782, %v1418
      %v1434 = vshrl.u32 1326507024, %v1419
      %v1435 = vor.u32 %v1433, %v1434
      %vm1436 = vcmp.lt.s32.totalorder %v1417, 1
      %vm1437 = vcmp.lt.s32.totalorder %v1417, 2
      %vm1438 = vcmp.lt.s32.totalorder %v1417, 3
      %vm1439 = vcmp.lt.s32.totalorder %v1417, 4
      %v1440 = vsel %vm1436, %v1420, %v1423
      %v1441 = vsel %vm1439, %v1429, 2102212464
      %v1442 = vsel %vm1438, %v1426, %v1441
      %v1443 = vsel %vm1437, %v1440, %v1442
      %v1444 = vsel %vm1436, %v1423, %v1426
      %v1445 = vsel %vm1439, %v1432, 920167782
      %v1446 = vsel %vm1438, %v1429, %v1445
      %v1447 = vsel %vm1437, %v1444, %v1446
      %v1448 = vsel %vm1436, %v1426, %v1429
      %v1449 = vsel %vm1439, %v1435, 1326507024
      %v1450 = vsel %vm1438, %v1432, %v1449
      %v1451 = vsel %vm1437, %v1448, %v1450
      %v1452 = vshll.u32 %v1412, 8
      %v1453 = vmul.u32.u64.compose %v1452, %v1451
      %v1454 = vextract.low.u32 %v1453
      %v1455 = vextract.high.u32 %v1453
      %v1456 = vmul.u32.u64.compose %v1452, %v1447
      %v1457 = vextract.low.u32 %v1456
      %v1458 = vextract.high.u32 %v1456
      %v1459 = vmul.u32 %v1452, %v1443
      %v1460 = vadd.s32 %v1455, %v1457
      %vm1461 = vc.u32 %v1455, %v1457
      %v1462 = vadd.s32 %v1458, 1
      %v1463 = vsel %vm1461, %v1462, %v1458
      %v1464 = vadd.s32 %v1459, %v1463
      %v1465 = vadd.s32 %v1464, 536870912
      %v1466 = vshrl.u32 %v1465, 30
      %v1467 = vshll.u32 %v1466, 30
      %v1468 = vsub.s32 %v1464, %v1467
      %vm1469 = vcmp.lt.s32.totalorder %v1468, 0
      %v1470 = vsub.s32 0, %v1468
      %v1471 = vsel %vm1469, %v1470, %v1468
      %v1472 = vclz %v1471
      %v1473 = vsub.s32 %v1472, 2
      %vm1474 = vcmp.gt.s32.totalorder 0, %v1473
      %v1475 = vsel %vm1474, 0, %v1473
      %v1476 = vsub.s32 32, %v1475
      %v1477 = vshll.u32 %v1468, %v1475
      %v1478 = vshrl.u32 %v1460, %v1476
      %v1479 = vor.u32 %v1477, %v1478
      %v1480 = vsub.s32 4294967266, %v1475
      %v1481 = vadd.s32 %v1480, 127
      %v1482 = vshll.u32 %v1481, 23
      %v1483 = vor.u32 4788187, %v1482
      %v1484 = vand.u32 2147483647, %v1483
      %v1486 = vcvt.s32.f32 %v1479
      %v1487 = vmul.f32 %v1486, %v1484
      %v1488 = vxor.u32 %v1487, 2147483648
      %v1489 = vsel %vm1406, %v1488, %v1487
      %v1490 = vsub.s32 4, %v1466
      %v1491 = vsel %vm1406, %v1490, %v1466
      %v1492 = vsel %vm1405, %v358, %v1489
      %v1493 = vsel %vm1405, 0, %v1491
      %v1494 = vcosq.f32.pop %v1492
      %v1495 = vsinq.f32.pop %v1492
      %vm1496 = vweird.f32 %v358
      %v1497 = vadd.s32 %v1493, 3
      %v1498 = vand.u32 %v1497, 3
      %vm1499 = vcmp.lt.s32.totalorder %v1498, 2
      %vm1500 = vcmp.eq.s32.totalorder %v1498, 0
      %v1501 = vxor.u32 %v1495, 2147483648
      %v1502 = vsel %vm1500, %v1494, %v1501
      %vm1503 = vcmp.eq.s32.totalorder %v1498, 2
      %v1504 = vxor.u32 %v1494, 2147483648
      %v1505 = vsel %vm1503, %v1504, %v1495
      %v1506 = vsel %vm1499, %v1502, %v1505
      %v1507 = vsel %vm1496, nan, %v1506
      %v1508 = vand.u32 2147483647, %v359
      %vm1509 = vcmp.le.f32.partialorder %v1508, 0.7853982
      %vm1510 = vcmp.lt.s32.totalorder %v359, 0
      %v1511 = vand.u32 %v359, 2139095040
      %v1512 = vshrl.u32 %v1511, 23
      %v1513 = vsub.s32 %v1512, 127
      %v1514 = vand.u32 2147483647, %v359
      %v1515 = vand.u32 %v1514, 8388607
      %v1516 = vor.u32 %v1515, 8388608
      %v1517 = vsub.s32 0, %v1516
      %v1518 = vadd.s32 %v1513, 1
      %vm1519 = vcmp.gt.s32.totalorder %v1518, 0
      %v1520 = vsel %vm1519, %v1518, 0
      %v1521 = vshrl.u32 %v1520, 5
      %v1522 = vand.u32 %v1520, 31
      %v1523 = vsub.s32 32, %v1522
      %v1524 = vshrl.u32 683565275, %v1523
      %v1525 = vshll.u32 683565275, %v1522
      %v1526 = vshrl.u32 2475754826, %v1523
      %v1527 = vor.u32 %v1525, %v1526
      %v1528 = vshll.u32 2475754826, %v1522
      %v1529 = vshrl.u32 2131351028, %v1523
      %v1530 = vor.u32 %v1528, %v1529
      %v1531 = vshll.u32 2131351028, %v1522
      %v1532 = vshrl.u32 2102212464, %v1523
      %v1533 = vor.u32 %v1531, %v1532
      %v1534 = vshll.u32 2102212464, %v1522
      %v1535 = vshrl.u32 920167782, %v1523
      %v1536 = vor.u32 %v1534, %v1535
      %v1537 = vshll.u32 920167782, %v1522
      %v1538 = vshrl.u32 1326507024, %v1523
      %v1539 = vor.u32 %v1537, %v1538
      %vm1540 = vcmp.lt.s32.totalorder %v1521, 1
      %vm1541 = vcmp.lt.s32.totalorder %v1521, 2
      %vm1542 = vcmp.lt.s32.totalorder %v1521, 3
      %vm1543 = vcmp.lt.s32.totalorder %v1521, 4
      %v1544 = vsel %vm1540, %v1524, %v1527
      %v1545 = vsel %vm1543, %v1533, 2102212464
      %v1546 = vsel %vm1542, %v1530, %v1545
      %v1547 = vsel %vm1541, %v1544, %v1546
      %v1548 = vsel %vm1540, %v1527, %v1530
      %v1549 = vsel %vm1543, %v1536, 920167782
      %v1550 = vsel %vm1542, %v1533, %v1549
      %v1551 = vsel %vm1541, %v1548, %v1550
      %v1552 = vsel %vm1540, %v1530, %v1533
      %v1553 = vsel %vm1543, %v1539, 1326507024
      %v1554 = vsel %vm1542, %v1536, %v1553
      %v1555 = vsel %vm1541, %v1552, %v1554
      %v1556 = vshll.u32 %v1516, 8
      %v1557 = vmul.u32.u64.compose %v1556, %v1555
      %v1558 = vextract.low.u32 %v1557
      %v1559 = vextract.high.u32 %v1557
      %v1560 = vmul.u32.u64.compose %v1556, %v1551
      %v1561 = vextract.low.u32 %v1560
      %v1562 = vextract.high.u32 %v1560
      %v1563 = vmul.u32 %v1556, %v1547
      %v1564 = vadd.s32 %v1559, %v1561
      %vm1565 = vc.u32 %v1559, %v1561
      %v1566 = vadd.s32 %v1562, 1
      %v1567 = vsel %vm1565, %v1566, %v1562
      %v1568 = vadd.s32 %v1563, %v1567
      %v1569 = vadd.s32 %v1568, 536870912
      %v1570 = vshrl.u32 %v1569, 30
      %v1571 = vshll.u32 %v1570, 30
      %v1572 = vsub.s32 %v1568, %v1571
      %vm1573 = vcmp.lt.s32.totalorder %v1572, 0
      %v1574 = vsub.s32 0, %v1572
      %v1575 = vsel %vm1573, %v1574, %v1572
      %v1576 = vclz %v1575
      %v1577 = vsub.s32 %v1576, 2
      %vm1578 = vcmp.gt.s32.totalorder 0, %v1577
      %v1579 = vsel %vm1578, 0, %v1577
      %v1580 = vsub.s32 32, %v1579
      %v1581 = vshll.u32 %v1572, %v1579
      %v1582 = vshrl.u32 %v1564, %v1580
      %v1583 = vor.u32 %v1581, %v1582
      %v1584 = vsub.s32 4294967266, %v1579
      %v1585 = vadd.s32 %v1584, 127
      %v1586 = vshll.u32 %v1585, 23
      %v1587 = vor.u32 4788187, %v1586
      %v1588 = vand.u32 2147483647, %v1587
      %v1590 = vcvt.s32.f32 %v1583
      %v1591 = vmul.f32 %v1590, %v1588
      %v1592 = vxor.u32 %v1591, 2147483648
      %v1593 = vsel %vm1510, %v1592, %v1591
      %v1594 = vsub.s32 4, %v1570
      %v1595 = vsel %vm1510, %v1594, %v1570
      %v1596 = vsel %vm1509, %v359, %v1593
      %v1597 = vsel %vm1509, 0, %v1595
      %v1598 = vcosq.f32.pop %v1596
      %v1599 = vsinq.f32.pop %v1596
      %vm1600 = vweird.f32 %v359
      %v1601 = vadd.s32 %v1597, 3
      %v1602 = vand.u32 %v1601, 3
      %vm1603 = vcmp.lt.s32.totalorder %v1602, 2
      %vm1604 = vcmp.eq.s32.totalorder %v1602, 0
      %v1605 = vxor.u32 %v1599, 2147483648
      %v1606 = vsel %vm1604, %v1598, %v1605
      %vm1607 = vcmp.eq.s32.totalorder %v1602, 2
      %v1608 = vxor.u32 %v1598, 2147483648
      %v1609 = vsel %vm1607, %v1608, %v1599
      %v1610 = vsel %vm1603, %v1606, %v1609
      %v1611 = vsel %vm1600, nan, %v1610
      %v1612 = vand.u32 2147483647, %v360
      %vm1613 = vcmp.le.f32.partialorder %v1612, 0.7853982
      %vm1614 = vcmp.lt.s32.totalorder %v360, 0
      %v1615 = vand.u32 %v360, 2139095040
      %v1616 = vshrl.u32 %v1615, 23
      %v1617 = vsub.s32 %v1616, 127
      %v1618 = vand.u32 2147483647, %v360
      %v1619 = vand.u32 %v1618, 8388607
      %v1620 = vor.u32 %v1619, 8388608
      %v1621 = vsub.s32 0, %v1620
      %v1622 = vadd.s32 %v1617, 1
      %vm1623 = vcmp.gt.s32.totalorder %v1622, 0
      %v1624 = vsel %vm1623, %v1622, 0
      %v1625 = vshrl.u32 %v1624, 5
      %v1626 = vand.u32 %v1624, 31
      %v1627 = vsub.s32 32, %v1626
      %v1628 = vshrl.u32 683565275, %v1627
      %v1629 = vshll.u32 683565275, %v1626
      %v1630 = vshrl.u32 2475754826, %v1627
      %v1631 = vor.u32 %v1629, %v1630
      %v1632 = vshll.u32 2475754826, %v1626
      %v1633 = vshrl.u32 2131351028, %v1627
      %v1634 = vor.u32 %v1632, %v1633
      %v1635 = vshll.u32 2131351028, %v1626
      %v1636 = vshrl.u32 2102212464, %v1627
      %v1637 = vor.u32 %v1635, %v1636
      %v1638 = vshll.u32 2102212464, %v1626
      %v1639 = vshrl.u32 920167782, %v1627
      %v1640 = vor.u32 %v1638, %v1639
      %v1641 = vshll.u32 920167782, %v1626
      %v1642 = vshrl.u32 1326507024, %v1627
      %v1643 = vor.u32 %v1641, %v1642
      %vm1644 = vcmp.lt.s32.totalorder %v1625, 1
      %vm1645 = vcmp.lt.s32.totalorder %v1625, 2
      %vm1646 = vcmp.lt.s32.totalorder %v1625, 3
      %vm1647 = vcmp.lt.s32.totalorder %v1625, 4
      %v1648 = vsel %vm1644, %v1628, %v1631
      %v1649 = vsel %vm1647, %v1637, 2102212464
      %v1650 = vsel %vm1646, %v1634, %v1649
      %v1651 = vsel %vm1645, %v1648, %v1650
      %v1652 = vsel %vm1644, %v1631, %v1634
      %v1653 = vsel %vm1647, %v1640, 920167782
      %v1654 = vsel %vm1646, %v1637, %v1653
      %v1655 = vsel %vm1645, %v1652, %v1654
      %v1656 = vsel %vm1644, %v1634, %v1637
      %v1657 = vsel %vm1647, %v1643, 1326507024
      %v1658 = vsel %vm1646, %v1640, %v1657
      %v1659 = vsel %vm1645, %v1656, %v1658
      %v1660 = vshll.u32 %v1620, 8
      %v1661 = vmul.u32.u64.compose %v1660, %v1659
      %v1662 = vextract.low.u32 %v1661
      %v1663 = vextract.high.u32 %v1661
      %v1664 = vmul.u32.u64.compose %v1660, %v1655
      %v1665 = vextract.low.u32 %v1664
      %v1666 = vextract.high.u32 %v1664
      %v1667 = vmul.u32 %v1660, %v1651
      %v1668 = vadd.s32 %v1663, %v1665
      %vm1669 = vc.u32 %v1663, %v1665
      %v1670 = vadd.s32 %v1666, 1
      %v1671 = vsel %vm1669, %v1670, %v1666
      %v1672 = vadd.s32 %v1667, %v1671
      %v1673 = vadd.s32 %v1672, 536870912
      %v1674 = vshrl.u32 %v1673, 30
      %v1675 = vshll.u32 %v1674, 30
      %v1676 = vsub.s32 %v1672, %v1675
      %vm1677 = vcmp.lt.s32.totalorder %v1676, 0
      %v1678 = vsub.s32 0, %v1676
      %v1679 = vsel %vm1677, %v1678, %v1676
      %v1680 = vclz %v1679
      %v1681 = vsub.s32 %v1680, 2
      %vm1682 = vcmp.gt.s32.totalorder 0, %v1681
      %v1683 = vsel %vm1682, 0, %v1681
      %v1684 = vsub.s32 32, %v1683
      %v1685 = vshll.u32 %v1676, %v1683
      %v1686 = vshrl.u32 %v1668, %v1684
      %v1687 = vor.u32 %v1685, %v1686
      %v1688 = vsub.s32 4294967266, %v1683
      %v1689 = vadd.s32 %v1688, 127
      %v1690 = vshll.u32 %v1689, 23
      %v1691 = vor.u32 4788187, %v1690
      %v1692 = vand.u32 2147483647, %v1691
      %v1694 = vcvt.s32.f32 %v1687
      %v1695 = vmul.f32 %v1694, %v1692
      %v1696 = vxor.u32 %v1695, 2147483648
      %v1697 = vsel %vm1614, %v1696, %v1695
      %v1698 = vsub.s32 4, %v1674
      %v1699 = vsel %vm1614, %v1698, %v1674
      %v1700 = vsel %vm1613, %v360, %v1697
      %v1701 = vsel %vm1613, 0, %v1699
      %v1702 = vcosq.f32.pop %v1700
      %v1703 = vsinq.f32.pop %v1700
      %vm1704 = vweird.f32 %v360
      %v1705 = vadd.s32 %v1701, 3
      %v1706 = vand.u32 %v1705, 3
      %vm1707 = vcmp.lt.s32.totalorder %v1706, 2
      %vm1708 = vcmp.eq.s32.totalorder %v1706, 0
      %v1709 = vxor.u32 %v1703, 2147483648
      %v1710 = vsel %vm1708, %v1702, %v1709
      %vm1711 = vcmp.eq.s32.totalorder %v1706, 2
      %v1712 = vxor.u32 %v1702, 2147483648
      %v1713 = vsel %vm1711, %v1712, %v1703
      %v1714 = vsel %vm1707, %v1710, %v1713
      %v1715 = vsel %vm1704, nan, %v1714
      %v1716 = vand.u32 2147483647, %v361
      %vm1717 = vcmp.le.f32.partialorder %v1716, 0.7853982
      %vm1718 = vcmp.lt.s32.totalorder %v361, 0
      %v1719 = vand.u32 %v361, 2139095040
      %v1720 = vshrl.u32 %v1719, 23
      %v1721 = vsub.s32 %v1720, 127
      %v1722 = vand.u32 2147483647, %v361
      %v1723 = vand.u32 %v1722, 8388607
      %v1724 = vor.u32 %v1723, 8388608
      %v1725 = vsub.s32 0, %v1724
      %v1726 = vadd.s32 %v1721, 1
      %vm1727 = vcmp.gt.s32.totalorder %v1726, 0
      %v1728 = vsel %vm1727, %v1726, 0
      %v1729 = vshrl.u32 %v1728, 5
      %v1730 = vand.u32 %v1728, 31
      %v1731 = vsub.s32 32, %v1730
      %v1732 = vshrl.u32 683565275, %v1731
      %v1733 = vshll.u32 683565275, %v1730
      %v1734 = vshrl.u32 2475754826, %v1731
      %v1735 = vor.u32 %v1733, %v1734
      %v1736 = vshll.u32 2475754826, %v1730
      %v1737 = vshrl.u32 2131351028, %v1731
      %v1738 = vor.u32 %v1736, %v1737
      %v1739 = vshll.u32 2131351028, %v1730
      %v1740 = vshrl.u32 2102212464, %v1731
      %v1741 = vor.u32 %v1739, %v1740
      %v1742 = vshll.u32 2102212464, %v1730
      %v1743 = vshrl.u32 920167782, %v1731
      %v1744 = vor.u32 %v1742, %v1743
      %v1745 = vshll.u32 920167782, %v1730
      %v1746 = vshrl.u32 1326507024, %v1731
      %v1747 = vor.u32 %v1745, %v1746
      %vm1748 = vcmp.lt.s32.totalorder %v1729, 1
      %vm1749 = vcmp.lt.s32.totalorder %v1729, 2
      %vm1750 = vcmp.lt.s32.totalorder %v1729, 3
      %vm1751 = vcmp.lt.s32.totalorder %v1729, 4
      %v1752 = vsel %vm1748, %v1732, %v1735
      %v1753 = vsel %vm1751, %v1741, 2102212464
      %v1754 = vsel %vm1750, %v1738, %v1753
      %v1755 = vsel %vm1749, %v1752, %v1754
      %v1756 = vsel %vm1748, %v1735, %v1738
      %v1757 = vsel %vm1751, %v1744, 920167782
      %v1758 = vsel %vm1750, %v1741, %v1757
      %v1759 = vsel %vm1749, %v1756, %v1758
      %v1760 = vsel %vm1748, %v1738, %v1741
      %v1761 = vsel %vm1751, %v1747, 1326507024
      %v1762 = vsel %vm1750, %v1744, %v1761
      %v1763 = vsel %vm1749, %v1760, %v1762
      %v1764 = vshll.u32 %v1724, 8
      %v1765 = vmul.u32.u64.compose %v1764, %v1763
      %v1766 = vextract.low.u32 %v1765
      %v1767 = vextract.high.u32 %v1765
      %v1768 = vmul.u32.u64.compose %v1764, %v1759
      %v1769 = vextract.low.u32 %v1768
      %v1770 = vextract.high.u32 %v1768
      %v1771 = vmul.u32 %v1764, %v1755
      %v1772 = vadd.s32 %v1767, %v1769
      %vm1773 = vc.u32 %v1767, %v1769
      %v1774 = vadd.s32 %v1770, 1
      %v1775 = vsel %vm1773, %v1774, %v1770
      %v1776 = vadd.s32 %v1771, %v1775
      %v1777 = vadd.s32 %v1776, 536870912
      %v1778 = vshrl.u32 %v1777, 30
      %v1779 = vshll.u32 %v1778, 30
      %v1780 = vsub.s32 %v1776, %v1779
      %vm1781 = vcmp.lt.s32.totalorder %v1780, 0
      %v1782 = vsub.s32 0, %v1780
      %v1783 = vsel %vm1781, %v1782, %v1780
      %v1784 = vclz %v1783
      %v1785 = vsub.s32 %v1784, 2
      %vm1786 = vcmp.gt.s32.totalorder 0, %v1785
      %v1787 = vsel %vm1786, 0, %v1785
      %v1788 = vsub.s32 32, %v1787
      %v1789 = vshll.u32 %v1780, %v1787
      %v1790 = vshrl.u32 %v1772, %v1788
      %v1791 = vor.u32 %v1789, %v1790
      %v1792 = vsub.s32 4294967266, %v1787
      %v1793 = vadd.s32 %v1792, 127
      %v1794 = vshll.u32 %v1793, 23
      %v1795 = vor.u32 4788187, %v1794
      %v1796 = vand.u32 2147483647, %v1795
      %v1798 = vcvt.s32.f32 %v1791
      %v1799 = vmul.f32 %v1798, %v1796
      %v1800 = vxor.u32 %v1799, 2147483648
      %v1801 = vsel %vm1718, %v1800, %v1799
      %v1802 = vsub.s32 4, %v1778
      %v1803 = vsel %vm1718, %v1802, %v1778
      %v1804 = vsel %vm1717, %v361, %v1801
      %v1805 = vsel %vm1717, 0, %v1803
      %v1806 = vcosq.f32.pop %v1804
      %v1807 = vsinq.f32.pop %v1804
      %vm1808 = vweird.f32 %v361
      %v1809 = vadd.s32 %v1805, 3
      %v1810 = vand.u32 %v1809, 3
      %vm1811 = vcmp.lt.s32.totalorder %v1810, 2
      %vm1812 = vcmp.eq.s32.totalorder %v1810, 0
      %v1813 = vxor.u32 %v1807, 2147483648
      %v1814 = vsel %vm1812, %v1806, %v1813
      %vm1815 = vcmp.eq.s32.totalorder %v1810, 2
      %v1816 = vxor.u32 %v1806, 2147483648
      %v1817 = vsel %vm1815, %v1816, %v1807
      %v1818 = vsel %vm1811, %v1814, %v1817
      %v1819 = vsel %vm1808, nan, %v1818
      %v1820 = vand.u32 2147483647, %v362
      %vm1821 = vcmp.le.f32.partialorder %v1820, 0.7853982
      %vm1822 = vcmp.lt.s32.totalorder %v362, 0
      %v1823 = vand.u32 %v362, 2139095040
      %v1824 = vshrl.u32 %v1823, 23
      %v1825 = vsub.s32 %v1824, 127
      %v1826 = vand.u32 2147483647, %v362
      %v1827 = vand.u32 %v1826, 8388607
      %v1828 = vor.u32 %v1827, 8388608
      %v1829 = vsub.s32 0, %v1828
      %v1830 = vadd.s32 %v1825, 1
      %vm1831 = vcmp.gt.s32.totalorder %v1830, 0
      %v1832 = vsel %vm1831, %v1830, 0
      %v1833 = vshrl.u32 %v1832, 5
      %v1834 = vand.u32 %v1832, 31
      %v1835 = vsub.s32 32, %v1834
      %v1836 = vshrl.u32 683565275, %v1835
      %v1837 = vshll.u32 683565275, %v1834
      %v1838 = vshrl.u32 2475754826, %v1835
      %v1839 = vor.u32 %v1837, %v1838
      %v1840 = vshll.u32 2475754826, %v1834
      %v1841 = vshrl.u32 2131351028, %v1835
      %v1842 = vor.u32 %v1840, %v1841
      %v1843 = vshll.u32 2131351028, %v1834
      %v1844 = vshrl.u32 2102212464, %v1835
      %v1845 = vor.u32 %v1843, %v1844
      %v1846 = vshll.u32 2102212464, %v1834
      %v1847 = vshrl.u32 920167782, %v1835
      %v1848 = vor.u32 %v1846, %v1847
      %v1849 = vshll.u32 920167782, %v1834
      %v1850 = vshrl.u32 1326507024, %v1835
      %v1851 = vor.u32 %v1849, %v1850
      %vm1852 = vcmp.lt.s32.totalorder %v1833, 1
      %vm1853 = vcmp.lt.s32.totalorder %v1833, 2
      %vm1854 = vcmp.lt.s32.totalorder %v1833, 3
      %vm1855 = vcmp.lt.s32.totalorder %v1833, 4
      %v1856 = vsel %vm1852, %v1836, %v1839
      %v1857 = vsel %vm1855, %v1845, 2102212464
      %v1858 = vsel %vm1854, %v1842, %v1857
      %v1859 = vsel %vm1853, %v1856, %v1858
      %v1860 = vsel %vm1852, %v1839, %v1842
      %v1861 = vsel %vm1855, %v1848, 920167782
      %v1862 = vsel %vm1854, %v1845, %v1861
      %v1863 = vsel %vm1853, %v1860, %v1862
      %v1864 = vsel %vm1852, %v1842, %v1845
      %v1865 = vsel %vm1855, %v1851, 1326507024
      %v1866 = vsel %vm1854, %v1848, %v1865
      %v1867 = vsel %vm1853, %v1864, %v1866
      %v1868 = vshll.u32 %v1828, 8
      %v1869 = vmul.u32.u64.compose %v1868, %v1867
      %v1870 = vextract.low.u32 %v1869
      %v1871 = vextract.high.u32 %v1869
      %v1872 = vmul.u32.u64.compose %v1868, %v1863
      %v1873 = vextract.low.u32 %v1872
      %v1874 = vextract.high.u32 %v1872
      %v1875 = vmul.u32 %v1868, %v1859
      %v1876 = vadd.s32 %v1871, %v1873
      %vm1877 = vc.u32 %v1871, %v1873
      %v1878 = vadd.s32 %v1874, 1
      %v1879 = vsel %vm1877, %v1878, %v1874
      %v1880 = vadd.s32 %v1875, %v1879
      %v1881 = vadd.s32 %v1880, 536870912
      %v1882 = vshrl.u32 %v1881, 30
      %v1883 = vshll.u32 %v1882, 30
      %v1884 = vsub.s32 %v1880, %v1883
      %vm1885 = vcmp.lt.s32.totalorder %v1884, 0
      %v1886 = vsub.s32 0, %v1884
      %v1887 = vsel %vm1885, %v1886, %v1884
      %v1888 = vclz %v1887
      %v1889 = vsub.s32 %v1888, 2
      %vm1890 = vcmp.gt.s32.totalorder 0, %v1889
      %v1891 = vsel %vm1890, 0, %v1889
      %v1892 = vsub.s32 32, %v1891
      %v1893 = vshll.u32 %v1884, %v1891
      %v1894 = vshrl.u32 %v1876, %v1892
      %v1895 = vor.u32 %v1893, %v1894
      %v1896 = vsub.s32 4294967266, %v1891
      %v1897 = vadd.s32 %v1896, 127
      %v1898 = vshll.u32 %v1897, 23
      %v1899 = vor.u32 4788187, %v1898
      %v1900 = vand.u32 2147483647, %v1899
      %v1902 = vcvt.s32.f32 %v1895
      %v1903 = vmul.f32 %v1902, %v1900
      %v1904 = vxor.u32 %v1903, 2147483648
      %v1905 = vsel %vm1822, %v1904, %v1903
      %v1906 = vsub.s32 4, %v1882
      %v1907 = vsel %vm1822, %v1906, %v1882
      %v1908 = vsel %vm1821, %v362, %v1905
      %v1909 = vsel %vm1821, 0, %v1907
      %v1910 = vcosq.f32.pop %v1908
      %v1911 = vsinq.f32.pop %v1908
      %vm1912 = vweird.f32 %v362
      %v1913 = vadd.s32 %v1909, 3
      %v1914 = vand.u32 %v1913, 3
      %vm1915 = vcmp.lt.s32.totalorder %v1914, 2
      %vm1916 = vcmp.eq.s32.totalorder %v1914, 0
      %v1917 = vxor.u32 %v1911, 2147483648
      %v1918 = vsel %vm1916, %v1910, %v1917
      %vm1919 = vcmp.eq.s32.totalorder %v1914, 2
      %v1920 = vxor.u32 %v1910, 2147483648
      %v1921 = vsel %vm1919, %v1920, %v1911
      %v1922 = vsel %vm1915, %v1918, %v1921
      %v1923 = vsel %vm1912, nan, %v1922
      %v1924 = vand.u32 2147483647, %v363
      %vm1925 = vcmp.le.f32.partialorder %v1924, 0.7853982
      %vm1926 = vcmp.lt.s32.totalorder %v363, 0
      %v1927 = vand.u32 %v363, 2139095040
      %v1928 = vshrl.u32 %v1927, 23
      %v1929 = vsub.s32 %v1928, 127
      %v1930 = vand.u32 2147483647, %v363
      %v1931 = vand.u32 %v1930, 8388607
      %v1932 = vor.u32 %v1931, 8388608
      %v1933 = vsub.s32 0, %v1932
      %v1934 = vadd.s32 %v1929, 1
      %vm1935 = vcmp.gt.s32.totalorder %v1934, 0
      %v1936 = vsel %vm1935, %v1934, 0
      %v1937 = vshrl.u32 %v1936, 5
      %v1938 = vand.u32 %v1936, 31
      %v1939 = vsub.s32 32, %v1938
      %v1940 = vshrl.u32 683565275, %v1939
      %v1941 = vshll.u32 683565275, %v1938
      %v1942 = vshrl.u32 2475754826, %v1939
      %v1943 = vor.u32 %v1941, %v1942
      %v1944 = vshll.u32 2475754826, %v1938
      %v1945 = vshrl.u32 2131351028, %v1939
      %v1946 = vor.u32 %v1944, %v1945
      %v1947 = vshll.u32 2131351028, %v1938
      %v1948 = vshrl.u32 2102212464, %v1939
      %v1949 = vor.u32 %v1947, %v1948
      %v1950 = vshll.u32 2102212464, %v1938
      %v1951 = vshrl.u32 920167782, %v1939
      %v1952 = vor.u32 %v1950, %v1951
      %v1953 = vshll.u32 920167782, %v1938
      %v1954 = vshrl.u32 1326507024, %v1939
      %v1955 = vor.u32 %v1953, %v1954
      %vm1956 = vcmp.lt.s32.totalorder %v1937, 1
      %vm1957 = vcmp.lt.s32.totalorder %v1937, 2
      %vm1958 = vcmp.lt.s32.totalorder %v1937, 3
      %vm1959 = vcmp.lt.s32.totalorder %v1937, 4
      %v1960 = vsel %vm1956, %v1940, %v1943
      %v1961 = vsel %vm1959, %v1949, 2102212464
      %v1962 = vsel %vm1958, %v1946, %v1961
      %v1963 = vsel %vm1957, %v1960, %v1962
      %v1964 = vsel %vm1956, %v1943, %v1946
      %v1965 = vsel %vm1959, %v1952, 920167782
      %v1966 = vsel %vm1958, %v1949, %v1965
      %v1967 = vsel %vm1957, %v1964, %v1966
      %v1968 = vsel %vm1956, %v1946, %v1949
      %v1969 = vsel %vm1959, %v1955, 1326507024
      %v1970 = vsel %vm1958, %v1952, %v1969
      %v1971 = vsel %vm1957, %v1968, %v1970
      %v1972 = vshll.u32 %v1932, 8
      %v1973 = vmul.u32.u64.compose %v1972, %v1971
      %v1974 = vextract.low.u32 %v1973
      %v1975 = vextract.high.u32 %v1973
      %v1976 = vmul.u32.u64.compose %v1972, %v1967
      %v1977 = vextract.low.u32 %v1976
      %v1978 = vextract.high.u32 %v1976
      %v1979 = vmul.u32 %v1972, %v1963
      %v1980 = vadd.s32 %v1975, %v1977
      %vm1981 = vc.u32 %v1975, %v1977
      %v1982 = vadd.s32 %v1978, 1
      %v1983 = vsel %vm1981, %v1982, %v1978
      %v1984 = vadd.s32 %v1979, %v1983
      %v1985 = vadd.s32 %v1984, 536870912
      %v1986 = vshrl.u32 %v1985, 30
      %v1987 = vshll.u32 %v1986, 30
      %v1988 = vsub.s32 %v1984, %v1987
      %vm1989 = vcmp.lt.s32.totalorder %v1988, 0
      %v1990 = vsub.s32 0, %v1988
      %v1991 = vsel %vm1989, %v1990, %v1988
      %v1992 = vclz %v1991
      %v1993 = vsub.s32 %v1992, 2
      %vm1994 = vcmp.gt.s32.totalorder 0, %v1993
      %v1995 = vsel %vm1994, 0, %v1993
      %v1996 = vsub.s32 32, %v1995
      %v1997 = vshll.u32 %v1988, %v1995
      %v1998 = vshrl.u32 %v1980, %v1996
      %v1999 = vor.u32 %v1997, %v1998
      %v2000 = vsub.s32 4294967266, %v1995
      %v2001 = vadd.s32 %v2000, 127
      %v2002 = vshll.u32 %v2001, 23
      %v2003 = vor.u32 4788187, %v2002
      %v2004 = vand.u32 2147483647, %v2003
      %v2006 = vcvt.s32.f32 %v1999
      %v2007 = vmul.f32 %v2006, %v2004
      %v2008 = vxor.u32 %v2007, 2147483648
      %v2009 = vsel %vm1926, %v2008, %v2007
      %v2010 = vsub.s32 4, %v1986
      %v2011 = vsel %vm1926, %v2010, %v1986
      %v2012 = vsel %vm1925, %v363, %v2009
      %v2013 = vsel %vm1925, 0, %v2011
      %v2014 = vcosq.f32.pop %v2012
      %v2015 = vsinq.f32.pop %v2012
      %vm2016 = vweird.f32 %v363
      %v2017 = vadd.s32 %v2013, 3
      %v2018 = vand.u32 %v2017, 3
      %vm2019 = vcmp.lt.s32.totalorder %v2018, 2
      %vm2020 = vcmp.eq.s32.totalorder %v2018, 0
      %v2021 = vxor.u32 %v2015, 2147483648
      %v2022 = vsel %vm2020, %v2014, %v2021
      %vm2023 = vcmp.eq.s32.totalorder %v2018, 2
      %v2024 = vxor.u32 %v2014, 2147483648
      %v2025 = vsel %vm2023, %v2024, %v2015
      %v2026 = vsel %vm2019, %v2022, %v2025
      %v2027 = vsel %vm2016, nan, %v2026
      %v2028 = vand.u32 2147483647, %v348
      %vm2029 = vcmp.le.f32.partialorder %v2028, 0.7853982
      %vm2030 = vcmp.lt.s32.totalorder %v348, 0
      %v2031 = vand.u32 %v348, 2139095040
      %v2032 = vshrl.u32 %v2031, 23
      %v2033 = vsub.s32 %v2032, 127
      %v2034 = vand.u32 2147483647, %v348
      %v2035 = vand.u32 %v2034, 8388607
      %v2036 = vor.u32 %v2035, 8388608
      %v2037 = vsub.s32 0, %v2036
      %v2038 = vadd.s32 %v2033, 1
      %vm2039 = vcmp.gt.s32.totalorder %v2038, 0
      %v2040 = vsel %vm2039, %v2038, 0
      %v2041 = vshrl.u32 %v2040, 5
      %v2042 = vand.u32 %v2040, 31
      %v2043 = vsub.s32 32, %v2042
      %v2044 = vshrl.u32 683565275, %v2043
      %v2045 = vshll.u32 683565275, %v2042
      %v2046 = vshrl.u32 2475754826, %v2043
      %v2047 = vor.u32 %v2045, %v2046
      %v2048 = vshll.u32 2475754826, %v2042
      %v2049 = vshrl.u32 2131351028, %v2043
      %v2050 = vor.u32 %v2048, %v2049
      %v2051 = vshll.u32 2131351028, %v2042
      %v2052 = vshrl.u32 2102212464, %v2043
      %v2053 = vor.u32 %v2051, %v2052
      %v2054 = vshll.u32 2102212464, %v2042
      %v2055 = vshrl.u32 920167782, %v2043
      %v2056 = vor.u32 %v2054, %v2055
      %v2057 = vshll.u32 920167782, %v2042
      %v2058 = vshrl.u32 1326507024, %v2043
      %v2059 = vor.u32 %v2057, %v2058
      %vm2060 = vcmp.lt.s32.totalorder %v2041, 1
      %vm2061 = vcmp.lt.s32.totalorder %v2041, 2
      %vm2062 = vcmp.lt.s32.totalorder %v2041, 3
      %vm2063 = vcmp.lt.s32.totalorder %v2041, 4
      %v2064 = vsel %vm2060, %v2044, %v2047
      %v2065 = vsel %vm2063, %v2053, 2102212464
      %v2066 = vsel %vm2062, %v2050, %v2065
      %v2067 = vsel %vm2061, %v2064, %v2066
      %v2068 = vsel %vm2060, %v2047, %v2050
      %v2069 = vsel %vm2063, %v2056, 920167782
      %v2070 = vsel %vm2062, %v2053, %v2069
      %v2071 = vsel %vm2061, %v2068, %v2070
      %v2072 = vsel %vm2060, %v2050, %v2053
      %v2073 = vsel %vm2063, %v2059, 1326507024
      %v2074 = vsel %vm2062, %v2056, %v2073
      %v2075 = vsel %vm2061, %v2072, %v2074
      %v2076 = vshll.u32 %v2036, 8
      %v2077 = vmul.u32.u64.compose %v2076, %v2075
      %v2078 = vextract.low.u32 %v2077
      %v2079 = vextract.high.u32 %v2077
      %v2080 = vmul.u32.u64.compose %v2076, %v2071
      %v2081 = vextract.low.u32 %v2080
      %v2082 = vextract.high.u32 %v2080
      %v2083 = vmul.u32 %v2076, %v2067
      %v2084 = vadd.s32 %v2079, %v2081
      %vm2085 = vc.u32 %v2079, %v2081
      %v2086 = vadd.s32 %v2082, 1
      %v2087 = vsel %vm2085, %v2086, %v2082
      %v2088 = vadd.s32 %v2083, %v2087
      %v2089 = vadd.s32 %v2088, 536870912
      %v2090 = vshrl.u32 %v2089, 30
      %v2091 = vshll.u32 %v2090, 30
      %v2092 = vsub.s32 %v2088, %v2091
      %vm2093 = vcmp.lt.s32.totalorder %v2092, 0
      %v2094 = vsub.s32 0, %v2092
      %v2095 = vsel %vm2093, %v2094, %v2092
      %v2096 = vclz %v2095
      %v2097 = vsub.s32 %v2096, 2
      %vm2098 = vcmp.gt.s32.totalorder 0, %v2097
      %v2099 = vsel %vm2098, 0, %v2097
      %v2100 = vsub.s32 32, %v2099
      %v2101 = vshll.u32 %v2092, %v2099
      %v2102 = vshrl.u32 %v2084, %v2100
      %v2103 = vor.u32 %v2101, %v2102
      %v2104 = vsub.s32 4294967266, %v2099
      %v2105 = vadd.s32 %v2104, 127
      %v2106 = vshll.u32 %v2105, 23
      %v2107 = vor.u32 4788187, %v2106
      %v2108 = vand.u32 2147483647, %v2107
      %v2110 = vcvt.s32.f32 %v2103
      %v2111 = vmul.f32 %v2110, %v2108
      %v2112 = vxor.u32 %v2111, 2147483648
      %v2113 = vsel %vm2030, %v2112, %v2111
      %v2114 = vsub.s32 4, %v2090
      %v2115 = vsel %vm2030, %v2114, %v2090
      %v2116 = vsel %vm2029, %v348, %v2113
      %v2117 = vsel %vm2029, 0, %v2115
      %v2118 = vcosq.f32.pop %v2116
      %v2119 = vsinq.f32.pop %v2116
      %vm2120 = vweird.f32 %v348
      %v2121 = vand.u32 %v2117, 3
      %vm2122 = vcmp.lt.s32.totalorder %v2121, 2
      %vm2123 = vcmp.eq.s32.totalorder %v2121, 0
      %v2124 = vxor.u32 %v2119, 2147483648
      %v2125 = vsel %vm2123, %v2118, %v2124
      %vm2126 = vcmp.eq.s32.totalorder %v2121, 2
      %v2127 = vxor.u32 %v2118, 2147483648
      %v2128 = vsel %vm2126, %v2127, %v2119
      %v2129 = vsel %vm2122, %v2125, %v2128
      %v2130 = vsel %vm2120, nan, %v2129
      %v2131 = vand.u32 2147483647, %v349
      %vm2132 = vcmp.le.f32.partialorder %v2131, 0.7853982
      %vm2133 = vcmp.lt.s32.totalorder %v349, 0
      %v2134 = vand.u32 %v349, 2139095040
      %v2135 = vshrl.u32 %v2134, 23
      %v2136 = vsub.s32 %v2135, 127
      %v2137 = vand.u32 2147483647, %v349
      %v2138 = vand.u32 %v2137, 8388607
      %v2139 = vor.u32 %v2138, 8388608
      %v2140 = vsub.s32 0, %v2139
      %v2141 = vadd.s32 %v2136, 1
      %vm2142 = vcmp.gt.s32.totalorder %v2141, 0
      %v2143 = vsel %vm2142, %v2141, 0
      %v2144 = vshrl.u32 %v2143, 5
      %v2145 = vand.u32 %v2143, 31
      %v2146 = vsub.s32 32, %v2145
      %v2147 = vshrl.u32 683565275, %v2146
      %v2148 = vshll.u32 683565275, %v2145
      %v2149 = vshrl.u32 2475754826, %v2146
      %v2150 = vor.u32 %v2148, %v2149
      %v2151 = vshll.u32 2475754826, %v2145
      %v2152 = vshrl.u32 2131351028, %v2146
      %v2153 = vor.u32 %v2151, %v2152
      %v2154 = vshll.u32 2131351028, %v2145
      %v2155 = vshrl.u32 2102212464, %v2146
      %v2156 = vor.u32 %v2154, %v2155
      %v2157 = vshll.u32 2102212464, %v2145
      %v2158 = vshrl.u32 920167782, %v2146
      %v2159 = vor.u32 %v2157, %v2158
      %v2160 = vshll.u32 920167782, %v2145
      %v2161 = vshrl.u32 1326507024, %v2146
      %v2162 = vor.u32 %v2160, %v2161
      %vm2163 = vcmp.lt.s32.totalorder %v2144, 1
      %vm2164 = vcmp.lt.s32.totalorder %v2144, 2
      %vm2165 = vcmp.lt.s32.totalorder %v2144, 3
      %vm2166 = vcmp.lt.s32.totalorder %v2144, 4
      %v2167 = vsel %vm2163, %v2147, %v2150
      %v2168 = vsel %vm2166, %v2156, 2102212464
      %v2169 = vsel %vm2165, %v2153, %v2168
      %v2170 = vsel %vm2164, %v2167, %v2169
      %v2171 = vsel %vm2163, %v2150, %v2153
      %v2172 = vsel %vm2166, %v2159, 920167782
      %v2173 = vsel %vm2165, %v2156, %v2172
      %v2174 = vsel %vm2164, %v2171, %v2173
      %v2175 = vsel %vm2163, %v2153, %v2156
      %v2176 = vsel %vm2166, %v2162, 1326507024
      %v2177 = vsel %vm2165, %v2159, %v2176
      %v2178 = vsel %vm2164, %v2175, %v2177
      %v2179 = vshll.u32 %v2139, 8
      %v2180 = vmul.u32.u64.compose %v2179, %v2178
      %v2181 = vextract.low.u32 %v2180
      %v2182 = vextract.high.u32 %v2180
      %v2183 = vmul.u32.u64.compose %v2179, %v2174
      %v2184 = vextract.low.u32 %v2183
      %v2185 = vextract.high.u32 %v2183
      %v2186 = vmul.u32 %v2179, %v2170
      %v2187 = vadd.s32 %v2182, %v2184
      %vm2188 = vc.u32 %v2182, %v2184
      %v2189 = vadd.s32 %v2185, 1
      %v2190 = vsel %vm2188, %v2189, %v2185
      %v2191 = vadd.s32 %v2186, %v2190
      %v2192 = vadd.s32 %v2191, 536870912
      %v2193 = vshrl.u32 %v2192, 30
      %v2194 = vshll.u32 %v2193, 30
      %v2195 = vsub.s32 %v2191, %v2194
      %vm2196 = vcmp.lt.s32.totalorder %v2195, 0
      %v2197 = vsub.s32 0, %v2195
      %v2198 = vsel %vm2196, %v2197, %v2195
      %v2199 = vclz %v2198
      %v2200 = vsub.s32 %v2199, 2
      %vm2201 = vcmp.gt.s32.totalorder 0, %v2200
      %v2202 = vsel %vm2201, 0, %v2200
      %v2203 = vsub.s32 32, %v2202
      %v2204 = vshll.u32 %v2195, %v2202
      %v2205 = vshrl.u32 %v2187, %v2203
      %v2206 = vor.u32 %v2204, %v2205
      %v2207 = vsub.s32 4294967266, %v2202
      %v2208 = vadd.s32 %v2207, 127
      %v2209 = vshll.u32 %v2208, 23
      %v2210 = vor.u32 4788187, %v2209
      %v2211 = vand.u32 2147483647, %v2210
      %v2213 = vcvt.s32.f32 %v2206
      %v2214 = vmul.f32 %v2213, %v2211
      %v2215 = vxor.u32 %v2214, 2147483648
      %v2216 = vsel %vm2133, %v2215, %v2214
      %v2217 = vsub.s32 4, %v2193
      %v2218 = vsel %vm2133, %v2217, %v2193
      %v2219 = vsel %vm2132, %v349, %v2216
      %v2220 = vsel %vm2132, 0, %v2218
      %v2221 = vcosq.f32.pop %v2219
      %v2222 = vsinq.f32.pop %v2219
      %vm2223 = vweird.f32 %v349
      %v2224 = vand.u32 %v2220, 3
      %vm2225 = vcmp.lt.s32.totalorder %v2224, 2
      %vm2226 = vcmp.eq.s32.totalorder %v2224, 0
      %v2227 = vxor.u32 %v2222, 2147483648
      %v2228 = vsel %vm2226, %v2221, %v2227
      %vm2229 = vcmp.eq.s32.totalorder %v2224, 2
      %v2230 = vxor.u32 %v2221, 2147483648
      %v2231 = vsel %vm2229, %v2230, %v2222
      %v2232 = vsel %vm2225, %v2228, %v2231
      %v2233 = vsel %vm2223, nan, %v2232
      %v2234 = vand.u32 2147483647, %v350
      %vm2235 = vcmp.le.f32.partialorder %v2234, 0.7853982
      %vm2236 = vcmp.lt.s32.totalorder %v350, 0
      %v2237 = vand.u32 %v350, 2139095040
      %v2238 = vshrl.u32 %v2237, 23
      %v2239 = vsub.s32 %v2238, 127
      %v2240 = vand.u32 2147483647, %v350
      %v2241 = vand.u32 %v2240, 8388607
      %v2242 = vor.u32 %v2241, 8388608
      %v2243 = vsub.s32 0, %v2242
      %v2244 = vadd.s32 %v2239, 1
      %vm2245 = vcmp.gt.s32.totalorder %v2244, 0
      %v2246 = vsel %vm2245, %v2244, 0
      %v2247 = vshrl.u32 %v2246, 5
      %v2248 = vand.u32 %v2246, 31
      %v2249 = vsub.s32 32, %v2248
      %v2250 = vshrl.u32 683565275, %v2249
      %v2251 = vshll.u32 683565275, %v2248
      %v2252 = vshrl.u32 2475754826, %v2249
      %v2253 = vor.u32 %v2251, %v2252
      %v2254 = vshll.u32 2475754826, %v2248
      %v2255 = vshrl.u32 2131351028, %v2249
      %v2256 = vor.u32 %v2254, %v2255
      %v2257 = vshll.u32 2131351028, %v2248
      %v2258 = vshrl.u32 2102212464, %v2249
      %v2259 = vor.u32 %v2257, %v2258
      %v2260 = vshll.u32 2102212464, %v2248
      %v2261 = vshrl.u32 920167782, %v2249
      %v2262 = vor.u32 %v2260, %v2261
      %v2263 = vshll.u32 920167782, %v2248
      %v2264 = vshrl.u32 1326507024, %v2249
      %v2265 = vor.u32 %v2263, %v2264
      %vm2266 = vcmp.lt.s32.totalorder %v2247, 1
      %vm2267 = vcmp.lt.s32.totalorder %v2247, 2
      %vm2268 = vcmp.lt.s32.totalorder %v2247, 3
      %vm2269 = vcmp.lt.s32.totalorder %v2247, 4
      %v2270 = vsel %vm2266, %v2250, %v2253
      %v2271 = vsel %vm2269, %v2259, 2102212464
      %v2272 = vsel %vm2268, %v2256, %v2271
      %v2273 = vsel %vm2267, %v2270, %v2272
      %v2274 = vsel %vm2266, %v2253, %v2256
      %v2275 = vsel %vm2269, %v2262, 920167782
      %v2276 = vsel %vm2268, %v2259, %v2275
      %v2277 = vsel %vm2267, %v2274, %v2276
      %v2278 = vsel %vm2266, %v2256, %v2259
      %v2279 = vsel %vm2269, %v2265, 1326507024
      %v2280 = vsel %vm2268, %v2262, %v2279
      %v2281 = vsel %vm2267, %v2278, %v2280
      %v2282 = vshll.u32 %v2242, 8
      %v2283 = vmul.u32.u64.compose %v2282, %v2281
      %v2284 = vextract.low.u32 %v2283
      %v2285 = vextract.high.u32 %v2283
      %v2286 = vmul.u32.u64.compose %v2282, %v2277
      %v2287 = vextract.low.u32 %v2286
      %v2288 = vextract.high.u32 %v2286
      %v2289 = vmul.u32 %v2282, %v2273
      %v2290 = vadd.s32 %v2285, %v2287
      %vm2291 = vc.u32 %v2285, %v2287
      %v2292 = vadd.s32 %v2288, 1
      %v2293 = vsel %vm2291, %v2292, %v2288
      %v2294 = vadd.s32 %v2289, %v2293
      %v2295 = vadd.s32 %v2294, 536870912
      %v2296 = vshrl.u32 %v2295, 30
      %v2297 = vshll.u32 %v2296, 30
      %v2298 = vsub.s32 %v2294, %v2297
      %vm2299 = vcmp.lt.s32.totalorder %v2298, 0
      %v2300 = vsub.s32 0, %v2298
      %v2301 = vsel %vm2299, %v2300, %v2298
      %v2302 = vclz %v2301
      %v2303 = vsub.s32 %v2302, 2
      %vm2304 = vcmp.gt.s32.totalorder 0, %v2303
      %v2305 = vsel %vm2304, 0, %v2303
      %v2306 = vsub.s32 32, %v2305
      %v2307 = vshll.u32 %v2298, %v2305
      %v2308 = vshrl.u32 %v2290, %v2306
      %v2309 = vor.u32 %v2307, %v2308
      %v2310 = vsub.s32 4294967266, %v2305
      %v2311 = vadd.s32 %v2310, 127
      %v2312 = vshll.u32 %v2311, 23
      %v2313 = vor.u32 4788187, %v2312
      %v2314 = vand.u32 2147483647, %v2313
      %v2316 = vcvt.s32.f32 %v2309
      %v2317 = vmul.f32 %v2316, %v2314
      %v2318 = vxor.u32 %v2317, 2147483648
      %v2319 = vsel %vm2236, %v2318, %v2317
      %v2320 = vsub.s32 4, %v2296
      %v2321 = vsel %vm2236, %v2320, %v2296
      %v2322 = vsel %vm2235, %v350, %v2319
      %v2323 = vsel %vm2235, 0, %v2321
      %v2324 = vcosq.f32.pop %v2322
      %v2325 = vsinq.f32.pop %v2322
      %vm2326 = vweird.f32 %v350
      %v2327 = vand.u32 %v2323, 3
      %vm2328 = vcmp.lt.s32.totalorder %v2327, 2
      %vm2329 = vcmp.eq.s32.totalorder %v2327, 0
      %v2330 = vxor.u32 %v2325, 2147483648
      %v2331 = vsel %vm2329, %v2324, %v2330
      %vm2332 = vcmp.eq.s32.totalorder %v2327, 2
      %v2333 = vxor.u32 %v2324, 2147483648
      %v2334 = vsel %vm2332, %v2333, %v2325
      %v2335 = vsel %vm2328, %v2331, %v2334
      %v2336 = vsel %vm2326, nan, %v2335
      %v2337 = vand.u32 2147483647, %v351
      %vm2338 = vcmp.le.f32.partialorder %v2337, 0.7853982
      %vm2339 = vcmp.lt.s32.totalorder %v351, 0
      %v2340 = vand.u32 %v351, 2139095040
      %v2341 = vshrl.u32 %v2340, 23
      %v2342 = vsub.s32 %v2341, 127
      %v2343 = vand.u32 2147483647, %v351
      %v2344 = vand.u32 %v2343, 8388607
      %v2345 = vor.u32 %v2344, 8388608
      %v2346 = vsub.s32 0, %v2345
      %v2347 = vadd.s32 %v2342, 1
      %vm2348 = vcmp.gt.s32.totalorder %v2347, 0
      %v2349 = vsel %vm2348, %v2347, 0
      %v2350 = vshrl.u32 %v2349, 5
      %v2351 = vand.u32 %v2349, 31
      %v2352 = vsub.s32 32, %v2351
      %v2353 = vshrl.u32 683565275, %v2352
      %v2354 = vshll.u32 683565275, %v2351
      %v2355 = vshrl.u32 2475754826, %v2352
      %v2356 = vor.u32 %v2354, %v2355
      %v2357 = vshll.u32 2475754826, %v2351
      %v2358 = vshrl.u32 2131351028, %v2352
      %v2359 = vor.u32 %v2357, %v2358
      %v2360 = vshll.u32 2131351028, %v2351
      %v2361 = vshrl.u32 2102212464, %v2352
      %v2362 = vor.u32 %v2360, %v2361
      %v2363 = vshll.u32 2102212464, %v2351
      %v2364 = vshrl.u32 920167782, %v2352
      %v2365 = vor.u32 %v2363, %v2364
      %v2366 = vshll.u32 920167782, %v2351
      %v2367 = vshrl.u32 1326507024, %v2352
      %v2368 = vor.u32 %v2366, %v2367
      %vm2369 = vcmp.lt.s32.totalorder %v2350, 1
      %vm2370 = vcmp.lt.s32.totalorder %v2350, 2
      %vm2371 = vcmp.lt.s32.totalorder %v2350, 3
      %vm2372 = vcmp.lt.s32.totalorder %v2350, 4
      %v2373 = vsel %vm2369, %v2353, %v2356
      %v2374 = vsel %vm2372, %v2362, 2102212464
      %v2375 = vsel %vm2371, %v2359, %v2374
      %v2376 = vsel %vm2370, %v2373, %v2375
      %v2377 = vsel %vm2369, %v2356, %v2359
      %v2378 = vsel %vm2372, %v2365, 920167782
      %v2379 = vsel %vm2371, %v2362, %v2378
      %v2380 = vsel %vm2370, %v2377, %v2379
      %v2381 = vsel %vm2369, %v2359, %v2362
      %v2382 = vsel %vm2372, %v2368, 1326507024
      %v2383 = vsel %vm2371, %v2365, %v2382
      %v2384 = vsel %vm2370, %v2381, %v2383
      %v2385 = vshll.u32 %v2345, 8
      %v2386 = vmul.u32.u64.compose %v2385, %v2384
      %v2387 = vextract.low.u32 %v2386
      %v2388 = vextract.high.u32 %v2386
      %v2389 = vmul.u32.u64.compose %v2385, %v2380
      %v2390 = vextract.low.u32 %v2389
      %v2391 = vextract.high.u32 %v2389
      %v2392 = vmul.u32 %v2385, %v2376
      %v2393 = vadd.s32 %v2388, %v2390
      %vm2394 = vc.u32 %v2388, %v2390
      %v2395 = vadd.s32 %v2391, 1
      %v2396 = vsel %vm2394, %v2395, %v2391
      %v2397 = vadd.s32 %v2392, %v2396
      %v2398 = vadd.s32 %v2397, 536870912
      %v2399 = vshrl.u32 %v2398, 30
      %v2400 = vshll.u32 %v2399, 30
      %v2401 = vsub.s32 %v2397, %v2400
      %vm2402 = vcmp.lt.s32.totalorder %v2401, 0
      %v2403 = vsub.s32 0, %v2401
      %v2404 = vsel %vm2402, %v2403, %v2401
      %v2405 = vclz %v2404
      %v2406 = vsub.s32 %v2405, 2
      %vm2407 = vcmp.gt.s32.totalorder 0, %v2406
      %v2408 = vsel %vm2407, 0, %v2406
      %v2409 = vsub.s32 32, %v2408
      %v2410 = vshll.u32 %v2401, %v2408
      %v2411 = vshrl.u32 %v2393, %v2409
      %v2412 = vor.u32 %v2410, %v2411
      %v2413 = vsub.s32 4294967266, %v2408
      %v2414 = vadd.s32 %v2413, 127
      %v2415 = vshll.u32 %v2414, 23
      %v2416 = vor.u32 4788187, %v2415
      %v2417 = vand.u32 2147483647, %v2416
      %v2419 = vcvt.s32.f32 %v2412
      %v2420 = vmul.f32 %v2419, %v2417
      %v2421 = vxor.u32 %v2420, 2147483648
      %v2422 = vsel %vm2339, %v2421, %v2420
      %v2423 = vsub.s32 4, %v2399
      %v2424 = vsel %vm2339, %v2423, %v2399
      %v2425 = vsel %vm2338, %v351, %v2422
      %v2426 = vsel %vm2338, 0, %v2424
      %v2427 = vcosq.f32.pop %v2425
      %v2428 = vsinq.f32.pop %v2425
      %vm2429 = vweird.f32 %v351
      %v2430 = vand.u32 %v2426, 3
      %vm2431 = vcmp.lt.s32.totalorder %v2430, 2
      %vm2432 = vcmp.eq.s32.totalorder %v2430, 0
      %v2433 = vxor.u32 %v2428, 2147483648
      %v2434 = vsel %vm2432, %v2427, %v2433
      %vm2435 = vcmp.eq.s32.totalorder %v2430, 2
      %v2436 = vxor.u32 %v2427, 2147483648
      %v2437 = vsel %vm2435, %v2436, %v2428
      %v2438 = vsel %vm2431, %v2434, %v2437
      %v2439 = vsel %vm2429, nan, %v2438
      %v2440 = vand.u32 2147483647, %v352
      %vm2441 = vcmp.le.f32.partialorder %v2440, 0.7853982
      %vm2442 = vcmp.lt.s32.totalorder %v352, 0
      %v2443 = vand.u32 %v352, 2139095040
      %v2444 = vshrl.u32 %v2443, 23
      %v2445 = vsub.s32 %v2444, 127
      %v2446 = vand.u32 2147483647, %v352
      %v2447 = vand.u32 %v2446, 8388607
      %v2448 = vor.u32 %v2447, 8388608
      %v2449 = vsub.s32 0, %v2448
      %v2450 = vadd.s32 %v2445, 1
      %vm2451 = vcmp.gt.s32.totalorder %v2450, 0
      %v2452 = vsel %vm2451, %v2450, 0
      %v2453 = vshrl.u32 %v2452, 5
      %v2454 = vand.u32 %v2452, 31
      %v2455 = vsub.s32 32, %v2454
      %v2456 = vshrl.u32 683565275, %v2455
      %v2457 = vshll.u32 683565275, %v2454
      %v2458 = vshrl.u32 2475754826, %v2455
      %v2459 = vor.u32 %v2457, %v2458
      %v2460 = vshll.u32 2475754826, %v2454
      %v2461 = vshrl.u32 2131351028, %v2455
      %v2462 = vor.u32 %v2460, %v2461
      %v2463 = vshll.u32 2131351028, %v2454
      %v2464 = vshrl.u32 2102212464, %v2455
      %v2465 = vor.u32 %v2463, %v2464
      %v2466 = vshll.u32 2102212464, %v2454
      %v2467 = vshrl.u32 920167782, %v2455
      %v2468 = vor.u32 %v2466, %v2467
      %v2469 = vshll.u32 920167782, %v2454
      %v2470 = vshrl.u32 1326507024, %v2455
      %v2471 = vor.u32 %v2469, %v2470
      %vm2472 = vcmp.lt.s32.totalorder %v2453, 1
      %vm2473 = vcmp.lt.s32.totalorder %v2453, 2
      %vm2474 = vcmp.lt.s32.totalorder %v2453, 3
      %vm2475 = vcmp.lt.s32.totalorder %v2453, 4
      %v2476 = vsel %vm2472, %v2456, %v2459
      %v2477 = vsel %vm2475, %v2465, 2102212464
      %v2478 = vsel %vm2474, %v2462, %v2477
      %v2479 = vsel %vm2473, %v2476, %v2478
      %v2480 = vsel %vm2472, %v2459, %v2462
      %v2481 = vsel %vm2475, %v2468, 920167782
      %v2482 = vsel %vm2474, %v2465, %v2481
      %v2483 = vsel %vm2473, %v2480, %v2482
      %v2484 = vsel %vm2472, %v2462, %v2465
      %v2485 = vsel %vm2475, %v2471, 1326507024
      %v2486 = vsel %vm2474, %v2468, %v2485
      %v2487 = vsel %vm2473, %v2484, %v2486
      %v2488 = vshll.u32 %v2448, 8
      %v2489 = vmul.u32.u64.compose %v2488, %v2487
      %v2490 = vextract.low.u32 %v2489
      %v2491 = vextract.high.u32 %v2489
      %v2492 = vmul.u32.u64.compose %v2488, %v2483
      %v2493 = vextract.low.u32 %v2492
      %v2494 = vextract.high.u32 %v2492
      %v2495 = vmul.u32 %v2488, %v2479
      %v2496 = vadd.s32 %v2491, %v2493
      %vm2497 = vc.u32 %v2491, %v2493
      %v2498 = vadd.s32 %v2494, 1
      %v2499 = vsel %vm2497, %v2498, %v2494
      %v2500 = vadd.s32 %v2495, %v2499
      %v2501 = vadd.s32 %v2500, 536870912
      %v2502 = vshrl.u32 %v2501, 30
      %v2503 = vshll.u32 %v2502, 30
      %v2504 = vsub.s32 %v2500, %v2503
      %vm2505 = vcmp.lt.s32.totalorder %v2504, 0
      %v2506 = vsub.s32 0, %v2504
      %v2507 = vsel %vm2505, %v2506, %v2504
      %v2508 = vclz %v2507
      %v2509 = vsub.s32 %v2508, 2
      %vm2510 = vcmp.gt.s32.totalorder 0, %v2509
      %v2511 = vsel %vm2510, 0, %v2509
      %v2512 = vsub.s32 32, %v2511
      %v2513 = vshll.u32 %v2504, %v2511
      %v2514 = vshrl.u32 %v2496, %v2512
      %v2515 = vor.u32 %v2513, %v2514
      %v2516 = vsub.s32 4294967266, %v2511
      %v2517 = vadd.s32 %v2516, 127
      %v2518 = vshll.u32 %v2517, 23
      %v2519 = vor.u32 4788187, %v2518
      %v2520 = vand.u32 2147483647, %v2519
      %v2522 = vcvt.s32.f32 %v2515
      %v2523 = vmul.f32 %v2522, %v2520
      %v2524 = vxor.u32 %v2523, 2147483648
      %v2525 = vsel %vm2442, %v2524, %v2523
      %v2526 = vsub.s32 4, %v2502
      %v2527 = vsel %vm2442, %v2526, %v2502
      %v2528 = vsel %vm2441, %v352, %v2525
      %v2529 = vsel %vm2441, 0, %v2527
      %v2530 = vcosq.f32.pop %v2528
      %v2531 = vsinq.f32.pop %v2528
      %vm2532 = vweird.f32 %v352
      %v2533 = vand.u32 %v2529, 3
      %vm2534 = vcmp.lt.s32.totalorder %v2533, 2
      %vm2535 = vcmp.eq.s32.totalorder %v2533, 0
      %v2536 = vxor.u32 %v2531, 2147483648
      %v2537 = vsel %vm2535, %v2530, %v2536
      %vm2538 = vcmp.eq.s32.totalorder %v2533, 2
      %v2539 = vxor.u32 %v2530, 2147483648
      %v2540 = vsel %vm2538, %v2539, %v2531
      %v2541 = vsel %vm2534, %v2537, %v2540
      %v2542 = vsel %vm2532, nan, %v2541
      %v2543 = vand.u32 2147483647, %v353
      %vm2544 = vcmp.le.f32.partialorder %v2543, 0.7853982
      %vm2545 = vcmp.lt.s32.totalorder %v353, 0
      %v2546 = vand.u32 %v353, 2139095040
      %v2547 = vshrl.u32 %v2546, 23
      %v2548 = vsub.s32 %v2547, 127
      %v2549 = vand.u32 2147483647, %v353
      %v2550 = vand.u32 %v2549, 8388607
      %v2551 = vor.u32 %v2550, 8388608
      %v2552 = vsub.s32 0, %v2551
      %v2553 = vadd.s32 %v2548, 1
      %vm2554 = vcmp.gt.s32.totalorder %v2553, 0
      %v2555 = vsel %vm2554, %v2553, 0
      %v2556 = vshrl.u32 %v2555, 5
      %v2557 = vand.u32 %v2555, 31
      %v2558 = vsub.s32 32, %v2557
      %v2559 = vshrl.u32 683565275, %v2558
      %v2560 = vshll.u32 683565275, %v2557
      %v2561 = vshrl.u32 2475754826, %v2558
      %v2562 = vor.u32 %v2560, %v2561
      %v2563 = vshll.u32 2475754826, %v2557
      %v2564 = vshrl.u32 2131351028, %v2558
      %v2565 = vor.u32 %v2563, %v2564
      %v2566 = vshll.u32 2131351028, %v2557
      %v2567 = vshrl.u32 2102212464, %v2558
      %v2568 = vor.u32 %v2566, %v2567
      %v2569 = vshll.u32 2102212464, %v2557
      %v2570 = vshrl.u32 920167782, %v2558
      %v2571 = vor.u32 %v2569, %v2570
      %v2572 = vshll.u32 920167782, %v2557
      %v2573 = vshrl.u32 1326507024, %v2558
      %v2574 = vor.u32 %v2572, %v2573
      %vm2575 = vcmp.lt.s32.totalorder %v2556, 1
      %vm2576 = vcmp.lt.s32.totalorder %v2556, 2
      %vm2577 = vcmp.lt.s32.totalorder %v2556, 3
      %vm2578 = vcmp.lt.s32.totalorder %v2556, 4
      %v2579 = vsel %vm2575, %v2559, %v2562
      %v2580 = vsel %vm2578, %v2568, 2102212464
      %v2581 = vsel %vm2577, %v2565, %v2580
      %v2582 = vsel %vm2576, %v2579, %v2581
      %v2583 = vsel %vm2575, %v2562, %v2565
      %v2584 = vsel %vm2578, %v2571, 920167782
      %v2585 = vsel %vm2577, %v2568, %v2584
      %v2586 = vsel %vm2576, %v2583, %v2585
      %v2587 = vsel %vm2575, %v2565, %v2568
      %v2588 = vsel %vm2578, %v2574, 1326507024
      %v2589 = vsel %vm2577, %v2571, %v2588
      %v2590 = vsel %vm2576, %v2587, %v2589
      %v2591 = vshll.u32 %v2551, 8
      %v2592 = vmul.u32.u64.compose %v2591, %v2590
      %v2593 = vextract.low.u32 %v2592
      %v2594 = vextract.high.u32 %v2592
      %v2595 = vmul.u32.u64.compose %v2591, %v2586
      %v2596 = vextract.low.u32 %v2595
      %v2597 = vextract.high.u32 %v2595
      %v2598 = vmul.u32 %v2591, %v2582
      %v2599 = vadd.s32 %v2594, %v2596
      %vm2600 = vc.u32 %v2594, %v2596
      %v2601 = vadd.s32 %v2597, 1
      %v2602 = vsel %vm2600, %v2601, %v2597
      %v2603 = vadd.s32 %v2598, %v2602
      %v2604 = vadd.s32 %v2603, 536870912
      %v2605 = vshrl.u32 %v2604, 30
      %v2606 = vshll.u32 %v2605, 30
      %v2607 = vsub.s32 %v2603, %v2606
      %vm2608 = vcmp.lt.s32.totalorder %v2607, 0
      %v2609 = vsub.s32 0, %v2607
      %v2610 = vsel %vm2608, %v2609, %v2607
      %v2611 = vclz %v2610
      %v2612 = vsub.s32 %v2611, 2
      %vm2613 = vcmp.gt.s32.totalorder 0, %v2612
      %v2614 = vsel %vm2613, 0, %v2612
      %v2615 = vsub.s32 32, %v2614
      %v2616 = vshll.u32 %v2607, %v2614
      %v2617 = vshrl.u32 %v2599, %v2615
      %v2618 = vor.u32 %v2616, %v2617
      %v2619 = vsub.s32 4294967266, %v2614
      %v2620 = vadd.s32 %v2619, 127
      %v2621 = vshll.u32 %v2620, 23
      %v2622 = vor.u32 4788187, %v2621
      %v2623 = vand.u32 2147483647, %v2622
      %v2625 = vcvt.s32.f32 %v2618
      %v2626 = vmul.f32 %v2625, %v2623
      %v2627 = vxor.u32 %v2626, 2147483648
      %v2628 = vsel %vm2545, %v2627, %v2626
      %v2629 = vsub.s32 4, %v2605
      %v2630 = vsel %vm2545, %v2629, %v2605
      %v2631 = vsel %vm2544, %v353, %v2628
      %v2632 = vsel %vm2544, 0, %v2630
      %v2633 = vcosq.f32.pop %v2631
      %v2634 = vsinq.f32.pop %v2631
      %vm2635 = vweird.f32 %v353
      %v2636 = vand.u32 %v2632, 3
      %vm2637 = vcmp.lt.s32.totalorder %v2636, 2
      %vm2638 = vcmp.eq.s32.totalorder %v2636, 0
      %v2639 = vxor.u32 %v2634, 2147483648
      %v2640 = vsel %vm2638, %v2633, %v2639
      %vm2641 = vcmp.eq.s32.totalorder %v2636, 2
      %v2642 = vxor.u32 %v2633, 2147483648
      %v2643 = vsel %vm2641, %v2642, %v2634
      %v2644 = vsel %vm2637, %v2640, %v2643
      %v2645 = vsel %vm2635, nan, %v2644
      %v2646 = vand.u32 2147483647, %v354
      %vm2647 = vcmp.le.f32.partialorder %v2646, 0.7853982
      %vm2648 = vcmp.lt.s32.totalorder %v354, 0
      %v2649 = vand.u32 %v354, 2139095040
      %v2650 = vshrl.u32 %v2649, 23
      %v2651 = vsub.s32 %v2650, 127
      %v2652 = vand.u32 2147483647, %v354
      %v2653 = vand.u32 %v2652, 8388607
      %v2654 = vor.u32 %v2653, 8388608
      %v2655 = vsub.s32 0, %v2654
      %v2656 = vadd.s32 %v2651, 1
      %vm2657 = vcmp.gt.s32.totalorder %v2656, 0
      %v2658 = vsel %vm2657, %v2656, 0
      %v2659 = vshrl.u32 %v2658, 5
      %v2660 = vand.u32 %v2658, 31
      %v2661 = vsub.s32 32, %v2660
      %v2662 = vshrl.u32 683565275, %v2661
      %v2663 = vshll.u32 683565275, %v2660
      %v2664 = vshrl.u32 2475754826, %v2661
      %v2665 = vor.u32 %v2663, %v2664
      %v2666 = vshll.u32 2475754826, %v2660
      %v2667 = vshrl.u32 2131351028, %v2661
      %v2668 = vor.u32 %v2666, %v2667
      %v2669 = vshll.u32 2131351028, %v2660
      %v2670 = vshrl.u32 2102212464, %v2661
      %v2671 = vor.u32 %v2669, %v2670
      %v2672 = vshll.u32 2102212464, %v2660
      %v2673 = vshrl.u32 920167782, %v2661
      %v2674 = vor.u32 %v2672, %v2673
      %v2675 = vshll.u32 920167782, %v2660
      %v2676 = vshrl.u32 1326507024, %v2661
      %v2677 = vor.u32 %v2675, %v2676
      %vm2678 = vcmp.lt.s32.totalorder %v2659, 1
      %vm2679 = vcmp.lt.s32.totalorder %v2659, 2
      %vm2680 = vcmp.lt.s32.totalorder %v2659, 3
      %vm2681 = vcmp.lt.s32.totalorder %v2659, 4
      %v2682 = vsel %vm2678, %v2662, %v2665
      %v2683 = vsel %vm2681, %v2671, 2102212464
      %v2684 = vsel %vm2680, %v2668, %v2683
      %v2685 = vsel %vm2679, %v2682, %v2684
      %v2686 = vsel %vm2678, %v2665, %v2668
      %v2687 = vsel %vm2681, %v2674, 920167782
      %v2688 = vsel %vm2680, %v2671, %v2687
      %v2689 = vsel %vm2679, %v2686, %v2688
      %v2690 = vsel %vm2678, %v2668, %v2671
      %v2691 = vsel %vm2681, %v2677, 1326507024
      %v2692 = vsel %vm2680, %v2674, %v2691
      %v2693 = vsel %vm2679, %v2690, %v2692
      %v2694 = vshll.u32 %v2654, 8
      %v2695 = vmul.u32.u64.compose %v2694, %v2693
      %v2696 = vextract.low.u32 %v2695
      %v2697 = vextract.high.u32 %v2695
      %v2698 = vmul.u32.u64.compose %v2694, %v2689
      %v2699 = vextract.low.u32 %v2698
      %v2700 = vextract.high.u32 %v2698
      %v2701 = vmul.u32 %v2694, %v2685
      %v2702 = vadd.s32 %v2697, %v2699
      %vm2703 = vc.u32 %v2697, %v2699
      %v2704 = vadd.s32 %v2700, 1
      %v2705 = vsel %vm2703, %v2704, %v2700
      %v2706 = vadd.s32 %v2701, %v2705
      %v2707 = vadd.s32 %v2706, 536870912
      %v2708 = vshrl.u32 %v2707, 30
      %v2709 = vshll.u32 %v2708, 30
      %v2710 = vsub.s32 %v2706, %v2709
      %vm2711 = vcmp.lt.s32.totalorder %v2710, 0
      %v2712 = vsub.s32 0, %v2710
      %v2713 = vsel %vm2711, %v2712, %v2710
      %v2714 = vclz %v2713
      %v2715 = vsub.s32 %v2714, 2
      %vm2716 = vcmp.gt.s32.totalorder 0, %v2715
      %v2717 = vsel %vm2716, 0, %v2715
      %v2718 = vsub.s32 32, %v2717
      %v2719 = vshll.u32 %v2710, %v2717
      %v2720 = vshrl.u32 %v2702, %v2718
      %v2721 = vor.u32 %v2719, %v2720
      %v2722 = vsub.s32 4294967266, %v2717
      %v2723 = vadd.s32 %v2722, 127
      %v2724 = vshll.u32 %v2723, 23
      %v2725 = vor.u32 4788187, %v2724
      %v2726 = vand.u32 2147483647, %v2725
      %v2728 = vcvt.s32.f32 %v2721
      %v2729 = vmul.f32 %v2728, %v2726
      %v2730 = vxor.u32 %v2729, 2147483648
      %v2731 = vsel %vm2648, %v2730, %v2729
      %v2732 = vsub.s32 4, %v2708
      %v2733 = vsel %vm2648, %v2732, %v2708
      %v2734 = vsel %vm2647, %v354, %v2731
      %v2735 = vsel %vm2647, 0, %v2733
      %v2736 = vcosq.f32.pop %v2734
      %v2737 = vsinq.f32.pop %v2734
      %vm2738 = vweird.f32 %v354
      %v2739 = vand.u32 %v2735, 3
      %vm2740 = vcmp.lt.s32.totalorder %v2739, 2
      %vm2741 = vcmp.eq.s32.totalorder %v2739, 0
      %v2742 = vxor.u32 %v2737, 2147483648
      %v2743 = vsel %vm2741, %v2736, %v2742
      %vm2744 = vcmp.eq.s32.totalorder %v2739, 2
      %v2745 = vxor.u32 %v2736, 2147483648
      %v2746 = vsel %vm2744, %v2745, %v2737
      %v2747 = vsel %vm2740, %v2743, %v2746
      %v2748 = vsel %vm2738, nan, %v2747
      %v2749 = vand.u32 2147483647, %v355
      %vm2750 = vcmp.le.f32.partialorder %v2749, 0.7853982
      %vm2751 = vcmp.lt.s32.totalorder %v355, 0
      %v2752 = vand.u32 %v355, 2139095040
      %v2753 = vshrl.u32 %v2752, 23
      %v2754 = vsub.s32 %v2753, 127
      %v2755 = vand.u32 2147483647, %v355
      %v2756 = vand.u32 %v2755, 8388607
      %v2757 = vor.u32 %v2756, 8388608
      %v2758 = vsub.s32 0, %v2757
      %v2759 = vadd.s32 %v2754, 1
      %vm2760 = vcmp.gt.s32.totalorder %v2759, 0
      %v2761 = vsel %vm2760, %v2759, 0
      %v2762 = vshrl.u32 %v2761, 5
      %v2763 = vand.u32 %v2761, 31
      %v2764 = vsub.s32 32, %v2763
      %v2765 = vshrl.u32 683565275, %v2764
      %v2766 = vshll.u32 683565275, %v2763
      %v2767 = vshrl.u32 2475754826, %v2764
      %v2768 = vor.u32 %v2766, %v2767
      %v2769 = vshll.u32 2475754826, %v2763
      %v2770 = vshrl.u32 2131351028, %v2764
      %v2771 = vor.u32 %v2769, %v2770
      %v2772 = vshll.u32 2131351028, %v2763
      %v2773 = vshrl.u32 2102212464, %v2764
      %v2774 = vor.u32 %v2772, %v2773
      %v2775 = vshll.u32 2102212464, %v2763
      %v2776 = vshrl.u32 920167782, %v2764
      %v2777 = vor.u32 %v2775, %v2776
      %v2778 = vshll.u32 920167782, %v2763
      %v2779 = vshrl.u32 1326507024, %v2764
      %v2780 = vor.u32 %v2778, %v2779
      %vm2781 = vcmp.lt.s32.totalorder %v2762, 1
      %vm2782 = vcmp.lt.s32.totalorder %v2762, 2
      %vm2783 = vcmp.lt.s32.totalorder %v2762, 3
      %vm2784 = vcmp.lt.s32.totalorder %v2762, 4
      %v2785 = vsel %vm2781, %v2765, %v2768
      %v2786 = vsel %vm2784, %v2774, 2102212464
      %v2787 = vsel %vm2783, %v2771, %v2786
      %v2788 = vsel %vm2782, %v2785, %v2787
      %v2789 = vsel %vm2781, %v2768, %v2771
      %v2790 = vsel %vm2784, %v2777, 920167782
      %v2791 = vsel %vm2783, %v2774, %v2790
      %v2792 = vsel %vm2782, %v2789, %v2791
      %v2793 = vsel %vm2781, %v2771, %v2774
      %v2794 = vsel %vm2784, %v2780, 1326507024
      %v2795 = vsel %vm2783, %v2777, %v2794
      %v2796 = vsel %vm2782, %v2793, %v2795
      %v2797 = vshll.u32 %v2757, 8
      %v2798 = vmul.u32.u64.compose %v2797, %v2796
      %v2799 = vextract.low.u32 %v2798
      %v2800 = vextract.high.u32 %v2798
      %v2801 = vmul.u32.u64.compose %v2797, %v2792
      %v2802 = vextract.low.u32 %v2801
      %v2803 = vextract.high.u32 %v2801
      %v2804 = vmul.u32 %v2797, %v2788
      %v2805 = vadd.s32 %v2800, %v2802
      %vm2806 = vc.u32 %v2800, %v2802
      %v2807 = vadd.s32 %v2803, 1
      %v2808 = vsel %vm2806, %v2807, %v2803
      %v2809 = vadd.s32 %v2804, %v2808
      %v2810 = vadd.s32 %v2809, 536870912
      %v2811 = vshrl.u32 %v2810, 30
      %v2812 = vshll.u32 %v2811, 30
      %v2813 = vsub.s32 %v2809, %v2812
      %vm2814 = vcmp.lt.s32.totalorder %v2813, 0
      %v2815 = vsub.s32 0, %v2813
      %v2816 = vsel %vm2814, %v2815, %v2813
      %v2817 = vclz %v2816
      %v2818 = vsub.s32 %v2817, 2
      %vm2819 = vcmp.gt.s32.totalorder 0, %v2818
      %v2820 = vsel %vm2819, 0, %v2818
      %v2821 = vsub.s32 32, %v2820
      %v2822 = vshll.u32 %v2813, %v2820
      %v2823 = vshrl.u32 %v2805, %v2821
      %v2824 = vor.u32 %v2822, %v2823
      %v2825 = vsub.s32 4294967266, %v2820
      %v2826 = vadd.s32 %v2825, 127
      %v2827 = vshll.u32 %v2826, 23
      %v2828 = vor.u32 4788187, %v2827
      %v2829 = vand.u32 2147483647, %v2828
      %v2831 = vcvt.s32.f32 %v2824
      %v2832 = vmul.f32 %v2831, %v2829
      %v2833 = vxor.u32 %v2832, 2147483648
      %v2834 = vsel %vm2751, %v2833, %v2832
      %v2835 = vsub.s32 4, %v2811
      %v2836 = vsel %vm2751, %v2835, %v2811
      %v2837 = vsel %vm2750, %v355, %v2834
      %v2838 = vsel %vm2750, 0, %v2836
      %v2839 = vcosq.f32.pop %v2837
      %v2840 = vsinq.f32.pop %v2837
      %vm2841 = vweird.f32 %v355
      %v2842 = vand.u32 %v2838, 3
      %vm2843 = vcmp.lt.s32.totalorder %v2842, 2
      %vm2844 = vcmp.eq.s32.totalorder %v2842, 0
      %v2845 = vxor.u32 %v2840, 2147483648
      %v2846 = vsel %vm2844, %v2839, %v2845
      %vm2847 = vcmp.eq.s32.totalorder %v2842, 2
      %v2848 = vxor.u32 %v2839, 2147483648
      %v2849 = vsel %vm2847, %v2848, %v2840
      %v2850 = vsel %vm2843, %v2846, %v2849
      %v2851 = vsel %vm2841, nan, %v2850
      %v2852 = vand.u32 2147483647, %v356
      %vm2853 = vcmp.le.f32.partialorder %v2852, 0.7853982
      %vm2854 = vcmp.lt.s32.totalorder %v356, 0
      %v2855 = vand.u32 %v356, 2139095040
      %v2856 = vshrl.u32 %v2855, 23
      %v2857 = vsub.s32 %v2856, 127
      %v2858 = vand.u32 2147483647, %v356
      %v2859 = vand.u32 %v2858, 8388607
      %v2860 = vor.u32 %v2859, 8388608
      %v2861 = vsub.s32 0, %v2860
      %v2862 = vadd.s32 %v2857, 1
      %vm2863 = vcmp.gt.s32.totalorder %v2862, 0
      %v2864 = vsel %vm2863, %v2862, 0
      %v2865 = vshrl.u32 %v2864, 5
      %v2866 = vand.u32 %v2864, 31
      %v2867 = vsub.s32 32, %v2866
      %v2868 = vshrl.u32 683565275, %v2867
      %v2869 = vshll.u32 683565275, %v2866
      %v2870 = vshrl.u32 2475754826, %v2867
      %v2871 = vor.u32 %v2869, %v2870
      %v2872 = vshll.u32 2475754826, %v2866
      %v2873 = vshrl.u32 2131351028, %v2867
      %v2874 = vor.u32 %v2872, %v2873
      %v2875 = vshll.u32 2131351028, %v2866
      %v2876 = vshrl.u32 2102212464, %v2867
      %v2877 = vor.u32 %v2875, %v2876
      %v2878 = vshll.u32 2102212464, %v2866
      %v2879 = vshrl.u32 920167782, %v2867
      %v2880 = vor.u32 %v2878, %v2879
      %v2881 = vshll.u32 920167782, %v2866
      %v2882 = vshrl.u32 1326507024, %v2867
      %v2883 = vor.u32 %v2881, %v2882
      %vm2884 = vcmp.lt.s32.totalorder %v2865, 1
      %vm2885 = vcmp.lt.s32.totalorder %v2865, 2
      %vm2886 = vcmp.lt.s32.totalorder %v2865, 3
      %vm2887 = vcmp.lt.s32.totalorder %v2865, 4
      %v2888 = vsel %vm2884, %v2868, %v2871
      %v2889 = vsel %vm2887, %v2877, 2102212464
      %v2890 = vsel %vm2886, %v2874, %v2889
      %v2891 = vsel %vm2885, %v2888, %v2890
      %v2892 = vsel %vm2884, %v2871, %v2874
      %v2893 = vsel %vm2887, %v2880, 920167782
      %v2894 = vsel %vm2886, %v2877, %v2893
      %v2895 = vsel %vm2885, %v2892, %v2894
      %v2896 = vsel %vm2884, %v2874, %v2877
      %v2897 = vsel %vm2887, %v2883, 1326507024
      %v2898 = vsel %vm2886, %v2880, %v2897
      %v2899 = vsel %vm2885, %v2896, %v2898
      %v2900 = vshll.u32 %v2860, 8
      %v2901 = vmul.u32.u64.compose %v2900, %v2899
      %v2902 = vextract.low.u32 %v2901
      %v2903 = vextract.high.u32 %v2901
      %v2904 = vmul.u32.u64.compose %v2900, %v2895
      %v2905 = vextract.low.u32 %v2904
      %v2906 = vextract.high.u32 %v2904
      %v2907 = vmul.u32 %v2900, %v2891
      %v2908 = vadd.s32 %v2903, %v2905
      %vm2909 = vc.u32 %v2903, %v2905
      %v2910 = vadd.s32 %v2906, 1
      %v2911 = vsel %vm2909, %v2910, %v2906
      %v2912 = vadd.s32 %v2907, %v2911
      %v2913 = vadd.s32 %v2912, 536870912
      %v2914 = vshrl.u32 %v2913, 30
      %v2915 = vshll.u32 %v2914, 30
      %v2916 = vsub.s32 %v2912, %v2915
      %vm2917 = vcmp.lt.s32.totalorder %v2916, 0
      %v2918 = vsub.s32 0, %v2916
      %v2919 = vsel %vm2917, %v2918, %v2916
      %v2920 = vclz %v2919
      %v2921 = vsub.s32 %v2920, 2
      %vm2922 = vcmp.gt.s32.totalorder 0, %v2921
      %v2923 = vsel %vm2922, 0, %v2921
      %v2924 = vsub.s32 32, %v2923
      %v2925 = vshll.u32 %v2916, %v2923
      %v2926 = vshrl.u32 %v2908, %v2924
      %v2927 = vor.u32 %v2925, %v2926
      %v2928 = vsub.s32 4294967266, %v2923
      %v2929 = vadd.s32 %v2928, 127
      %v2930 = vshll.u32 %v2929, 23
      %v2931 = vor.u32 4788187, %v2930
      %v2932 = vand.u32 2147483647, %v2931
      %v2934 = vcvt.s32.f32 %v2927
      %v2935 = vmul.f32 %v2934, %v2932
      %v2936 = vxor.u32 %v2935, 2147483648
      %v2937 = vsel %vm2854, %v2936, %v2935
      %v2938 = vsub.s32 4, %v2914
      %v2939 = vsel %vm2854, %v2938, %v2914
      %v2940 = vsel %vm2853, %v356, %v2937
      %v2941 = vsel %vm2853, 0, %v2939
      %v2942 = vcosq.f32.pop %v2940
      %v2943 = vsinq.f32.pop %v2940
      %vm2944 = vweird.f32 %v356
      %v2945 = vand.u32 %v2941, 3
      %vm2946 = vcmp.lt.s32.totalorder %v2945, 2
      %vm2947 = vcmp.eq.s32.totalorder %v2945, 0
      %v2948 = vxor.u32 %v2943, 2147483648
      %v2949 = vsel %vm2947, %v2942, %v2948
      %vm2950 = vcmp.eq.s32.totalorder %v2945, 2
      %v2951 = vxor.u32 %v2942, 2147483648
      %v2952 = vsel %vm2950, %v2951, %v2943
      %v2953 = vsel %vm2946, %v2949, %v2952
      %v2954 = vsel %vm2944, nan, %v2953
      %v2955 = vand.u32 2147483647, %v357
      %vm2956 = vcmp.le.f32.partialorder %v2955, 0.7853982
      %vm2957 = vcmp.lt.s32.totalorder %v357, 0
      %v2958 = vand.u32 %v357, 2139095040
      %v2959 = vshrl.u32 %v2958, 23
      %v2960 = vsub.s32 %v2959, 127
      %v2961 = vand.u32 2147483647, %v357
      %v2962 = vand.u32 %v2961, 8388607
      %v2963 = vor.u32 %v2962, 8388608
      %v2964 = vsub.s32 0, %v2963
      %v2965 = vadd.s32 %v2960, 1
      %vm2966 = vcmp.gt.s32.totalorder %v2965, 0
      %v2967 = vsel %vm2966, %v2965, 0
      %v2968 = vshrl.u32 %v2967, 5
      %v2969 = vand.u32 %v2967, 31
      %v2970 = vsub.s32 32, %v2969
      %v2971 = vshrl.u32 683565275, %v2970
      %v2972 = vshll.u32 683565275, %v2969
      %v2973 = vshrl.u32 2475754826, %v2970
      %v2974 = vor.u32 %v2972, %v2973
      %v2975 = vshll.u32 2475754826, %v2969
      %v2976 = vshrl.u32 2131351028, %v2970
      %v2977 = vor.u32 %v2975, %v2976
      %v2978 = vshll.u32 2131351028, %v2969
      %v2979 = vshrl.u32 2102212464, %v2970
      %v2980 = vor.u32 %v2978, %v2979
      %v2981 = vshll.u32 2102212464, %v2969
      %v2982 = vshrl.u32 920167782, %v2970
      %v2983 = vor.u32 %v2981, %v2982
      %v2984 = vshll.u32 920167782, %v2969
      %v2985 = vshrl.u32 1326507024, %v2970
      %v2986 = vor.u32 %v2984, %v2985
      %vm2987 = vcmp.lt.s32.totalorder %v2968, 1
      %vm2988 = vcmp.lt.s32.totalorder %v2968, 2
      %vm2989 = vcmp.lt.s32.totalorder %v2968, 3
      %vm2990 = vcmp.lt.s32.totalorder %v2968, 4
      %v2991 = vsel %vm2987, %v2971, %v2974
      %v2992 = vsel %vm2990, %v2980, 2102212464
      %v2993 = vsel %vm2989, %v2977, %v2992
      %v2994 = vsel %vm2988, %v2991, %v2993
      %v2995 = vsel %vm2987, %v2974, %v2977
      %v2996 = vsel %vm2990, %v2983, 920167782
      %v2997 = vsel %vm2989, %v2980, %v2996
      %v2998 = vsel %vm2988, %v2995, %v2997
      %v2999 = vsel %vm2987, %v2977, %v2980
      %v3000 = vsel %vm2990, %v2986, 1326507024
      %v3001 = vsel %vm2989, %v2983, %v3000
      %v3002 = vsel %vm2988, %v2999, %v3001
      %v3003 = vshll.u32 %v2963, 8
      %v3004 = vmul.u32.u64.compose %v3003, %v3002
      %v3005 = vextract.low.u32 %v3004
      %v3006 = vextract.high.u32 %v3004
      %v3007 = vmul.u32.u64.compose %v3003, %v2998
      %v3008 = vextract.low.u32 %v3007
      %v3009 = vextract.high.u32 %v3007
      %v3010 = vmul.u32 %v3003, %v2994
      %v3011 = vadd.s32 %v3006, %v3008
      %vm3012 = vc.u32 %v3006, %v3008
      %v3013 = vadd.s32 %v3009, 1
      %v3014 = vsel %vm3012, %v3013, %v3009
      %v3015 = vadd.s32 %v3010, %v3014
      %v3016 = vadd.s32 %v3015, 536870912
      %v3017 = vshrl.u32 %v3016, 30
      %v3018 = vshll.u32 %v3017, 30
      %v3019 = vsub.s32 %v3015, %v3018
      %vm3020 = vcmp.lt.s32.totalorder %v3019, 0
      %v3021 = vsub.s32 0, %v3019
      %v3022 = vsel %vm3020, %v3021, %v3019
      %v3023 = vclz %v3022
      %v3024 = vsub.s32 %v3023, 2
      %vm3025 = vcmp.gt.s32.totalorder 0, %v3024
      %v3026 = vsel %vm3025, 0, %v3024
      %v3027 = vsub.s32 32, %v3026
      %v3028 = vshll.u32 %v3019, %v3026
      %v3029 = vshrl.u32 %v3011, %v3027
      %v3030 = vor.u32 %v3028, %v3029
      %v3031 = vsub.s32 4294967266, %v3026
      %v3032 = vadd.s32 %v3031, 127
      %v3033 = vshll.u32 %v3032, 23
      %v3034 = vor.u32 4788187, %v3033
      %v3035 = vand.u32 2147483647, %v3034
      %v3037 = vcvt.s32.f32 %v3030
      %v3038 = vmul.f32 %v3037, %v3035
      %v3039 = vxor.u32 %v3038, 2147483648
      %v3040 = vsel %vm2957, %v3039, %v3038
      %v3041 = vsub.s32 4, %v3017
      %v3042 = vsel %vm2957, %v3041, %v3017
      %v3043 = vsel %vm2956, %v357, %v3040
      %v3044 = vsel %vm2956, 0, %v3042
      %v3045 = vcosq.f32.pop %v3043
      %v3046 = vsinq.f32.pop %v3043
      %vm3047 = vweird.f32 %v357
      %v3048 = vand.u32 %v3044, 3
      %vm3049 = vcmp.lt.s32.totalorder %v3048, 2
      %vm3050 = vcmp.eq.s32.totalorder %v3048, 0
      %v3051 = vxor.u32 %v3046, 2147483648
      %v3052 = vsel %vm3050, %v3045, %v3051
      %vm3053 = vcmp.eq.s32.totalorder %v3048, 2
      %v3054 = vxor.u32 %v3045, 2147483648
      %v3055 = vsel %vm3053, %v3054, %v3046
      %v3056 = vsel %vm3049, %v3052, %v3055
      %v3057 = vsel %vm3047, nan, %v3056
      %v3058 = vand.u32 2147483647, %v358
      %vm3059 = vcmp.le.f32.partialorder %v3058, 0.7853982
      %vm3060 = vcmp.lt.s32.totalorder %v358, 0
      %v3061 = vand.u32 %v358, 2139095040
      %v3062 = vshrl.u32 %v3061, 23
      %v3063 = vsub.s32 %v3062, 127
      %v3064 = vand.u32 2147483647, %v358
      %v3065 = vand.u32 %v3064, 8388607
      %v3066 = vor.u32 %v3065, 8388608
      %v3067 = vsub.s32 0, %v3066
      %v3068 = vadd.s32 %v3063, 1
      %vm3069 = vcmp.gt.s32.totalorder %v3068, 0
      %v3070 = vsel %vm3069, %v3068, 0
      %v3071 = vshrl.u32 %v3070, 5
      %v3072 = vand.u32 %v3070, 31
      %v3073 = vsub.s32 32, %v3072
      %v3074 = vshrl.u32 683565275, %v3073
      %v3075 = vshll.u32 683565275, %v3072
      %v3076 = vshrl.u32 2475754826, %v3073
      %v3077 = vor.u32 %v3075, %v3076
      %v3078 = vshll.u32 2475754826, %v3072
      %v3079 = vshrl.u32 2131351028, %v3073
      %v3080 = vor.u32 %v3078, %v3079
      %v3081 = vshll.u32 2131351028, %v3072
      %v3082 = vshrl.u32 2102212464, %v3073
      %v3083 = vor.u32 %v3081, %v3082
      %v3084 = vshll.u32 2102212464, %v3072
      %v3085 = vshrl.u32 920167782, %v3073
      %v3086 = vor.u32 %v3084, %v3085
      %v3087 = vshll.u32 920167782, %v3072
      %v3088 = vshrl.u32 1326507024, %v3073
      %v3089 = vor.u32 %v3087, %v3088
      %vm3090 = vcmp.lt.s32.totalorder %v3071, 1
      %vm3091 = vcmp.lt.s32.totalorder %v3071, 2
      %vm3092 = vcmp.lt.s32.totalorder %v3071, 3
      %vm3093 = vcmp.lt.s32.totalorder %v3071, 4
      %v3094 = vsel %vm3090, %v3074, %v3077
      %v3095 = vsel %vm3093, %v3083, 2102212464
      %v3096 = vsel %vm3092, %v3080, %v3095
      %v3097 = vsel %vm3091, %v3094, %v3096
      %v3098 = vsel %vm3090, %v3077, %v3080
      %v3099 = vsel %vm3093, %v3086, 920167782
      %v3100 = vsel %vm3092, %v3083, %v3099
      %v3101 = vsel %vm3091, %v3098, %v3100
      %v3102 = vsel %vm3090, %v3080, %v3083
      %v3103 = vsel %vm3093, %v3089, 1326507024
      %v3104 = vsel %vm3092, %v3086, %v3103
      %v3105 = vsel %vm3091, %v3102, %v3104
      %v3106 = vshll.u32 %v3066, 8
      %v3107 = vmul.u32.u64.compose %v3106, %v3105
      %v3108 = vextract.low.u32 %v3107
      %v3109 = vextract.high.u32 %v3107
      %v3110 = vmul.u32.u64.compose %v3106, %v3101
      %v3111 = vextract.low.u32 %v3110
      %v3112 = vextract.high.u32 %v3110
      %v3113 = vmul.u32 %v3106, %v3097
      %v3114 = vadd.s32 %v3109, %v3111
      %vm3115 = vc.u32 %v3109, %v3111
      %v3116 = vadd.s32 %v3112, 1
      %v3117 = vsel %vm3115, %v3116, %v3112
      %v3118 = vadd.s32 %v3113, %v3117
      %v3119 = vadd.s32 %v3118, 536870912
      %v3120 = vshrl.u32 %v3119, 30
      %v3121 = vshll.u32 %v3120, 30
      %v3122 = vsub.s32 %v3118, %v3121
      %vm3123 = vcmp.lt.s32.totalorder %v3122, 0
      %v3124 = vsub.s32 0, %v3122
      %v3125 = vsel %vm3123, %v3124, %v3122
      %v3126 = vclz %v3125
      %v3127 = vsub.s32 %v3126, 2
      %vm3128 = vcmp.gt.s32.totalorder 0, %v3127
      %v3129 = vsel %vm3128, 0, %v3127
      %v3130 = vsub.s32 32, %v3129
      %v3131 = vshll.u32 %v3122, %v3129
      %v3132 = vshrl.u32 %v3114, %v3130
      %v3133 = vor.u32 %v3131, %v3132
      %v3134 = vsub.s32 4294967266, %v3129
      %v3135 = vadd.s32 %v3134, 127
      %v3136 = vshll.u32 %v3135, 23
      %v3137 = vor.u32 4788187, %v3136
      %v3138 = vand.u32 2147483647, %v3137
      %v3140 = vcvt.s32.f32 %v3133
      %v3141 = vmul.f32 %v3140, %v3138
      %v3142 = vxor.u32 %v3141, 2147483648
      %v3143 = vsel %vm3060, %v3142, %v3141
      %v3144 = vsub.s32 4, %v3120
      %v3145 = vsel %vm3060, %v3144, %v3120
      %v3146 = vsel %vm3059, %v358, %v3143
      %v3147 = vsel %vm3059, 0, %v3145
      %v3148 = vcosq.f32.pop %v3146
      %v3149 = vsinq.f32.pop %v3146
      %vm3150 = vweird.f32 %v358
      %v3151 = vand.u32 %v3147, 3
      %vm3152 = vcmp.lt.s32.totalorder %v3151, 2
      %vm3153 = vcmp.eq.s32.totalorder %v3151, 0
      %v3154 = vxor.u32 %v3149, 2147483648
      %v3155 = vsel %vm3153, %v3148, %v3154
      %vm3156 = vcmp.eq.s32.totalorder %v3151, 2
      %v3157 = vxor.u32 %v3148, 2147483648
      %v3158 = vsel %vm3156, %v3157, %v3149
      %v3159 = vsel %vm3152, %v3155, %v3158
      %v3160 = vsel %vm3150, nan, %v3159
      %v3161 = vand.u32 2147483647, %v359
      %vm3162 = vcmp.le.f32.partialorder %v3161, 0.7853982
      %vm3163 = vcmp.lt.s32.totalorder %v359, 0
      %v3164 = vand.u32 %v359, 2139095040
      %v3165 = vshrl.u32 %v3164, 23
      %v3166 = vsub.s32 %v3165, 127
      %v3167 = vand.u32 2147483647, %v359
      %v3168 = vand.u32 %v3167, 8388607
      %v3169 = vor.u32 %v3168, 8388608
      %v3170 = vsub.s32 0, %v3169
      %v3171 = vadd.s32 %v3166, 1
      %vm3172 = vcmp.gt.s32.totalorder %v3171, 0
      %v3173 = vsel %vm3172, %v3171, 0
      %v3174 = vshrl.u32 %v3173, 5
      %v3175 = vand.u32 %v3173, 31
      %v3176 = vsub.s32 32, %v3175
      %v3177 = vshrl.u32 683565275, %v3176
      %v3178 = vshll.u32 683565275, %v3175
      %v3179 = vshrl.u32 2475754826, %v3176
      %v3180 = vor.u32 %v3178, %v3179
      %v3181 = vshll.u32 2475754826, %v3175
      %v3182 = vshrl.u32 2131351028, %v3176
      %v3183 = vor.u32 %v3181, %v3182
      %v3184 = vshll.u32 2131351028, %v3175
      %v3185 = vshrl.u32 2102212464, %v3176
      %v3186 = vor.u32 %v3184, %v3185
      %v3187 = vshll.u32 2102212464, %v3175
      %v3188 = vshrl.u32 920167782, %v3176
      %v3189 = vor.u32 %v3187, %v3188
      %v3190 = vshll.u32 920167782, %v3175
      %v3191 = vshrl.u32 1326507024, %v3176
      %v3192 = vor.u32 %v3190, %v3191
      %vm3193 = vcmp.lt.s32.totalorder %v3174, 1
      %vm3194 = vcmp.lt.s32.totalorder %v3174, 2
      %vm3195 = vcmp.lt.s32.totalorder %v3174, 3
      %vm3196 = vcmp.lt.s32.totalorder %v3174, 4
      %v3197 = vsel %vm3193, %v3177, %v3180
      %v3198 = vsel %vm3196, %v3186, 2102212464
      %v3199 = vsel %vm3195, %v3183, %v3198
      %v3200 = vsel %vm3194, %v3197, %v3199
      %v3201 = vsel %vm3193, %v3180, %v3183
      %v3202 = vsel %vm3196, %v3189, 920167782
      %v3203 = vsel %vm3195, %v3186, %v3202
      %v3204 = vsel %vm3194, %v3201, %v3203
      %v3205 = vsel %vm3193, %v3183, %v3186
      %v3206 = vsel %vm3196, %v3192, 1326507024
      %v3207 = vsel %vm3195, %v3189, %v3206
      %v3208 = vsel %vm3194, %v3205, %v3207
      %v3209 = vshll.u32 %v3169, 8
      %v3210 = vmul.u32.u64.compose %v3209, %v3208
      %v3211 = vextract.low.u32 %v3210
      %v3212 = vextract.high.u32 %v3210
      %v3213 = vmul.u32.u64.compose %v3209, %v3204
      %v3214 = vextract.low.u32 %v3213
      %v3215 = vextract.high.u32 %v3213
      %v3216 = vmul.u32 %v3209, %v3200
      %v3217 = vadd.s32 %v3212, %v3214
      %vm3218 = vc.u32 %v3212, %v3214
      %v3219 = vadd.s32 %v3215, 1
      %v3220 = vsel %vm3218, %v3219, %v3215
      %v3221 = vadd.s32 %v3216, %v3220
      %v3222 = vadd.s32 %v3221, 536870912
      %v3223 = vshrl.u32 %v3222, 30
      %v3224 = vshll.u32 %v3223, 30
      %v3225 = vsub.s32 %v3221, %v3224
      %vm3226 = vcmp.lt.s32.totalorder %v3225, 0
      %v3227 = vsub.s32 0, %v3225
      %v3228 = vsel %vm3226, %v3227, %v3225
      %v3229 = vclz %v3228
      %v3230 = vsub.s32 %v3229, 2
      %vm3231 = vcmp.gt.s32.totalorder 0, %v3230
      %v3232 = vsel %vm3231, 0, %v3230
      %v3233 = vsub.s32 32, %v3232
      %v3234 = vshll.u32 %v3225, %v3232
      %v3235 = vshrl.u32 %v3217, %v3233
      %v3236 = vor.u32 %v3234, %v3235
      %v3237 = vsub.s32 4294967266, %v3232
      %v3238 = vadd.s32 %v3237, 127
      %v3239 = vshll.u32 %v3238, 23
      %v3240 = vor.u32 4788187, %v3239
      %v3241 = vand.u32 2147483647, %v3240
      %v3243 = vcvt.s32.f32 %v3236
      %v3244 = vmul.f32 %v3243, %v3241
      %v3245 = vxor.u32 %v3244, 2147483648
      %v3246 = vsel %vm3163, %v3245, %v3244
      %v3247 = vsub.s32 4, %v3223
      %v3248 = vsel %vm3163, %v3247, %v3223
      %v3249 = vsel %vm3162, %v359, %v3246
      %v3250 = vsel %vm3162, 0, %v3248
      %v3251 = vcosq.f32.pop %v3249
      %v3252 = vsinq.f32.pop %v3249
      %vm3253 = vweird.f32 %v359
      %v3254 = vand.u32 %v3250, 3
      %vm3255 = vcmp.lt.s32.totalorder %v3254, 2
      %vm3256 = vcmp.eq.s32.totalorder %v3254, 0
      %v3257 = vxor.u32 %v3252, 2147483648
      %v3258 = vsel %vm3256, %v3251, %v3257
      %vm3259 = vcmp.eq.s32.totalorder %v3254, 2
      %v3260 = vxor.u32 %v3251, 2147483648
      %v3261 = vsel %vm3259, %v3260, %v3252
      %v3262 = vsel %vm3255, %v3258, %v3261
      %v3263 = vsel %vm3253, nan, %v3262
      %v3264 = vand.u32 2147483647, %v360
      %vm3265 = vcmp.le.f32.partialorder %v3264, 0.7853982
      %vm3266 = vcmp.lt.s32.totalorder %v360, 0
      %v3267 = vand.u32 %v360, 2139095040
      %v3268 = vshrl.u32 %v3267, 23
      %v3269 = vsub.s32 %v3268, 127
      %v3270 = vand.u32 2147483647, %v360
      %v3271 = vand.u32 %v3270, 8388607
      %v3272 = vor.u32 %v3271, 8388608
      %v3273 = vsub.s32 0, %v3272
      %v3274 = vadd.s32 %v3269, 1
      %vm3275 = vcmp.gt.s32.totalorder %v3274, 0
      %v3276 = vsel %vm3275, %v3274, 0
      %v3277 = vshrl.u32 %v3276, 5
      %v3278 = vand.u32 %v3276, 31
      %v3279 = vsub.s32 32, %v3278
      %v3280 = vshrl.u32 683565275, %v3279
      %v3281 = vshll.u32 683565275, %v3278
      %v3282 = vshrl.u32 2475754826, %v3279
      %v3283 = vor.u32 %v3281, %v3282
      %v3284 = vshll.u32 2475754826, %v3278
      %v3285 = vshrl.u32 2131351028, %v3279
      %v3286 = vor.u32 %v3284, %v3285
      %v3287 = vshll.u32 2131351028, %v3278
      %v3288 = vshrl.u32 2102212464, %v3279
      %v3289 = vor.u32 %v3287, %v3288
      %v3290 = vshll.u32 2102212464, %v3278
      %v3291 = vshrl.u32 920167782, %v3279
      %v3292 = vor.u32 %v3290, %v3291
      %v3293 = vshll.u32 920167782, %v3278
      %v3294 = vshrl.u32 1326507024, %v3279
      %v3295 = vor.u32 %v3293, %v3294
      %vm3296 = vcmp.lt.s32.totalorder %v3277, 1
      %vm3297 = vcmp.lt.s32.totalorder %v3277, 2
      %vm3298 = vcmp.lt.s32.totalorder %v3277, 3
      %vm3299 = vcmp.lt.s32.totalorder %v3277, 4
      %v3300 = vsel %vm3296, %v3280, %v3283
      %v3301 = vsel %vm3299, %v3289, 2102212464
      %v3302 = vsel %vm3298, %v3286, %v3301
      %v3303 = vsel %vm3297, %v3300, %v3302
      %v3304 = vsel %vm3296, %v3283, %v3286
      %v3305 = vsel %vm3299, %v3292, 920167782
      %v3306 = vsel %vm3298, %v3289, %v3305
      %v3307 = vsel %vm3297, %v3304, %v3306
      %v3308 = vsel %vm3296, %v3286, %v3289
      %v3309 = vsel %vm3299, %v3295, 1326507024
      %v3310 = vsel %vm3298, %v3292, %v3309
      %v3311 = vsel %vm3297, %v3308, %v3310
      %v3312 = vshll.u32 %v3272, 8
      %v3313 = vmul.u32.u64.compose %v3312, %v3311
      %v3314 = vextract.low.u32 %v3313
      %v3315 = vextract.high.u32 %v3313
      %v3316 = vmul.u32.u64.compose %v3312, %v3307
      %v3317 = vextract.low.u32 %v3316
      %v3318 = vextract.high.u32 %v3316
      %v3319 = vmul.u32 %v3312, %v3303
      %v3320 = vadd.s32 %v3315, %v3317
      %vm3321 = vc.u32 %v3315, %v3317
      %v3322 = vadd.s32 %v3318, 1
      %v3323 = vsel %vm3321, %v3322, %v3318
      %v3324 = vadd.s32 %v3319, %v3323
      %v3325 = vadd.s32 %v3324, 536870912
      %v3326 = vshrl.u32 %v3325, 30
      %v3327 = vshll.u32 %v3326, 30
      %v3328 = vsub.s32 %v3324, %v3327
      %vm3329 = vcmp.lt.s32.totalorder %v3328, 0
      %v3330 = vsub.s32 0, %v3328
      %v3331 = vsel %vm3329, %v3330, %v3328
      %v3332 = vclz %v3331
      %v3333 = vsub.s32 %v3332, 2
      %vm3334 = vcmp.gt.s32.totalorder 0, %v3333
      %v3335 = vsel %vm3334, 0, %v3333
      %v3336 = vsub.s32 32, %v3335
      %v3337 = vshll.u32 %v3328, %v3335
      %v3338 = vshrl.u32 %v3320, %v3336
      %v3339 = vor.u32 %v3337, %v3338
      %v3340 = vsub.s32 4294967266, %v3335
      %v3341 = vadd.s32 %v3340, 127
      %v3342 = vshll.u32 %v3341, 23
      %v3343 = vor.u32 4788187, %v3342
      %v3344 = vand.u32 2147483647, %v3343
      %v3346 = vcvt.s32.f32 %v3339
      %v3347 = vmul.f32 %v3346, %v3344
      %v3348 = vxor.u32 %v3347, 2147483648
      %v3349 = vsel %vm3266, %v3348, %v3347
      %v3350 = vsub.s32 4, %v3326
      %v3351 = vsel %vm3266, %v3350, %v3326
      %v3352 = vsel %vm3265, %v360, %v3349
      %v3353 = vsel %vm3265, 0, %v3351
      %v3354 = vcosq.f32.pop %v3352
      %v3355 = vsinq.f32.pop %v3352
      %vm3356 = vweird.f32 %v360
      %v3357 = vand.u32 %v3353, 3
      %vm3358 = vcmp.lt.s32.totalorder %v3357, 2
      %vm3359 = vcmp.eq.s32.totalorder %v3357, 0
      %v3360 = vxor.u32 %v3355, 2147483648
      %v3361 = vsel %vm3359, %v3354, %v3360
      %vm3362 = vcmp.eq.s32.totalorder %v3357, 2
      %v3363 = vxor.u32 %v3354, 2147483648
      %v3364 = vsel %vm3362, %v3363, %v3355
      %v3365 = vsel %vm3358, %v3361, %v3364
      %v3366 = vsel %vm3356, nan, %v3365
      %v3367 = vand.u32 2147483647, %v361
      %vm3368 = vcmp.le.f32.partialorder %v3367, 0.7853982
      %vm3369 = vcmp.lt.s32.totalorder %v361, 0
      %v3370 = vand.u32 %v361, 2139095040
      %v3371 = vshrl.u32 %v3370, 23
      %v3372 = vsub.s32 %v3371, 127
      %v3373 = vand.u32 2147483647, %v361
      %v3374 = vand.u32 %v3373, 8388607
      %v3375 = vor.u32 %v3374, 8388608
      %v3376 = vsub.s32 0, %v3375
      %v3377 = vadd.s32 %v3372, 1
      %vm3378 = vcmp.gt.s32.totalorder %v3377, 0
      %v3379 = vsel %vm3378, %v3377, 0
      %v3380 = vshrl.u32 %v3379, 5
      %v3381 = vand.u32 %v3379, 31
      %v3382 = vsub.s32 32, %v3381
      %v3383 = vshrl.u32 683565275, %v3382
      %v3384 = vshll.u32 683565275, %v3381
      %v3385 = vshrl.u32 2475754826, %v3382
      %v3386 = vor.u32 %v3384, %v3385
      %v3387 = vshll.u32 2475754826, %v3381
      %v3388 = vshrl.u32 2131351028, %v3382
      %v3389 = vor.u32 %v3387, %v3388
      %v3390 = vshll.u32 2131351028, %v3381
      %v3391 = vshrl.u32 2102212464, %v3382
      %v3392 = vor.u32 %v3390, %v3391
      %v3393 = vshll.u32 2102212464, %v3381
      %v3394 = vshrl.u32 920167782, %v3382
      %v3395 = vor.u32 %v3393, %v3394
      %v3396 = vshll.u32 920167782, %v3381
      %v3397 = vshrl.u32 1326507024, %v3382
      %v3398 = vor.u32 %v3396, %v3397
      %vm3399 = vcmp.lt.s32.totalorder %v3380, 1
      %vm3400 = vcmp.lt.s32.totalorder %v3380, 2
      %vm3401 = vcmp.lt.s32.totalorder %v3380, 3
      %vm3402 = vcmp.lt.s32.totalorder %v3380, 4
      %v3403 = vsel %vm3399, %v3383, %v3386
      %v3404 = vsel %vm3402, %v3392, 2102212464
      %v3405 = vsel %vm3401, %v3389, %v3404
      %v3406 = vsel %vm3400, %v3403, %v3405
      %v3407 = vsel %vm3399, %v3386, %v3389
      %v3408 = vsel %vm3402, %v3395, 920167782
      %v3409 = vsel %vm3401, %v3392, %v3408
      %v3410 = vsel %vm3400, %v3407, %v3409
      %v3411 = vsel %vm3399, %v3389, %v3392
      %v3412 = vsel %vm3402, %v3398, 1326507024
      %v3413 = vsel %vm3401, %v3395, %v3412
      %v3414 = vsel %vm3400, %v3411, %v3413
      %v3415 = vshll.u32 %v3375, 8
      %v3416 = vmul.u32.u64.compose %v3415, %v3414
      %v3417 = vextract.low.u32 %v3416
      %v3418 = vextract.high.u32 %v3416
      %v3419 = vmul.u32.u64.compose %v3415, %v3410
      %v3420 = vextract.low.u32 %v3419
      %v3421 = vextract.high.u32 %v3419
      %v3422 = vmul.u32 %v3415, %v3406
      %v3423 = vadd.s32 %v3418, %v3420
      %vm3424 = vc.u32 %v3418, %v3420
      %v3425 = vadd.s32 %v3421, 1
      %v3426 = vsel %vm3424, %v3425, %v3421
      %v3427 = vadd.s32 %v3422, %v3426
      %v3428 = vadd.s32 %v3427, 536870912
      %v3429 = vshrl.u32 %v3428, 30
      %v3430 = vshll.u32 %v3429, 30
      %v3431 = vsub.s32 %v3427, %v3430
      %vm3432 = vcmp.lt.s32.totalorder %v3431, 0
      %v3433 = vsub.s32 0, %v3431
      %v3434 = vsel %vm3432, %v3433, %v3431
      %v3435 = vclz %v3434
      %v3436 = vsub.s32 %v3435, 2
      %vm3437 = vcmp.gt.s32.totalorder 0, %v3436
      %v3438 = vsel %vm3437, 0, %v3436
      %v3439 = vsub.s32 32, %v3438
      %v3440 = vshll.u32 %v3431, %v3438
      %v3441 = vshrl.u32 %v3423, %v3439
      %v3442 = vor.u32 %v3440, %v3441
      %v3443 = vsub.s32 4294967266, %v3438
      %v3444 = vadd.s32 %v3443, 127
      %v3445 = vshll.u32 %v3444, 23
      %v3446 = vor.u32 4788187, %v3445
      %v3447 = vand.u32 2147483647, %v3446
      %v3449 = vcvt.s32.f32 %v3442
      %v3450 = vmul.f32 %v3449, %v3447
      %v3451 = vxor.u32 %v3450, 2147483648
      %v3452 = vsel %vm3369, %v3451, %v3450
      %v3453 = vsub.s32 4, %v3429
      %v3454 = vsel %vm3369, %v3453, %v3429
      %v3455 = vsel %vm3368, %v361, %v3452
      %v3456 = vsel %vm3368, 0, %v3454
      %v3457 = vcosq.f32.pop %v3455
      %v3458 = vsinq.f32.pop %v3455
      %vm3459 = vweird.f32 %v361
      %v3460 = vand.u32 %v3456, 3
      %vm3461 = vcmp.lt.s32.totalorder %v3460, 2
      %vm3462 = vcmp.eq.s32.totalorder %v3460, 0
      %v3463 = vxor.u32 %v3458, 2147483648
      %v3464 = vsel %vm3462, %v3457, %v3463
      %vm3465 = vcmp.eq.s32.totalorder %v3460, 2
      %v3466 = vxor.u32 %v3457, 2147483648
      %v3467 = vsel %vm3465, %v3466, %v3458
      %v3468 = vsel %vm3461, %v3464, %v3467
      %v3469 = vsel %vm3459, nan, %v3468
      %v3470 = vand.u32 2147483647, %v362
      %vm3471 = vcmp.le.f32.partialorder %v3470, 0.7853982
      %vm3472 = vcmp.lt.s32.totalorder %v362, 0
      %v3473 = vand.u32 %v362, 2139095040
      %v3474 = vshrl.u32 %v3473, 23
      %v3475 = vsub.s32 %v3474, 127
      %v3476 = vand.u32 2147483647, %v362
      %v3477 = vand.u32 %v3476, 8388607
      %v3478 = vor.u32 %v3477, 8388608
      %v3479 = vsub.s32 0, %v3478
      %v3480 = vadd.s32 %v3475, 1
      %vm3481 = vcmp.gt.s32.totalorder %v3480, 0
      %v3482 = vsel %vm3481, %v3480, 0
      %v3483 = vshrl.u32 %v3482, 5
      %v3484 = vand.u32 %v3482, 31
      %v3485 = vsub.s32 32, %v3484
      %v3486 = vshrl.u32 683565275, %v3485
      %v3487 = vshll.u32 683565275, %v3484
      %v3488 = vshrl.u32 2475754826, %v3485
      %v3489 = vor.u32 %v3487, %v3488
      %v3490 = vshll.u32 2475754826, %v3484
      %v3491 = vshrl.u32 2131351028, %v3485
      %v3492 = vor.u32 %v3490, %v3491
      %v3493 = vshll.u32 2131351028, %v3484
      %v3494 = vshrl.u32 2102212464, %v3485
      %v3495 = vor.u32 %v3493, %v3494
      %v3496 = vshll.u32 2102212464, %v3484
      %v3497 = vshrl.u32 920167782, %v3485
      %v3498 = vor.u32 %v3496, %v3497
      %v3499 = vshll.u32 920167782, %v3484
      %v3500 = vshrl.u32 1326507024, %v3485
      %v3501 = vor.u32 %v3499, %v3500
      %vm3502 = vcmp.lt.s32.totalorder %v3483, 1
      %vm3503 = vcmp.lt.s32.totalorder %v3483, 2
      %vm3504 = vcmp.lt.s32.totalorder %v3483, 3
      %vm3505 = vcmp.lt.s32.totalorder %v3483, 4
      %v3506 = vsel %vm3502, %v3486, %v3489
      %v3507 = vsel %vm3505, %v3495, 2102212464
      %v3508 = vsel %vm3504, %v3492, %v3507
      %v3509 = vsel %vm3503, %v3506, %v3508
      %v3510 = vsel %vm3502, %v3489, %v3492
      %v3511 = vsel %vm3505, %v3498, 920167782
      %v3512 = vsel %vm3504, %v3495, %v3511
      %v3513 = vsel %vm3503, %v3510, %v3512
      %v3514 = vsel %vm3502, %v3492, %v3495
      %v3515 = vsel %vm3505, %v3501, 1326507024
      %v3516 = vsel %vm3504, %v3498, %v3515
      %v3517 = vsel %vm3503, %v3514, %v3516
      %v3518 = vshll.u32 %v3478, 8
      %v3519 = vmul.u32.u64.compose %v3518, %v3517
      %v3520 = vextract.low.u32 %v3519
      %v3521 = vextract.high.u32 %v3519
      %v3522 = vmul.u32.u64.compose %v3518, %v3513
      %v3523 = vextract.low.u32 %v3522
      %v3524 = vextract.high.u32 %v3522
      %v3525 = vmul.u32 %v3518, %v3509
      %v3526 = vadd.s32 %v3521, %v3523
      %vm3527 = vc.u32 %v3521, %v3523
      %v3528 = vadd.s32 %v3524, 1
      %v3529 = vsel %vm3527, %v3528, %v3524
      %v3530 = vadd.s32 %v3525, %v3529
      %v3531 = vadd.s32 %v3530, 536870912
      %v3532 = vshrl.u32 %v3531, 30
      %v3533 = vshll.u32 %v3532, 30
      %v3534 = vsub.s32 %v3530, %v3533
      %vm3535 = vcmp.lt.s32.totalorder %v3534, 0
      %v3536 = vsub.s32 0, %v3534
      %v3537 = vsel %vm3535, %v3536, %v3534
      %v3538 = vclz %v3537
      %v3539 = vsub.s32 %v3538, 2
      %vm3540 = vcmp.gt.s32.totalorder 0, %v3539
      %v3541 = vsel %vm3540, 0, %v3539
      %v3542 = vsub.s32 32, %v3541
      %v3543 = vshll.u32 %v3534, %v3541
      %v3544 = vshrl.u32 %v3526, %v3542
      %v3545 = vor.u32 %v3543, %v3544
      %v3546 = vsub.s32 4294967266, %v3541
      %v3547 = vadd.s32 %v3546, 127
      %v3548 = vshll.u32 %v3547, 23
      %v3549 = vor.u32 4788187, %v3548
      %v3550 = vand.u32 2147483647, %v3549
      %v3552 = vcvt.s32.f32 %v3545
      %v3553 = vmul.f32 %v3552, %v3550
      %v3554 = vxor.u32 %v3553, 2147483648
      %v3555 = vsel %vm3472, %v3554, %v3553
      %v3556 = vsub.s32 4, %v3532
      %v3557 = vsel %vm3472, %v3556, %v3532
      %v3558 = vsel %vm3471, %v362, %v3555
      %v3559 = vsel %vm3471, 0, %v3557
      %v3560 = vcosq.f32.pop %v3558
      %v3561 = vsinq.f32.pop %v3558
      %vm3562 = vweird.f32 %v362
      %v3563 = vand.u32 %v3559, 3
      %vm3564 = vcmp.lt.s32.totalorder %v3563, 2
      %vm3565 = vcmp.eq.s32.totalorder %v3563, 0
      %v3566 = vxor.u32 %v3561, 2147483648
      %v3567 = vsel %vm3565, %v3560, %v3566
      %vm3568 = vcmp.eq.s32.totalorder %v3563, 2
      %v3569 = vxor.u32 %v3560, 2147483648
      %v3570 = vsel %vm3568, %v3569, %v3561
      %v3571 = vsel %vm3564, %v3567, %v3570
      %v3572 = vsel %vm3562, nan, %v3571
      %v3573 = vand.u32 2147483647, %v363
      %vm3574 = vcmp.le.f32.partialorder %v3573, 0.7853982
      %vm3575 = vcmp.lt.s32.totalorder %v363, 0
      %v3576 = vand.u32 %v363, 2139095040
      %v3577 = vshrl.u32 %v3576, 23
      %v3578 = vsub.s32 %v3577, 127
      %v3579 = vand.u32 2147483647, %v363
      %v3580 = vand.u32 %v3579, 8388607
      %v3581 = vor.u32 %v3580, 8388608
      %v3582 = vsub.s32 0, %v3581
      %v3583 = vadd.s32 %v3578, 1
      %vm3584 = vcmp.gt.s32.totalorder %v3583, 0
      %v3585 = vsel %vm3584, %v3583, 0
      %v3586 = vshrl.u32 %v3585, 5
      %v3587 = vand.u32 %v3585, 31
      %v3588 = vsub.s32 32, %v3587
      %v3589 = vshrl.u32 683565275, %v3588
      %v3590 = vshll.u32 683565275, %v3587
      %v3591 = vshrl.u32 2475754826, %v3588
      %v3592 = vor.u32 %v3590, %v3591
      %v3593 = vshll.u32 2475754826, %v3587
      %v3594 = vshrl.u32 2131351028, %v3588
      %v3595 = vor.u32 %v3593, %v3594
      %v3596 = vshll.u32 2131351028, %v3587
      %v3597 = vshrl.u32 2102212464, %v3588
      %v3598 = vor.u32 %v3596, %v3597
      %v3599 = vshll.u32 2102212464, %v3587
      %v3600 = vshrl.u32 920167782, %v3588
      %v3601 = vor.u32 %v3599, %v3600
      %v3602 = vshll.u32 920167782, %v3587
      %v3603 = vshrl.u32 1326507024, %v3588
      %v3604 = vor.u32 %v3602, %v3603
      %vm3605 = vcmp.lt.s32.totalorder %v3586, 1
      %vm3606 = vcmp.lt.s32.totalorder %v3586, 2
      %vm3607 = vcmp.lt.s32.totalorder %v3586, 3
      %vm3608 = vcmp.lt.s32.totalorder %v3586, 4
      %v3609 = vsel %vm3605, %v3589, %v3592
      %v3610 = vsel %vm3608, %v3598, 2102212464
      %v3611 = vsel %vm3607, %v3595, %v3610
      %v3612 = vsel %vm3606, %v3609, %v3611
      %v3613 = vsel %vm3605, %v3592, %v3595
      %v3614 = vsel %vm3608, %v3601, 920167782
      %v3615 = vsel %vm3607, %v3598, %v3614
      %v3616 = vsel %vm3606, %v3613, %v3615
      %v3617 = vsel %vm3605, %v3595, %v3598
      %v3618 = vsel %vm3608, %v3604, 1326507024
      %v3619 = vsel %vm3607, %v3601, %v3618
      %v3620 = vsel %vm3606, %v3617, %v3619
      %v3621 = vshll.u32 %v3581, 8
      %v3622 = vmul.u32.u64.compose %v3621, %v3620
      %v3623 = vextract.low.u32 %v3622
      %v3624 = vextract.high.u32 %v3622
      %v3625 = vmul.u32.u64.compose %v3621, %v3616
      %v3626 = vextract.low.u32 %v3625
      %v3627 = vextract.high.u32 %v3625
      %v3628 = vmul.u32 %v3621, %v3612
      %v3629 = vadd.s32 %v3624, %v3626
      %vm3630 = vc.u32 %v3624, %v3626
      %v3631 = vadd.s32 %v3627, 1
      %v3632 = vsel %vm3630, %v3631, %v3627
      %v3633 = vadd.s32 %v3628, %v3632
      %v3634 = vadd.s32 %v3633, 536870912
      %v3635 = vshrl.u32 %v3634, 30
      %v3636 = vshll.u32 %v3635, 30
      %v3637 = vsub.s32 %v3633, %v3636
      %vm3638 = vcmp.lt.s32.totalorder %v3637, 0
      %v3639 = vsub.s32 0, %v3637
      %v3640 = vsel %vm3638, %v3639, %v3637
      %v3641 = vclz %v3640
      %v3642 = vsub.s32 %v3641, 2
      %vm3643 = vcmp.gt.s32.totalorder 0, %v3642
      %v3644 = vsel %vm3643, 0, %v3642
      %v3645 = vsub.s32 32, %v3644
      %v3646 = vshll.u32 %v3637, %v3644
      %v3647 = vshrl.u32 %v3629, %v3645
      %v3648 = vor.u32 %v3646, %v3647
      %v3649 = vsub.s32 4294967266, %v3644
      %v3650 = vadd.s32 %v3649, 127
      %v3651 = vshll.u32 %v3650, 23
      %v3652 = vor.u32 4788187, %v3651
      %v3653 = vand.u32 2147483647, %v3652
      %v3655 = vcvt.s32.f32 %v3648
      %v3656 = vmul.f32 %v3655, %v3653
      %v3657 = vxor.u32 %v3656, 2147483648
      %v3658 = vsel %vm3575, %v3657, %v3656
      %v3659 = vsub.s32 4, %v3635
      %v3660 = vsel %vm3575, %v3659, %v3635
      %v3661 = vsel %vm3574, %v363, %v3658
      %v3662 = vsel %vm3574, 0, %v3660
      %v3663 = vcosq.f32.pop %v3661
      %v3664 = vsinq.f32.pop %v3661
      %vm3665 = vweird.f32 %v363
      %v3666 = vand.u32 %v3662, 3
      %vm3667 = vcmp.lt.s32.totalorder %v3666, 2
      %vm3668 = vcmp.eq.s32.totalorder %v3666, 0
      %v3669 = vxor.u32 %v3664, 2147483648
      %v3670 = vsel %vm3668, %v3663, %v3669
      %vm3671 = vcmp.eq.s32.totalorder %v3666, 2
      %v3672 = vxor.u32 %v3663, 2147483648
      %v3673 = vsel %vm3671, %v3672, %v3664
      %v3674 = vsel %vm3667, %v3670, %v3673
      %v3675 = vsel %vm3665, nan, %v3674
      %3692 = vrot.lane.b32.xlu0 %v467, 2
      %v3693 = vpop.permute.xlu0 %3692
      %3694 = vrot.lane.b32.xlu0 %v571, 2
      %v3695 = vpop.permute.xlu0 %3694
      %3696 = vrot.lane.b32.xlu0 %v675, 2
      %v3697 = vpop.permute.xlu0 %3696
      %3698 = vrot.lane.b32.xlu0 %v779, 2
      %v3699 = vpop.permute.xlu0 %3698
      %3700 = vrot.lane.b32.xlu0 %v883, 2
      %v3701 = vpop.permute.xlu0 %3700
      %3702 = vrot.lane.b32.xlu0 %v987, 2
      %v3703 = vpop.permute.xlu0 %3702
      %3704 = vrot.lane.b32.xlu0 %v1091, 2
      %v3705 = vpop.permute.xlu0 %3704
      %3706 = vrot.lane.b32.xlu0 %v1195, 2
      %v3707 = vpop.permute.xlu0 %3706
      %3708 = vrot.lane.b32.xlu0 %v1299, 2
      %v3709 = vpop.permute.xlu0 %3708
      %3710 = vrot.lane.b32.xlu0 %v1403, 2
      %v3711 = vpop.permute.xlu0 %3710
      %3712 = vrot.lane.b32.xlu0 %v1507, 2
      %v3713 = vpop.permute.xlu0 %3712
      %3714 = vrot.lane.b32.xlu0 %v1611, 2
      %v3715 = vpop.permute.xlu0 %3714
      %3716 = vrot.lane.b32.xlu0 %v1715, 2
      %v3717 = vpop.permute.xlu0 %3716
      %3718 = vrot.lane.b32.xlu0 %v1819, 2
      %v3719 = vpop.permute.xlu0 %3718
      %3720 = vrot.lane.b32.xlu0 %v1923, 2
      %v3721 = vpop.permute.xlu0 %3720
      %3722 = vrot.lane.b32.xlu0 %v2027, 2
      %v3723 = vpop.permute.xlu0 %3722
      %3756 = vrot.lane.b32.xlu0 %v2130, 14
      %v3757 = vpop.permute.xlu0 %3756
      %3758 = vrot.lane.b32.xlu0 %v2233, 14
      %v3759 = vpop.permute.xlu0 %3758
      %3760 = vrot.lane.b32.xlu0 %v2336, 14
      %v3761 = vpop.permute.xlu0 %3760
      %3762 = vrot.lane.b32.xlu0 %v2439, 14
      %v3763 = vpop.permute.xlu0 %3762
      %3764 = vrot.lane.b32.xlu0 %v2542, 14
      %v3765 = vpop.permute.xlu0 %3764
      %3766 = vrot.lane.b32.xlu0 %v2645, 14
      %v3767 = vpop.permute.xlu0 %3766
      %3768 = vrot.lane.b32.xlu0 %v2748, 14
      %v3769 = vpop.permute.xlu0 %3768
      %3770 = vrot.lane.b32.xlu0 %v2851, 14
      %v3771 = vpop.permute.xlu0 %3770
      %3772 = vrot.lane.b32.xlu0 %v2954, 14
      %v3773 = vpop.permute.xlu0 %3772
      %3774 = vrot.lane.b32.xlu0 %v3057, 14
      %v3775 = vpop.permute.xlu0 %3774
      %3776 = vrot.lane.b32.xlu0 %v3160, 14
      %v3777 = vpop.permute.xlu0 %3776
      %3778 = vrot.lane.b32.xlu0 %v3263, 14
      %v3779 = vpop.permute.xlu0 %3778
      %3780 = vrot.lane.b32.xlu0 %v3366, 14
      %v3781 = vpop.permute.xlu0 %3780
      %3782 = vrot.lane.b32.xlu0 %v3469, 14
      %v3783 = vpop.permute.xlu0 %3782
      %3784 = vrot.lane.b32.xlu0 %v3572, 14
      %v3785 = vpop.permute.xlu0 %3784
      %3786 = vrot.lane.b32.xlu0 %v3675, 14
      %v3787 = vpop.permute.xlu0 %3786
      %vm3804 = vcmask 15360
      %v3805 = vsel %vm3804, %v147, %v3693
      %v3806 = vsel %vm3804, %v148, %v3695
      %v3807 = vsel %vm3804, %v149, %v3697
      %v3808 = vsel %vm3804, %v150, %v3699
      %v3809 = vsel %vm3804, %v151, %v3701
      %v3810 = vsel %vm3804, %v152, %v3703
      %v3811 = vsel %vm3804, %v153, %v3705
      %v3812 = vsel %vm3804, %v154, %v3707
      %v3813 = vsel %vm3804, %v155, %v3709
      %v3814 = vsel %vm3804, %v156, %v3711
      %v3815 = vsel %vm3804, %v157, %v3713
      %v3816 = vsel %vm3804, %v158, %v3715
      %v3817 = vsel %vm3804, %v159, %v3717
      %v3818 = vsel %vm3804, %v160, %v3719
      %v3819 = vsel %vm3804, %v161, %v3721
      %v3820 = vsel %vm3804, %v162, %v3723
      %vm3821 = vcmask 113664
      %v3822 = vsel %vm3821, %v3805, %v3757
      %v3823 = vsel %vm3821, %v3806, %v3759
      %v3824 = vsel %vm3821, %v3807, %v3761
      %v3825 = vsel %vm3821, %v3808, %v3763
      %v3826 = vsel %vm3821, %v3809, %v3765
      %v3827 = vsel %vm3821, %v3810, %v3767
      %v3828 = vsel %vm3821, %v3811, %v3769
      %v3829 = vsel %vm3821, %v3812, %v3771
      %v3830 = vsel %vm3821, %v3813, %v3773
      %v3831 = vsel %vm3821, %v3814, %v3775
      %v3832 = vsel %vm3821, %v3815, %v3777
      %v3833 = vsel %vm3821, %v3816, %v3779
      %v3834 = vsel %vm3821, %v3817, %v3781
      %v3835 = vsel %vm3821, %v3818, %v3783
      %v3836 = vsel %vm3821, %v3819, %v3785
      %v3837 = vsel %vm3821, %v3820, %v3787
      %vm3838 = vcmask 211968
      %3839 = vst.msk [vmem:[%s145] sm:$0xff] %vm3838, %v3822
      %3840 = vst.msk [vmem:[%s145 + $0x8] sm:$0xff] %vm3838, %v3823
      %3841 = vst.msk [vmem:[%s145 + $0x10] sm:$0xff] %vm3838, %v3824
      %3842 = vst.msk [vmem:[%s145 + $0x18] sm:$0xff] %vm3838, %v3825
      %3843 = vst.msk [vmem:[%s145 + $0x20] sm:$0xff] %vm3838, %v3826
      %3844 = vst.msk [vmem:[%s145 + $0x28] sm:$0xff] %vm3838, %v3827
      %3845 = vst.msk [vmem:[%s145 + $0x30] sm:$0xff] %vm3838, %v3828
      %3846 = vst.msk [vmem:[%s145 + $0x38] sm:$0xff] %vm3838, %v3829
      %3847 = vst.msk [vmem:[%s145 + $0x40] sm:$0xff] %vm3838, %v3830
      %3848 = vst.msk [vmem:[%s145 + $0x48] sm:$0xff] %vm3838, %v3831
      %3849 = vst.msk [vmem:[%s145 + $0x50] sm:$0xff] %vm3838, %v3832
      %3850 = vst.msk [vmem:[%s145 + $0x58] sm:$0xff] %vm3838, %v3833
      %3851 = vst.msk [vmem:[%s145 + $0x60] sm:$0xff] %vm3838, %v3834
      %3852 = vst.msk [vmem:[%s145 + $0x68] sm:$0xff] %vm3838, %v3835
      %3853 = vst.msk [vmem:[%s145 + $0x70] sm:$0xff] %vm3838, %v3836
      %3854 = vst.msk [vmem:[%s145 + $0x78] sm:$0xff] %vm3838, %v3837
      %s3855 = smul.u32 16, %s13
      %p3856 = scmp.lt.s32.totalorder %s3855, 31
      %s3857 = scalar_select %p3856, %s3855, 31
      %s3858 = smul.addr %s3857, 8
      %s3859 = scalar_lea.vmem %s2, %s3858
      // Predicated region
      $region29: #{tpu_custom_call.1} parent=27 // pred_check
        %p3860 = pneg %p78
      $region30: #{tpu_custom_call.1} parent=27 // pred_check_branch
        %3862 = sbr.rel (%p3860) target = $region32
      $region31: #{tpu_custom_call.1} parent=27 // pred_region
        %s3863 = smul.u32 16, %s13
      $region32: #{tpu_custom_call.1} parent=27 // pred_fallthru
        _
    $region28: #{tpu_custom_call.1} parent=5 // pred_fallthru
      _
    %p3864 = scmp.le.s32.totalorder 2, %s8
    // Predicated region
    $region33: #{tpu_custom_call.1} parent=5 // pred_check
      %p3865 = pneg %p3864
    $region34: #{tpu_custom_call.1} parent=5 // pred_check_branch
      %3867 = sbr.rel (%p3865) target = $region36
    $region35: #{tpu_custom_call.1} parent=5 // pred_region
      %s3868 = ssub.s32 %s8, 2
      // Predicated region
      $region37: #{tpu_custom_call.1} parent=35 // pred_check
        %p3869 = pneg %p84
      $region38: #{tpu_custom_call.1} parent=35 // pred_check_branch
        %3871 = sbr.rel (%p3869) target = $region40
      $region39: #{tpu_custom_call.1} parent=35 // pred_region
        %s3872 = smul.u32 16, %s14
        %p3873 = scmp.lt.s32.totalorder %s3872, 31
        %s3874 = scalar_select %p3873, %s3872, 31
        %s3875 = smul.addr %s3874, 8
        %s3876 = scalar_lea.vmem %s2, %s3875
      $region40: #{tpu_custom_call.1} parent=35 // pred_fallthru
        _
    $region36: #{tpu_custom_call.1} parent=5 // pred_fallthru
      _
  $region6: #{tpu_custom_call.1} parent=0 // loop_footer
    %s12 = sadd.s32 1, %s8
  $region7: #{tpu_custom_call.1} parent=0 // loop_footer_branch
    %7 = sbr.rel target = $region3
  $region8: #{tpu_custom_call.1} parent=0 // loop_exit
    _

</llo_original>
